<compile_context>
chip_gen: v5e
topology: v5e:2x2
jax: 0.10.0
libtpu: 0.0.40
codegen_flags: <defaults>
</compile_context>

<pallas_src>
import functools

import numpy as np

import jax
import jax.numpy as jnp
from jax.experimental import pallas as pl
from jax.experimental.pallas import tpu as pltpu

EPS = 1e-5          # BatchNorm eps (eval mode)
_SLOPE = 0.2        # LeakyReLU negative slope
_LANE = 128
_G = 8              # sublane offset at which activations are staged in the scratch buffer

_CONV_ORDER = (("conv1", 2), ("conv1_1", 1), ("conv1_2", 1),
               ("conv2", 2), ("conv2_1", 1), ("conv2_2", 1),
               ("conv3", 2), ("conv3_1", 1), ("conv3_2", 1),
               ("conv4", 2), ("conv4_1", 1), ("conv4_2", 1))
_NUM_CONV = len(_CONV_ORDER)


def _ceil_to(x, m):
    return ((x + m - 1) // m) * m


# ----------------------------------------------------------------- host-side weight preparation
def _pack_q(w_oihw, scale, h, w, stride, pad, lane_pad):
    """Pack a 3x3 conv (+ folded BN scale) into ONE (3*lane_pad, Wo*Co) tap/channel-mix matrix.

    Activations are lane-dense slabs A[n*H + ih, iw*Ci + ci] (lane width padded to `lane_pad`).
    The kernel builds, per output row, the three row taps [ih-1 | ih | ih+1] side by side along
    lanes (width 3*lane_pad) and multiplies by this matrix, so one conv layer = one MXU matmul.
    """
    w_oihw = np.asarray(w_oihw, np.float32)
    scale = np.asarray(scale, np.float32)
    co, ci, kh, kw = w_oihw.shape
    ho = (h + 2 * pad - kh) // stride + 1
    wo = (w + 2 * pad - kw) // stride + 1
    q = np.zeros((kh, lane_pad, wo * co), np.float32)
    for di in range(kh):
        for ow in range(wo):
            for dj in range(kw):
                iw = stride * ow + dj - pad
                if 0 <= iw < w:
                    q[di, iw * ci:(iw + 1) * ci, ow * co:(ow + 1) * co] = (
                        w_oihw[:, :, di, dj].T * scale[None, :])
    return q.reshape(kh * lane_pad, wo * co), ho, wo


def prepare_params(params):
    """Fold eval-mode BN (with its running stats), conv bias and the bn4_3 / conv5 clamps into
    packed tap matrices.  Batch-size INDEPENDENT; run once, outside the jitted forward.

    Returns a flat tuple:
      12 x (Q_packed bf16 (3*128, 128), shift f32 (1, 128))   # conv + bias + eval-BN folded
      g43 (1,128), b43 (1,128)            # clamped bn4_3 affine (running stats folded)
      q5 (2,128) f32, b5 (1,1) f32        # clamped conv5 2x2-valid head
    """
    h = w = 32
    flat = []
    for name, stride in _CONV_ORDER:
        p = params[name]
        wt = np.asarray(p["w"], np.float32)
        co, ci = wt.shape[0], wt.shape[1]
        bias = (np.asarray(p["b"], np.float32) if p.get("b") is not None
                else np.zeros((co,), np.float32))
        if p.get("gamma") is not None:          # eval-mode BN fold with actual running stats
            rm = np.asarray(p.get("running_mean", np.zeros((co,))), np.float32)
            rv = np.asarray(p.get("running_var", np.ones((co,))), np.float32)
            scale = np.asarray(p["gamma"], np.float32) / np.sqrt(rv + EPS)
            shift = np.asarray(p["beta"], np.float32) + scale * (bias - rm)
        else:
            scale = np.ones((co,), np.float32)
            shift = bias
        lane_pad = _ceil_to(w * ci, _LANE)
        q, ho, wo = _pack_q(wt, scale, h, w, stride, 1, lane_pad)
        flat += [jnp.asarray(q, jnp.bfloat16),                            # MXU operand in bf16
                 jnp.asarray(np.tile(shift, wo)[None, :], jnp.float32)]
        h, w = ho, wo

    # bn4_3: weight/bias clamped to [-0.01, 0.01]; running stats folded; applied to (x + branch).
    p43 = params["bn4_3"]
    g = np.asarray(p43["gamma"], np.float32)
    rm = np.asarray(p43.get("running_mean", np.zeros_like(g)), np.float32)
    rv = np.asarray(p43.get("running_var", np.ones_like(g)), np.float32)
    g43 = np.clip(g, -0.01, 0.01) / np.sqrt(rv + EPS)
    b43 = np.clip(np.asarray(p43["beta"], np.float32), -0.01, 0.01) - g43 * rm
    flat += [jnp.asarray(np.tile(g43, w)[None, :], jnp.float32),
             jnp.asarray(np.tile(b43, w)[None, :], jnp.float32)]

    # conv5 head (ac_gan=False): single 2x2-valid filter, weight[0] clamped; kept f32 because it
    # is applied as a VPU/XLU lane reduction (no 1-wide MXU matmul).
    p5 = params["conv5"]
    w5 = np.clip(np.asarray(p5["w"], np.float32), -0.01, 0.01)            # (1, 64, 2, 2)
    b5 = (np.asarray(p5["b"], np.float32) if p5.get("b") is not None
          else np.zeros((1,), np.float32))
    co5, ci5, kh5, kw5 = w5.shape
    assert (co5, kh5, kw5) == (1, 2, 2) and (h, w) == (2, 2), "head expects a 2x2x(ndf*8) map"
    q5 = np.zeros((2, w * ci5), np.float32)
    for hh in range(2):
        for ww in range(2):
            q5[hh, ww * ci5:(ww + 1) * ci5] = w5[0, :, hh, ww]
    flat += [jnp.asarray(q5), jnp.asarray(b5.reshape(1, 1))]
    return tuple(flat)


# ------------------------------------------------------------------------------- fused kernel
def _is_first_row(nrows, period):
    """(nrows, 1) bool: True on rows whose within-image row index == 0 (period is a power of 2)."""
    assert period & (period - 1) == 0
    r = jax.lax.broadcasted_iota(jnp.int32, (nrows, 1), 0)
    return (r & (period - 1)) == 0


def _is_last_row(nrows, period):
    assert period & (period - 1) == 0
    r = jax.lax.broadcasted_iota(jnp.int32, (nrows, 1), 0)
    return (r & (period - 1)) == period - 1


def _conv_bn_lrelu(a, q_ref, sh_ref, h_in, stride, buf):
    """One 3x3 conv (+folded bias/eval-BN) + LeakyReLU(0.2) as a single bf16 MXU matmul.

    Row taps come from shifted / strided sublane reads of the VMEM staging buffer (load slots),
    with select-masks at image boundaries -- no 0/1 selector matmuls.  The three taps are
    concatenated along lanes (all offsets 128-aligned) so the layer is one dot with K=3*128.
    """
    nrows, _ = a.shape
    buf[pl.ds(_G, nrows), :] = a                                   # stage current activation
    if stride == 1:
        top = buf[pl.ds(_G - 1, nrows), :]                         # input row ih-1
        bot = buf[pl.ds(_G + 1, nrows), :]                         # input row ih+1
        top = jnp.where(_is_first_row(nrows, h_in), 0.0, top)      # zero-pad at image top
        bot = jnp.where(_is_last_row(nrows, h_in), 0.0, bot)       # zero-pad at image bottom
        a3 = jnp.concatenate([top, a, bot], axis=-1)               # (rows, 3*128)
    else:                                        # stride 2: decimate rows via strided reads
        nro, ho = nrows // 2, h_in // 2
        top = buf[pl.ds(_G - 1, nro, 2), :]                        # input row 2*oh - 1
        even = buf[pl.ds(_G, nro, 2), :]                           # input row 2*oh
        odd = buf[pl.ds(_G + 1, nro, 2), :]                        # input row 2*oh + 1
        top = jnp.where(_is_first_row(nro, ho), 0.0, top)
        a3 = jnp.concatenate([top, even, odd], axis=-1)            # (rows/2, 3*128)
    y = jnp.dot(a3.astype(jnp.bfloat16), q_ref[...],
                preferred_element_type=jnp.float32) + sh_ref[...]
    return jnp.maximum(y, _SLOPE * y)            # LeakyReLU(0.2): mul+max (no select)


def _netd_fused_kernel(*refs, cfg, wasserstein):
    img_ref = refs[0]
    conv_refs = [(refs[1 + 2 * i], refs[2 + 2 * i]) for i in range(_NUM_CONV)]
    g43_ref, b43_ref, q5_ref, b5_ref = refs[1 + 2 * _NUM_CONV: 5 + 2 * _NUM_CONV]
    o_ref = refs[-2]
    buf = refs[-1]

    buf[...] = jnp.zeros(buf.shape, buf.dtype)   # one-time: deterministic guard rows

    a = img_ref[...]                             # (N*32, 128) lane-dense slab (zero-padded lanes)
    li = 0
    for _ in range(4):                           # four residual stages, all VMEM/vreg resident
        x = _conv_bn_lrelu(a, *conv_refs[li], *cfg[li], buf); li += 1   # stride-2 entry conv
        t = _conv_bn_lrelu(x, *conv_refs[li], *cfg[li], buf); li += 1   # conv*_1 + bn*_1
        t = _conv_bn_lrelu(t, *conv_refs[li], *cfg[li], buf); li += 1   # conv*_2 + bn*_2
        a = x + t                                # fused residual add (f32)

    a = a * g43_ref[...] + b43_ref[...]          # clamped bn4_3 affine (running stats folded)

    # conv5 (2x2 valid, single clamped filter): per-image lane reduction -- no 1-wide matmul.
    nrows = a.shape[0]
    nimg = nrows // 2
    buf[pl.ds(_G, nrows), :] = a
    r0 = buf[pl.ds(_G, nimg, 2), :]              # image rows h=0
    r1 = buf[pl.ds(_G + 1, nimg, 2), :]          # image rows h=1
    v = (jnp.sum(r0 * q5_ref[pl.ds(0, 1), :] + r1 * q5_ref[pl.ds(1, 1), :],
                 axis=-1, keepdims=True) + b5_ref[...])
    if not wasserstein:
        v = 1.0 / (1.0 + jnp.exp(-v))            # sigmoid fused into the epilogue
    o_ref[...] = v.astype(o_ref.dtype)


# ---------------------------------------------------------------------------------- forward
def netD_forward(x_nhwc, prepped, *, wasserstein=False):
    """Fused forward.  Takes NHWC input (layout glue is a free reshape + tiny lane pad; no
    transpose / HBM round-trip).  Works for ANY batch size with the same `prepped` weights."""
    assert len(prepped) == 2 * _NUM_CONV + 4
    n, h, w, c = x_nhwc.shape
    assert (h, w) == (32, 32), "CIFAR-10 32x32 input required (conv5 is a 2x2 valid conv)"
    slab = x_nhwc.astype(jnp.float32).reshape(n * h, w * c)        # row-major collapse: no copy
    lane_pad = _ceil_to(w * c, _LANE)
    if lane_pad != w * c:                                          # 96 -> 128 zero lanes
        slab = jnp.pad(slab, ((0, 0), (0, lane_pad - w * c)))

    cfg, hh = [], h
    for _, stride in _CONV_ORDER:
        cfg.append((hh, stride))
        if stride == 2:
            hh //= 2

    kernel = functools.partial(_netd_fused_kernel, cfg=tuple(cfg), wasserstein=wasserstein)
    # Single grid=() pallas_call: every operand is one whole-array VMEM block (~1.2 MB bf16
    # weights + <0.1 MB activations + 40 KB scratch), DMA'd exactly once.
    return pl.pallas_call(
        kernel,
        out_shape=jax.ShapeDtypeStruct((n, 1), jnp.float32),
        scratch_shapes=[pltpu.VMEM((2 * _G + n * h, _LANE), jnp.float32)],
    )(slab, *prepped)                                              # ac_gan=False path: (N, 1)


# --------------------------------------------------------------------------- plain-JAX reference
def reference_forward(x_nchw, params, *, wasserstein=False):
    """lax.conv re-implementation of the PyTorch forward (verification only, f32)."""
    def conv(x, p, stride, pad, w_override=None):
        wt = p["w"] if w_override is None else w_override
        y = jax.lax.conv_general_dilated(
            x, wt, window_strides=(stride, stride), padding=[(pad, pad), (pad, pad)],
            dimension_numbers=("NCHW", "OIHW", "NCHW"))
        if p.get("b") is not None:
            y = y + p["b"][None, :, None, None]
        return y

    def bn_eval(x, gamma, beta, rm, rv):
        inv = gamma / jnp.sqrt(rv + EPS)
        return (x - rm[None, :, None, None]) * inv[None, :, None, None] + beta[None, :, None, None]

    def lrelu(x):
        return jnp.where(x >= 0, x, _SLOPE * x)

    def cbr(x, p, stride):
        y = conv(x, p, stride, 1)
        if p.get("gamma") is not None:
            y = bn_eval(y, p["gamma"], p["beta"], p["running_mean"], p["running_var"])
        return lrelu(y)

    x = x_nchw.astype(jnp.float32)
    for s in ("1", "2", "3", "4"):
        x = cbr(x, params["conv" + s], 2)
        x = x + cbr(cbr(x, params["conv" + s + "_1"], 1), params["conv" + s + "_2"], 1)
    p43 = params["bn4_3"]
    x = bn_eval(x, jnp.clip(p43["gamma"], -0.01, 0.01), jnp.clip(p43["beta"], -0.01, 0.01),
                p43["running_mean"], p43["running_var"])
    w5 = jnp.clip(params["conv5"]["w"], -0.01, 0.01)               # weight[0] clamp (one filter)
    x = conv(x, params["conv5"], 1, 0, w_override=w5)
    if not wasserstein:
        x = jax.nn.sigmoid(x)
    return x.reshape(-1, 1)


# ------------------------------------------------------------------------------------ params
def init_params(key, ndf=8, nc=3, bias=True):
    def conv_p(key, cout, cin, k, with_bn):
        kw_, kb, kg, kbt, km, kv = jax.random.split(key, 6)
        p = {"w": 0.05 * jax.random.normal(kw_, (cout, cin, k, k), jnp.float32),
             "b": (0.01 * jax.random.normal(kb, (cout,), jnp.float32)) if bias else None}
        if with_bn:
            p["gamma"] = 1.0 + 0.05 * jax.random.normal(kg, (cout,), jnp.float32)
            p["beta"] = 0.02 * jax.random.normal(kbt, (cout,), jnp.float32)
            p["running_mean"] = 0.05 * jax.random.normal(km, (cout,), jnp.float32)
            p["running_var"] = 1.0 + 0.1 * jax.random.uniform(kv, (cout,), jnp.float32)
        else:
            p["gamma"] = None
            p["beta"] = None
        return p

    keys = jax.random.split(key, 16)
    k43 = jax.random.split(keys[12], 4)
    params = {
        "conv1":   conv_p(keys[0], ndf, nc, 3, with_bn=False),
        "conv1_1": conv_p(keys[1], ndf, ndf, 3, with_bn=True),          # bn1_1
        "conv1_2": conv_p(keys[2], ndf, ndf, 3, with_bn=True),          # bn1_2
        "conv2":   conv_p(keys[3], ndf * 2, ndf, 3, with_bn=True),      # bn2
        "conv2_1": conv_p(keys[4], ndf * 2, ndf * 2, 3, with_bn=True),  # bn2_1
        "conv2_2": conv_p(keys[5], ndf * 2, ndf * 2, 3, with_bn=True),  # bn2_2
        "conv3":   conv_p(keys[6], ndf * 4, ndf * 2, 3, with_bn=True),  # bn3
        "conv3_1": conv_p(keys[7], ndf * 4, ndf * 4, 3, with_bn=True),  # bn3_1
        "conv3_2": conv_p(keys[8], ndf * 4, ndf * 4, 3, with_bn=True),  # bn3_2
        "conv4":   conv_p(keys[9], ndf * 8, ndf * 4, 3, with_bn=True),  # bn4
        "conv4_1": conv_p(keys[10], ndf * 8, ndf * 8, 3, with_bn=True), # bn4_1
        "conv4_2": conv_p(keys[11], ndf * 8, ndf * 8, 3, with_bn=True), # bn4_2
        "bn4_3": {
            "gamma": 1.0 + 0.05 * jax.random.normal(k43[0], (ndf * 8,), jnp.float32),
            "beta": 0.02 * jax.random.normal(k43[1], (ndf * 8,), jnp.float32),
            "running_mean": 0.05 * jax.random.normal(k43[2], (ndf * 8,), jnp.float32),
            "running_var": 1.0 + 0.1 * jax.random.uniform(k43[3], (ndf * 8,), jnp.float32),
        },
        "conv5":   conv_p(keys[14], 1, ndf * 8, 2, with_bn=False),      # ac_gan=False head
    }
    return params


# -------------------------------------------------------------------------------------- main
if __name__ == "__main__":
    key = jax.random.PRNGKey(0)
    k_param, k_x = jax.random.split(key)

    ndf, nc, batch = 8, 3, 2          # batch-agnostic kernel: larger batches reuse `prepped`
    params = init_params(k_param, ndf=ndf, nc=nc, bias=True)
    x_nhwc = jax.random.normal(k_x, (batch, 32, 32, nc), jnp.float32)

    # Weight preprocessing (BN + running-stats fold, clamps, tap packing) done ONCE on the host.
    prepped = prepare_params(params)

    fwd = jax.jit(functools.partial(netD_forward, wasserstein=False))
    out = fwd(x_nhwc, prepped)
    jax.block_until_ready(out)

    assert out.shape == (batch, 1), out.shape
    assert bool(jnp.all(jnp.isfinite(out)))

    # Cross-check against a plain-JAX (lax.conv, NCHW, f32) reference forward.  Tolerance is
    # 5e-3 (output is post-sigmoid in (0,1)) to cover the bf16 MXU operands + tap reassociation.
    ref = reference_forward(jnp.transpose(x_nhwc, (0, 3, 1, 2)), params, wasserstein=False)
    max_err = float(jnp.max(jnp.abs(out - ref)))
    assert max_err < 5e-3, f"kernel/reference mismatch: max abs err = {max_err}"
    print("KERNEL_OK")
</pallas_src>

<mosaic_0001>
module attributes {stable_mosaic.version = 11 : i64} {
  func.func @_netd_fused_kernel(%arg0: memref<64x128xf32, #tpu.memory_space<vmem>>, %arg1: memref<384x128xbf16, #tpu.memory_space<vmem>>, %arg2: memref<1x128xf32, #tpu.memory_space<vmem>>, %arg3: memref<384x128xbf16, #tpu.memory_space<vmem>>, %arg4: memref<1x128xf32, #tpu.memory_space<vmem>>, %arg5: memref<384x128xbf16, #tpu.memory_space<vmem>>, %arg6: memref<1x128xf32, #tpu.memory_space<vmem>>, %arg7: memref<384x128xbf16, #tpu.memory_space<vmem>>, %arg8: memref<1x128xf32, #tpu.memory_space<vmem>>, %arg9: memref<384x128xbf16, #tpu.memory_space<vmem>>, %arg10: memref<1x128xf32, #tpu.memory_space<vmem>>, %arg11: memref<384x128xbf16, #tpu.memory_space<vmem>>, %arg12: memref<1x128xf32, #tpu.memory_space<vmem>>, %arg13: memref<384x128xbf16, #tpu.memory_space<vmem>>, %arg14: memref<1x128xf32, #tpu.memory_space<vmem>>, %arg15: memref<384x128xbf16, #tpu.memory_space<vmem>>, %arg16: memref<1x128xf32, #tpu.memory_space<vmem>>, %arg17: memref<384x128xbf16, #tpu.memory_space<vmem>>, %arg18: memref<1x128xf32, #tpu.memory_space<vmem>>, %arg19: memref<384x128xbf16, #tpu.memory_space<vmem>>, %arg20: memref<1x128xf32, #tpu.memory_space<vmem>>, %arg21: memref<384x128xbf16, #tpu.memory_space<vmem>>, %arg22: memref<1x128xf32, #tpu.memory_space<vmem>>, %arg23: memref<384x128xbf16, #tpu.memory_space<vmem>>, %arg24: memref<1x128xf32, #tpu.memory_space<vmem>>, %arg25: memref<1x128xf32, #tpu.memory_space<vmem>>, %arg26: memref<1x128xf32, #tpu.memory_space<vmem>>, %arg27: memref<2x128xf32, #tpu.memory_space<vmem>>, %arg28: memref<1x1xf32, #tpu.memory_space<vmem>>, %arg29: memref<2x1xf32, #tpu.memory_space<vmem>>, %arg30: memref<80x128xf32, #tpu.memory_space<vmem>>) attributes {dimension_semantics = [], scalar_prefetch = 0 : i64, scratch_operands = 1 : i64, tpu.core_type = #tpu.core_type<tc>} {
    %cst = arith.constant 0.000000e+00 : f32
    %0 = vector.broadcast %cst : f32 to vector<80x128xf32>
    %c0 = arith.constant 0 : index
    %c0_0 = arith.constant 0 : index
    %1 = vector.load %arg30[%c0, %c0_0] : memref<80x128xf32, #tpu.memory_space<vmem>>, vector<80x128xf32>
    tpu.vector_store %arg30[%c0, %c0_0], %0 {strides = array<i32>} : memref<80x128xf32, #tpu.memory_space<vmem>>, vector<80x128xf32>,
    %c0_1 = arith.constant 0 : index
    %c0_2 = arith.constant 0 : index
    %2 = vector.load %arg0[%c0_1, %c0_2] : memref<64x128xf32, #tpu.memory_space<vmem>>, vector<64x128xf32>
    %c8 = arith.constant 8 : index
    %c0_3 = arith.constant 0 : index
    %3 = vector.load %arg30[%c8, %c0_3] : memref<80x128xf32, #tpu.memory_space<vmem>>, vector<64x128xf32>
    tpu.vector_store %arg30[%c8, %c0_3], %2 {strides = array<i32>} : memref<80x128xf32, #tpu.memory_space<vmem>>, vector<64x128xf32>,
    %c7 = arith.constant 7 : index
    %c0_4 = arith.constant 0 : index
    %4 = tpu.strided_load %arg30[%c7, %c0_4] {strides = array<i32: 2, 1>} : memref<80x128xf32, #tpu.memory_space<vmem>>, vector<32x128xf32>
    %c8_5 = arith.constant 8 : index
    %c0_6 = arith.constant 0 : index
    %5 = tpu.strided_load %arg30[%c8_5, %c0_6] {strides = array<i32: 2, 1>} : memref<80x128xf32, #tpu.memory_space<vmem>>, vector<32x128xf32>
    %c9 = arith.constant 9 : index
    %c0_7 = arith.constant 0 : index
    %6 = tpu.strided_load %arg30[%c9, %c0_7] {strides = array<i32: 2, 1>} : memref<80x128xf32, #tpu.memory_space<vmem>>, vector<32x128xf32>
    %7 = tpu.iota {dimensions = array<i32: 0>} : vector<32x1xi32>
    %c15_i32 = arith.constant 15 : i32
    %8 = vector.broadcast %c15_i32 : i32 to vector<32x1xi32>
    %9 = arith.andi %7, %8 : vector<32x1xi32>
    %c0_i32 = arith.constant 0 : i32
    %10 = vector.broadcast %c0_i32 : i32 to vector<32x1xi32>
    %11 = arith.cmpi eq, %9, %10 : vector<32x1xi32>
    %cst_8 = arith.constant 0.000000e+00 : f32
    %12 = vector.shape_cast %11 : vector<32x1xi1> to vector<32x1xi1>
    %13 = vector.broadcast %12 : vector<32x1xi1> to vector<32x128xi1>
    %14 = vector.broadcast %cst_8 : f32 to vector<32x128xf32>
    %15 = arith.select %13, %14, %4 : vector<32x128xi1>, vector<32x128xf32>
    %16 = tpu.concatenate %15, %5, %6 in 1 : vector<32x128xf32>, vector<32x128xf32>, vector<32x128xf32> -> vector<32x384xf32>
    %17 = arith.truncf %16 : vector<32x384xf32> to vector<32x384xbf16>
    %c0_9 = arith.constant 0 : index
    %c0_10 = arith.constant 0 : index
    %18 = vector.load %arg1[%c0_9, %c0_10] : memref<384x128xbf16, #tpu.memory_space<vmem>>, vector<384x128xbf16>
    %cst_11 = arith.constant dense<0.000000e+00> : vector<32x128xf32>
    %19 = tpu.matmul %17, %18, %cst_11 {dimension_numbers = #tpu.dot_dimension_numbers<[1], [0], [0], [1], [0, 0, 1, 1], [], []>} : vector<32x384xbf16>, vector<384x128xbf16>, vector<32x128xf32> -> vector<32x128xf32>
    %c0_12 = arith.constant 0 : index
    %c0_13 = arith.constant 0 : index
    %20 = vector.load %arg2[%c0_12, %c0_13] : memref<1x128xf32, #tpu.memory_space<vmem>>, vector<1x128xf32>
    %21 = vector.broadcast %20 : vector<1x128xf32> to vector<32x128xf32>
    %22 = arith.addf %19, %21 : vector<32x128xf32>
    %cst_14 = arith.constant 2.000000e-01 : f32
    %23 = vector.broadcast %cst_14 : f32 to vector<32x128xf32>
    %24 = arith.mulf %23, %22 : vector<32x128xf32>
    %25 = arith.maximumf %22, %24 : vector<32x128xf32>
    %c8_15 = arith.constant 8 : index
    %c0_16 = arith.constant 0 : index
    %26 = vector.load %arg30[%c8_15, %c0_16] : memref<80x128xf32, #tpu.memory_space<vmem>>, vector<32x128xf32>
    tpu.vector_store %arg30[%c8_15, %c0_16], %25 {strides = array<i32>} : memref<80x128xf32, #tpu.memory_space<vmem>>, vector<32x128xf32>,
    %c7_17 = arith.constant 7 : index
    %c0_18 = arith.constant 0 : index
    %27 = vector.load %arg30[%c7_17, %c0_18] : memref<80x128xf32, #tpu.memory_space<vmem>>, vector<32x128xf32>
    %c9_19 = arith.constant 9 : index
    %c0_20 = arith.constant 0 : index
    %28 = vector.load %arg30[%c9_19, %c0_20] : memref<80x128xf32, #tpu.memory_space<vmem>>, vector<32x128xf32>
    %29 = tpu.iota {dimensions = array<i32: 0>} : vector<32x1xi32>
    %c15_i32_21 = arith.constant 15 : i32
    %30 = vector.broadcast %c15_i32_21 : i32 to vector<32x1xi32>
    %31 = arith.andi %29, %30 : vector<32x1xi32>
    %c0_i32_22 = arith.constant 0 : i32
    %32 = vector.broadcast %c0_i32_22 : i32 to vector<32x1xi32>
    %33 = arith.cmpi eq, %31, %32 : vector<32x1xi32>
    %cst_23 = arith.constant 0.000000e+00 : f32
    %34 = vector.shape_cast %33 : vector<32x1xi1> to vector<32x1xi1>
    %35 = vector.broadcast %34 : vector<32x1xi1> to vector<32x128xi1>
    %36 = vector.broadcast %cst_23 : f32 to vector<32x128xf32>
    %37 = arith.select %35, %36, %27 : vector<32x128xi1>, vector<32x128xf32>
    %38 = tpu.iota {dimensions = array<i32: 0>} : vector<32x1xi32>
    %c15_i32_24 = arith.constant 15 : i32
    %39 = vector.broadcast %c15_i32_24 : i32 to vector<32x1xi32>
    %40 = arith.andi %38, %39 : vector<32x1xi32>
    %c15_i32_25 = arith.constant 15 : i32
    %41 = vector.broadcast %c15_i32_25 : i32 to vector<32x1xi32>
    %42 = arith.cmpi eq, %40, %41 : vector<32x1xi32>
    %cst_26 = arith.constant 0.000000e+00 : f32
    %43 = vector.shape_cast %42 : vector<32x1xi1> to vector<32x1xi1>
    %44 = vector.broadcast %43 : vector<32x1xi1> to vector<32x128xi1>
    %45 = vector.broadcast %cst_26 : f32 to vector<32x128xf32>
    %46 = arith.select %44, %45, %28 : vector<32x128xi1>, vector<32x128xf32>
    %47 = tpu.concatenate %37, %25, %46 in 1 : vector<32x128xf32>, vector<32x128xf32>, vector<32x128xf32> -> vector<32x384xf32>
    %48 = arith.truncf %47 : vector<32x384xf32> to vector<32x384xbf16>
    %c0_27 = arith.constant 0 : index
    %c0_28 = arith.constant 0 : index
    %49 = vector.load %arg3[%c0_27, %c0_28] : memref<384x128xbf16, #tpu.memory_space<vmem>>, vector<384x128xbf16>
    %cst_29 = arith.constant dense<0.000000e+00> : vector<32x128xf32>
    %50 = tpu.matmul %48, %49, %cst_29 {dimension_numbers = #tpu.dot_dimension_numbers<[1], [0], [0], [1], [0, 0, 1, 1], [], []>} : vector<32x384xbf16>, vector<384x128xbf16>, vector<32x128xf32> -> vector<32x128xf32>
    %c0_30 = arith.constant 0 : index
    %c0_31 = arith.constant 0 : index
    %51 = vector.load %arg4[%c0_30, %c0_31] : memref<1x128xf32, #tpu.memory_space<vmem>>, vector<1x128xf32>
    %52 = vector.broadcast %51 : vector<1x128xf32> to vector<32x128xf32>
    %53 = arith.addf %50, %52 : vector<32x128xf32>
    %cst_32 = arith.constant 2.000000e-01 : f32
    %54 = vector.broadcast %cst_32 : f32 to vector<32x128xf32>
    %55 = arith.mulf %54, %53 : vector<32x128xf32>
    %56 = arith.maximumf %53, %55 : vector<32x128xf32>
    %c8_33 = arith.constant 8 : index
    %c0_34 = arith.constant 0 : index
    %57 = vector.load %arg30[%c8_33, %c0_34] : memref<80x128xf32, #tpu.memory_space<vmem>>, vector<32x128xf32>
    tpu.vector_store %arg30[%c8_33, %c0_34], %56 {strides = array<i32>} : memref<80x128xf32, #tpu.memory_space<vmem>>, vector<32x128xf32>,
    %c7_35 = arith.constant 7 : index
    %c0_36 = arith.constant 0 : index
    %58 = vector.load %arg30[%c7_35, %c0_36] : memref<80x128xf32, #tpu.memory_space<vmem>>, vector<32x128xf32>
    %c9_37 = arith.constant 9 : index
    %c0_38 = arith.constant 0 : index
    %59 = vector.load %arg30[%c9_37, %c0_38] : memref<80x128xf32, #tpu.memory_space<vmem>>, vector<32x128xf32>
    %60 = tpu.iota {dimensions = array<i32: 0>} : vector<32x1xi32>
    %c15_i32_39 = arith.constant 15 : i32
    %61 = vector.broadcast %c15_i32_39 : i32 to vector<32x1xi32>
    %62 = arith.andi %60, %61 : vector<32x1xi32>
    %c0_i32_40 = arith.constant 0 : i32
    %63 = vector.broadcast %c0_i32_40 : i32 to vector<32x1xi32>
    %64 = arith.cmpi eq, %62, %63 : vector<32x1xi32>
    %cst_41 = arith.constant 0.000000e+00 : f32
    %65 = vector.shape_cast %64 : vector<32x1xi1> to vector<32x1xi1>
    %66 = vector.broadcast %65 : vector<32x1xi1> to vector<32x128xi1>
    %67 = vector.broadcast %cst_41 : f32 to vector<32x128xf32>
    %68 = arith.select %66, %67, %58 : vector<32x128xi1>, vector<32x128xf32>
    %69 = tpu.iota {dimensions = array<i32: 0>} : vector<32x1xi32>
    %c15_i32_42 = arith.constant 15 : i32
    %70 = vector.broadcast %c15_i32_42 : i32 to vector<32x1xi32>
    %71 = arith.andi %69, %70 : vector<32x1xi32>
    %c15_i32_43 = arith.constant 15 : i32
    %72 = vector.broadcast %c15_i32_43 : i32 to vector<32x1xi32>
    %73 = arith.cmpi eq, %71, %72 : vector<32x1xi32>
    %cst_44 = arith.constant 0.000000e+00 : f32
    %74 = vector.shape_cast %73 : vector<32x1xi1> to vector<32x1xi1>
    %75 = vector.broadcast %74 : vector<32x1xi1> to vector<32x128xi1>
    %76 = vector.broadcast %cst_44 : f32 to vector<32x128xf32>
    %77 = arith.select %75, %76, %59 : vector<32x128xi1>, vector<32x128xf32>
    %78 = tpu.concatenate %68, %56, %77 in 1 : vector<32x128xf32>, vector<32x128xf32>, vector<32x128xf32> -> vector<32x384xf32>
    %79 = arith.truncf %78 : vector<32x384xf32> to vector<32x384xbf16>
    %c0_45 = arith.constant 0 : index
    %c0_46 = arith.constant 0 : index
    %80 = vector.load %arg5[%c0_45, %c0_46] : memref<384x128xbf16, #tpu.memory_space<vmem>>, vector<384x128xbf16>
    %cst_47 = arith.constant dense<0.000000e+00> : vector<32x128xf32>
    %81 = tpu.matmul %79, %80, %cst_47 {dimension_numbers = #tpu.dot_dimension_numbers<[1], [0], [0], [1], [0, 0, 1, 1], [], []>} : vector<32x384xbf16>, vector<384x128xbf16>, vector<32x128xf32> -> vector<32x128xf32>
    %c0_48 = arith.constant 0 : index
    %c0_49 = arith.constant 0 : index
    %82 = vector.load %arg6[%c0_48, %c0_49] : memref<1x128xf32, #tpu.memory_space<vmem>>, vector<1x128xf32>
    %83 = vector.broadcast %82 : vector<1x128xf32> to vector<32x128xf32>
    %84 = arith.addf %81, %83 : vector<32x128xf32>
    %cst_50 = arith.constant 2.000000e-01 : f32
    %85 = vector.broadcast %cst_50 : f32 to vector<32x128xf32>
    %86 = arith.mulf %85, %84 : vector<32x128xf32>
    %87 = arith.maximumf %84, %86 : vector<32x128xf32>
    %88 = arith.addf %25, %87 : vector<32x128xf32>
    %c8_51 = arith.constant 8 : index
    %c0_52 = arith.constant 0 : index
    %89 = vector.load %arg30[%c8_51, %c0_52] : memref<80x128xf32, #tpu.memory_space<vmem>>, vector<32x128xf32>
    tpu.vector_store %arg30[%c8_51, %c0_52], %88 {strides = array<i32>} : memref<80x128xf32, #tpu.memory_space<vmem>>, vector<32x128xf32>,
    %c7_53 = arith.constant 7 : index
    %c0_54 = arith.constant 0 : index
    %90 = tpu.strided_load %arg30[%c7_53, %c0_54] {strides = array<i32: 2, 1>} : memref<80x128xf32, #tpu.memory_space<vmem>>, vector<16x128xf32>
    %c8_55 = arith.constant 8 : index
    %c0_56 = arith.constant 0 : index
    %91 = tpu.strided_load %arg30[%c8_55, %c0_56] {strides = array<i32: 2, 1>} : memref<80x128xf32, #tpu.memory_space<vmem>>, vector<16x128xf32>
    %c9_57 = arith.constant 9 : index
    %c0_58 = arith.constant 0 : index
    %92 = tpu.strided_load %arg30[%c9_57, %c0_58] {strides = array<i32: 2, 1>} : memref<80x128xf32, #tpu.memory_space<vmem>>, vector<16x128xf32>
    %93 = tpu.iota {dimensions = array<i32: 0>} : vector<16x1xi32>
    %c7_i32 = arith.constant 7 : i32
    %94 = vector.broadcast %c7_i32 : i32 to vector<16x1xi32>
    %95 = arith.andi %93, %94 : vector<16x1xi32>
    %c0_i32_59 = arith.constant 0 : i32
    %96 = vector.broadcast %c0_i32_59 : i32 to vector<16x1xi32>
    %97 = arith.cmpi eq, %95, %96 : vector<16x1xi32>
    %cst_60 = arith.constant 0.000000e+00 : f32
    %98 = vector.shape_cast %97 : vector<16x1xi1> to vector<16x1xi1>
    %99 = vector.broadcast %98 : vector<16x1xi1> to vector<16x128xi1>
    %100 = vector.broadcast %cst_60 : f32 to vector<16x128xf32>
    %101 = arith.select %99, %100, %90 : vector<16x128xi1>, vector<16x128xf32>
    %102 = tpu.concatenate %101, %91, %92 in 1 : vector<16x128xf32>, vector<16x128xf32>, vector<16x128xf32> -> vector<16x384xf32>
    %103 = arith.truncf %102 : vector<16x384xf32> to vector<16x384xbf16>
    %c0_61 = arith.constant 0 : index
    %c0_62 = arith.constant 0 : index
    %104 = vector.load %arg7[%c0_61, %c0_62] : memref<384x128xbf16, #tpu.memory_space<vmem>>, vector<384x128xbf16>
    %cst_63 = arith.constant dense<0.000000e+00> : vector<16x128xf32>
    %105 = tpu.matmul %103, %104, %cst_63 {dimension_numbers = #tpu.dot_dimension_numbers<[1], [0], [0], [1], [0, 0, 1, 1], [], []>} : vector<16x384xbf16>, vector<384x128xbf16>, vector<16x128xf32> -> vector<16x128xf32>
    %c0_64 = arith.constant 0 : index
    %c0_65 = arith.constant 0 : index
    %106 = vector.load %arg8[%c0_64, %c0_65] : memref<1x128xf32, #tpu.memory_space<vmem>>, vector<1x128xf32>
    %107 = vector.broadcast %106 : vector<1x128xf32> to vector<16x128xf32>
    %108 = arith.addf %105, %107 : vector<16x128xf32>
    %cst_66 = arith.constant 2.000000e-01 : f32
    %109 = vector.broadcast %cst_66 : f32 to vector<16x128xf32>
    %110 = arith.mulf %109, %108 : vector<16x128xf32>
    %111 = arith.maximumf %108, %110 : vector<16x128xf32>
    %c8_67 = arith.constant 8 : index
    %c0_68 = arith.constant 0 : index
    %112 = vector.load %arg30[%c8_67, %c0_68] : memref<80x128xf32, #tpu.memory_space<vmem>>, vector<16x128xf32>
    tpu.vector_store %arg30[%c8_67, %c0_68], %111 {strides = array<i32>} : memref<80x128xf32, #tpu.memory_space<vmem>>, vector<16x128xf32>,
    %c7_69 = arith.constant 7 : index
    %c0_70 = arith.constant 0 : index
    %113 = vector.load %arg30[%c7_69, %c0_70] : memref<80x128xf32, #tpu.memory_space<vmem>>, vector<16x128xf32>
    %c9_71 = arith.constant 9 : index
    %c0_72 = arith.constant 0 : index
    %114 = vector.load %arg30[%c9_71, %c0_72] : memref<80x128xf32, #tpu.memory_space<vmem>>, vector<16x128xf32>
    %115 = tpu.iota {dimensions = array<i32: 0>} : vector<16x1xi32>
    %c7_i32_73 = arith.constant 7 : i32
    %116 = vector.broadcast %c7_i32_73 : i32 to vector<16x1xi32>
    %117 = arith.andi %115, %116 : vector<16x1xi32>
    %c0_i32_74 = arith.constant 0 : i32
    %118 = vector.broadcast %c0_i32_74 : i32 to vector<16x1xi32>
    %119 = arith.cmpi eq, %117, %118 : vector<16x1xi32>
    %cst_75 = arith.constant 0.000000e+00 : f32
    %120 = vector.shape_cast %119 : vector<16x1xi1> to vector<16x1xi1>
    %121 = vector.broadcast %120 : vector<16x1xi1> to vector<16x128xi1>
    %122 = vector.broadcast %cst_75 : f32 to vector<16x128xf32>
    %123 = arith.select %121, %122, %113 : vector<16x128xi1>, vector<16x128xf32>
    %124 = tpu.iota {dimensions = array<i32: 0>} : vector<16x1xi32>
    %c7_i32_76 = arith.constant 7 : i32
    %125 = vector.broadcast %c7_i32_76 : i32 to vector<16x1xi32>
    %126 = arith.andi %124, %125 : vector<16x1xi32>
    %c7_i32_77 = arith.constant 7 : i32
    %127 = vector.broadcast %c7_i32_77 : i32 to vector<16x1xi32>
    %128 = arith.cmpi eq, %126, %127 : vector<16x1xi32>
    %cst_78 = arith.constant 0.000000e+00 : f32
    %129 = vector.shape_cast %128 : vector<16x1xi1> to vector<16x1xi1>
    %130 = vector.broadcast %129 : vector<16x1xi1> to vector<16x128xi1>
    %131 = vector.broadcast %cst_78 : f32 to vector<16x128xf32>
    %132 = arith.select %130, %131, %114 : vector<16x128xi1>, vector<16x128xf32>
    %133 = tpu.concatenate %123, %111, %132 in 1 : vector<16x128xf32>, vector<16x128xf32>, vector<16x128xf32> -> vector<16x384xf32>
    %134 = arith.truncf %133 : vector<16x384xf32> to vector<16x384xbf16>
    %c0_79 = arith.constant 0 : index
    %c0_80 = arith.constant 0 : index
    %135 = vector.load %arg9[%c0_79, %c0_80] : memref<384x128xbf16, #tpu.memory_space<vmem>>, vector<384x128xbf16>
    %cst_81 = arith.constant dense<0.000000e+00> : vector<16x128xf32>
    %136 = tpu.matmul %134, %135, %cst_81 {dimension_numbers = #tpu.dot_dimension_numbers<[1], [0], [0], [1], [0, 0, 1, 1], [], []>} : vector<16x384xbf16>, vector<384x128xbf16>, vector<16x128xf32> -> vector<16x128xf32>
    %c0_82 = arith.constant 0 : index
    %c0_83 = arith.constant 0 : index
    %137 = vector.load %arg10[%c0_82, %c0_83] : memref<1x128xf32, #tpu.memory_space<vmem>>, vector<1x128xf32>
    %138 = vector.broadcast %137 : vector<1x128xf32> to vector<16x128xf32>
    %139 = arith.addf %136, %138 : vector<16x128xf32>
    %cst_84 = arith.constant 2.000000e-01 : f32
    %140 = vector.broadcast %cst_84 : f32 to vector<16x128xf32>
    %141 = arith.mulf %140, %139 : vector<16x128xf32>
    %142 = arith.maximumf %139, %141 : vector<16x128xf32>
    %c8_85 = arith.constant 8 : index
    %c0_86 = arith.constant 0 : index
    %143 = vector.load %arg30[%c8_85, %c0_86] : memref<80x128xf32, #tpu.memory_space<vmem>>, vector<16x128xf32>
    tpu.vector_store %arg30[%c8_85, %c0_86], %142 {strides = array<i32>} : memref<80x128xf32, #tpu.memory_space<vmem>>, vector<16x128xf32>,
    %c7_87 = arith.constant 7 : index
    %c0_88 = arith.constant 0 : index
    %144 = vector.load %arg30[%c7_87, %c0_88] : memref<80x128xf32, #tpu.memory_space<vmem>>, vector<16x128xf32>
    %c9_89 = arith.constant 9 : index
    %c0_90 = arith.constant 0 : index
    %145 = vector.load %arg30[%c9_89, %c0_90] : memref<80x128xf32, #tpu.memory_space<vmem>>, vector<16x128xf32>
    %146 = tpu.iota {dimensions = array<i32: 0>} : vector<16x1xi32>
    %c7_i32_91 = arith.constant 7 : i32
    %147 = vector.broadcast %c7_i32_91 : i32 to vector<16x1xi32>
    %148 = arith.andi %146, %147 : vector<16x1xi32>
    %c0_i32_92 = arith.constant 0 : i32
    %149 = vector.broadcast %c0_i32_92 : i32 to vector<16x1xi32>
    %150 = arith.cmpi eq, %148, %149 : vector<16x1xi32>
    %cst_93 = arith.constant 0.000000e+00 : f32
    %151 = vector.shape_cast %150 : vector<16x1xi1> to vector<16x1xi1>
    %152 = vector.broadcast %151 : vector<16x1xi1> to vector<16x128xi1>
    %153 = vector.broadcast %cst_93 : f32 to vector<16x128xf32>
    %154 = arith.select %152, %153, %144 : vector<16x128xi1>, vector<16x128xf32>
    %155 = tpu.iota {dimensions = array<i32: 0>} : vector<16x1xi32>
    %c7_i32_94 = arith.constant 7 : i32
    %156 = vector.broadcast %c7_i32_94 : i32 to vector<16x1xi32>
    %157 = arith.andi %155, %156 : vector<16x1xi32>
    %c7_i32_95 = arith.constant 7 : i32
    %158 = vector.broadcast %c7_i32_95 : i32 to vector<16x1xi32>
    %159 = arith.cmpi eq, %157, %158 : vector<16x1xi32>
    %cst_96 = arith.constant 0.000000e+00 : f32
    %160 = vector.shape_cast %159 : vector<16x1xi1> to vector<16x1xi1>
    %161 = vector.broadcast %160 : vector<16x1xi1> to vector<16x128xi1>
    %162 = vector.broadcast %cst_96 : f32 to vector<16x128xf32>
    %163 = arith.select %161, %162, %145 : vector<16x128xi1>, vector<16x128xf32>
    %164 = tpu.concatenate %154, %142, %163 in 1 : vector<16x128xf32>, vector<16x128xf32>, vector<16x128xf32> -> vector<16x384xf32>
    %165 = arith.truncf %164 : vector<16x384xf32> to vector<16x384xbf16>
    %c0_97 = arith.constant 0 : index
    %c0_98 = arith.constant 0 : index
    %166 = vector.load %arg11[%c0_97, %c0_98] : memref<384x128xbf16, #tpu.memory_space<vmem>>, vector<384x128xbf16>
    %cst_99 = arith.constant dense<0.000000e+00> : vector<16x128xf32>
    %167 = tpu.matmul %165, %166, %cst_99 {dimension_numbers = #tpu.dot_dimension_numbers<[1], [0], [0], [1], [0, 0, 1, 1], [], []>} : vector<16x384xbf16>, vector<384x128xbf16>, vector<16x128xf32> -> vector<16x128xf32>
    %c0_100 = arith.constant 0 : index
    %c0_101 = arith.constant 0 : index
    %168 = vector.load %arg12[%c0_100, %c0_101] : memref<1x128xf32, #tpu.memory_space<vmem>>, vector<1x128xf32>
    %169 = vector.broadcast %168 : vector<1x128xf32> to vector<16x128xf32>
    %170 = arith.addf %167, %169 : vector<16x128xf32>
    %cst_102 = arith.constant 2.000000e-01 : f32
    %171 = vector.broadcast %cst_102 : f32 to vector<16x128xf32>
    %172 = arith.mulf %171, %170 : vector<16x128xf32>
    %173 = arith.maximumf %170, %172 : vector<16x128xf32>
    %174 = arith.addf %111, %173 : vector<16x128xf32>
    %c8_103 = arith.constant 8 : index
    %c0_104 = arith.constant 0 : index
    %175 = vector.load %arg30[%c8_103, %c0_104] : memref<80x128xf32, #tpu.memory_space<vmem>>, vector<16x128xf32>
    tpu.vector_store %arg30[%c8_103, %c0_104], %174 {strides = array<i32>} : memref<80x128xf32, #tpu.memory_space<vmem>>, vector<16x128xf32>,
    %c7_105 = arith.constant 7 : index
    %c0_106 = arith.constant 0 : index
    %176 = tpu.strided_load %arg30[%c7_105, %c0_106] {strides = array<i32: 2, 1>} : memref<80x128xf32, #tpu.memory_space<vmem>>, vector<8x128xf32>
    %c8_107 = arith.constant 8 : index
    %c0_108 = arith.constant 0 : index
    %177 = tpu.strided_load %arg30[%c8_107, %c0_108] {strides = array<i32: 2, 1>} : memref<80x128xf32, #tpu.memory_space<vmem>>, vector<8x128xf32>
    %c9_109 = arith.constant 9 : index
    %c0_110 = arith.constant 0 : index
    %178 = tpu.strided_load %arg30[%c9_109, %c0_110] {strides = array<i32: 2, 1>} : memref<80x128xf32, #tpu.memory_space<vmem>>, vector<8x128xf32>
    %179 = tpu.iota {dimensions = array<i32: 0>} : vector<8x1xi32>
    %c3_i32 = arith.constant 3 : i32
    %180 = vector.broadcast %c3_i32 : i32 to vector<8x1xi32>
    %181 = arith.andi %179, %180 : vector<8x1xi32>
    %c0_i32_111 = arith.constant 0 : i32
    %182 = vector.broadcast %c0_i32_111 : i32 to vector<8x1xi32>
    %183 = arith.cmpi eq, %181, %182 : vector<8x1xi32>
    %cst_112 = arith.constant 0.000000e+00 : f32
    %184 = vector.shape_cast %183 : vector<8x1xi1> to vector<8x1xi1>
    %185 = vector.broadcast %184 : vector<8x1xi1> to vector<8x128xi1>
    %186 = vector.broadcast %cst_112 : f32 to vector<8x128xf32>
    %187 = arith.select %185, %186, %176 : vector<8x128xi1>, vector<8x128xf32>
    %188 = tpu.concatenate %187, %177, %178 in 1 : vector<8x128xf32>, vector<8x128xf32>, vector<8x128xf32> -> vector<8x384xf32>
    %189 = arith.truncf %188 : vector<8x384xf32> to vector<8x384xbf16>
    %c0_113 = arith.constant 0 : index
    %c0_114 = arith.constant 0 : index
    %190 = vector.load %arg13[%c0_113, %c0_114] : memref<384x128xbf16, #tpu.memory_space<vmem>>, vector<384x128xbf16>
    %cst_115 = arith.constant dense<0.000000e+00> : vector<8x128xf32>
    %191 = tpu.matmul %189, %190, %cst_115 {dimension_numbers = #tpu.dot_dimension_numbers<[1], [0], [0], [1], [0, 0, 1, 1], [], []>} : vector<8x384xbf16>, vector<384x128xbf16>, vector<8x128xf32> -> vector<8x128xf32>
    %c0_116 = arith.constant 0 : index
    %c0_117 = arith.constant 0 : index
    %192 = vector.load %arg14[%c0_116, %c0_117] : memref<1x128xf32, #tpu.memory_space<vmem>>, vector<1x128xf32>
    %193 = vector.broadcast %192 : vector<1x128xf32> to vector<8x128xf32>
    %194 = arith.addf %191, %193 : vector<8x128xf32>
    %cst_118 = arith.constant 2.000000e-01 : f32
    %195 = vector.broadcast %cst_118 : f32 to vector<8x128xf32>
    %196 = arith.mulf %195, %194 : vector<8x128xf32>
    %197 = arith.maximumf %194, %196 : vector<8x128xf32>
    %c8_119 = arith.constant 8 : index
    %c0_120 = arith.constant 0 : index
    %198 = vector.load %arg30[%c8_119, %c0_120] : memref<80x128xf32, #tpu.memory_space<vmem>>, vector<8x128xf32>
    tpu.vector_store %arg30[%c8_119, %c0_120], %197 {strides = array<i32>} : memref<80x128xf32, #tpu.memory_space<vmem>>, vector<8x128xf32>,
    %c7_121 = arith.constant 7 : index
    %c0_122 = arith.constant 0 : index
    %199 = vector.load %arg30[%c7_121, %c0_122] : memref<80x128xf32, #tpu.memory_space<vmem>>, vector<8x128xf32>
    %c9_123 = arith.constant 9 : index
    %c0_124 = arith.constant 0 : index
    %200 = vector.load %arg30[%c9_123, %c0_124] : memref<80x128xf32, #tpu.memory_space<vmem>>, vector<8x128xf32>
    %201 = tpu.iota {dimensions = array<i32: 0>} : vector<8x1xi32>
    %c3_i32_125 = arith.constant 3 : i32
    %202 = vector.broadcast %c3_i32_125 : i32 to vector<8x1xi32>
    %203 = arith.andi %201, %202 : vector<8x1xi32>
    %c0_i32_126 = arith.constant 0 : i32
    %204 = vector.broadcast %c0_i32_126 : i32 to vector<8x1xi32>
    %205 = arith.cmpi eq, %203, %204 : vector<8x1xi32>
    %cst_127 = arith.constant 0.000000e+00 : f32
    %206 = vector.shape_cast %205 : vector<8x1xi1> to vector<8x1xi1>
    %207 = vector.broadcast %206 : vector<8x1xi1> to vector<8x128xi1>
    %208 = vector.broadcast %cst_127 : f32 to vector<8x128xf32>
    %209 = arith.select %207, %208, %199 : vector<8x128xi1>, vector<8x128xf32>
    %210 = tpu.iota {dimensions = array<i32: 0>} : vector<8x1xi32>
    %c3_i32_128 = arith.constant 3 : i32
    %211 = vector.broadcast %c3_i32_128 : i32 to vector<8x1xi32>
    %212 = arith.andi %210, %211 : vector<8x1xi32>
    %c3_i32_129 = arith.constant 3 : i32
    %213 = vector.broadcast %c3_i32_129 : i32 to vector<8x1xi32>
    %214 = arith.cmpi eq, %212, %213 : vector<8x1xi32>
    %cst_130 = arith.constant 0.000000e+00 : f32
    %215 = vector.shape_cast %214 : vector<8x1xi1> to vector<8x1xi1>
    %216 = vector.broadcast %215 : vector<8x1xi1> to vector<8x128xi1>
    %217 = vector.broadcast %cst_130 : f32 to vector<8x128xf32>
    %218 = arith.select %216, %217, %200 : vector<8x128xi1>, vector<8x128xf32>
    %219 = tpu.concatenate %209, %197, %218 in 1 : vector<8x128xf32>, vector<8x128xf32>, vector<8x128xf32> -> vector<8x384xf32>
    %220 = arith.truncf %219 : vector<8x384xf32> to vector<8x384xbf16>
    %c0_131 = arith.constant 0 : index
    %c0_132 = arith.constant 0 : index
    %221 = vector.load %arg15[%c0_131, %c0_132] : memref<384x128xbf16, #tpu.memory_space<vmem>>, vector<384x128xbf16>
    %cst_133 = arith.constant dense<0.000000e+00> : vector<8x128xf32>
    %222 = tpu.matmul %220, %221, %cst_133 {dimension_numbers = #tpu.dot_dimension_numbers<[1], [0], [0], [1], [0, 0, 1, 1], [], []>} : vector<8x384xbf16>, vector<384x128xbf16>, vector<8x128xf32> -> vector<8x128xf32>
    %c0_134 = arith.constant 0 : index
    %c0_135 = arith.constant 0 : index
    %223 = vector.load %arg16[%c0_134, %c0_135] : memref<1x128xf32, #tpu.memory_space<vmem>>, vector<1x128xf32>
    %224 = vector.broadcast %223 : vector<1x128xf32> to vector<8x128xf32>
    %225 = arith.addf %222, %224 : vector<8x128xf32>
    %cst_136 = arith.constant 2.000000e-01 : f32
    %226 = vector.broadcast %cst_136 : f32 to vector<8x128xf32>
    %227 = arith.mulf %226, %225 : vector<8x128xf32>
    %228 = arith.maximumf %225, %227 : vector<8x128xf32>
    %c8_137 = arith.constant 8 : index
    %c0_138 = arith.constant 0 : index
    %229 = vector.load %arg30[%c8_137, %c0_138] : memref<80x128xf32, #tpu.memory_space<vmem>>, vector<8x128xf32>
    tpu.vector_store %arg30[%c8_137, %c0_138], %228 {strides = array<i32>} : memref<80x128xf32, #tpu.memory_space<vmem>>, vector<8x128xf32>,
    %c7_139 = arith.constant 7 : index
    %c0_140 = arith.constant 0 : index
    %230 = vector.load %arg30[%c7_139, %c0_140] : memref<80x128xf32, #tpu.memory_space<vmem>>, vector<8x128xf32>
    %c9_141 = arith.constant 9 : index
    %c0_142 = arith.constant 0 : index
    %231 = vector.load %arg30[%c9_141, %c0_142] : memref<80x128xf32, #tpu.memory_space<vmem>>, vector<8x128xf32>
    %232 = tpu.iota {dimensions = array<i32: 0>} : vector<8x1xi32>
    %c3_i32_143 = arith.constant 3 : i32
    %233 = vector.broadcast %c3_i32_143 : i32 to vector<8x1xi32>
    %234 = arith.andi %232, %233 : vector<8x1xi32>
    %c0_i32_144 = arith.constant 0 : i32
    %235 = vector.broadcast %c0_i32_144 : i32 to vector<8x1xi32>
    %236 = arith.cmpi eq, %234, %235 : vector<8x1xi32>
    %cst_145 = arith.constant 0.000000e+00 : f32
    %237 = vector.shape_cast %236 : vector<8x1xi1> to vector<8x1xi1>
    %238 = vector.broadcast %237 : vector<8x1xi1> to vector<8x128xi1>
    %239 = vector.broadcast %cst_145 : f32 to vector<8x128xf32>
    %240 = arith.select %238, %239, %230 : vector<8x128xi1>, vector<8x128xf32>
    %241 = tpu.iota {dimensions = array<i32: 0>} : vector<8x1xi32>
    %c3_i32_146 = arith.constant 3 : i32
    %242 = vector.broadcast %c3_i32_146 : i32 to vector<8x1xi32>
    %243 = arith.andi %241, %242 : vector<8x1xi32>
    %c3_i32_147 = arith.constant 3 : i32
    %244 = vector.broadcast %c3_i32_147 : i32 to vector<8x1xi32>
    %245 = arith.cmpi eq, %243, %244 : vector<8x1xi32>
    %cst_148 = arith.constant 0.000000e+00 : f32
    %246 = vector.shape_cast %245 : vector<8x1xi1> to vector<8x1xi1>
    %247 = vector.broadcast %246 : vector<8x1xi1> to vector<8x128xi1>
    %248 = vector.broadcast %cst_148 : f32 to vector<8x128xf32>
    %249 = arith.select %247, %248, %231 : vector<8x128xi1>, vector<8x128xf32>
    %250 = tpu.concatenate %240, %228, %249 in 1 : vector<8x128xf32>, vector<8x128xf32>, vector<8x128xf32> -> vector<8x384xf32>
    %251 = arith.truncf %250 : vector<8x384xf32> to vector<8x384xbf16>
    %c0_149 = arith.constant 0 : index
    %c0_150 = arith.constant 0 : index
    %252 = vector.load %arg17[%c0_149, %c0_150] : memref<384x128xbf16, #tpu.memory_space<vmem>>, vector<384x128xbf16>
    %cst_151 = arith.constant dense<0.000000e+00> : vector<8x128xf32>
    %253 = tpu.matmul %251, %252, %cst_151 {dimension_numbers = #tpu.dot_dimension_numbers<[1], [0], [0], [1], [0, 0, 1, 1], [], []>} : vector<8x384xbf16>, vector<384x128xbf16>, vector<8x128xf32> -> vector<8x128xf32>
    %c0_152 = arith.constant 0 : index
    %c0_153 = arith.constant 0 : index
    %254 = vector.load %arg18[%c0_152, %c0_153] : memref<1x128xf32, #tpu.memory_space<vmem>>, vector<1x128xf32>
    %255 = vector.broadcast %254 : vector<1x128xf32> to vector<8x128xf32>
    %256 = arith.addf %253, %255 : vector<8x128xf32>
    %cst_154 = arith.constant 2.000000e-01 : f32
    %257 = vector.broadcast %cst_154 : f32 to vector<8x128xf32>
    %258 = arith.mulf %257, %256 : vector<8x128xf32>
    %259 = arith.maximumf %256, %258 : vector<8x128xf32>
    %260 = arith.addf %197, %259 : vector<8x128xf32>
    %c8_155 = arith.constant 8 : index
    %c0_156 = arith.constant 0 : index
    %261 = vector.load %arg30[%c8_155, %c0_156] : memref<80x128xf32, #tpu.memory_space<vmem>>, vector<8x128xf32>
    tpu.vector_store %arg30[%c8_155, %c0_156], %260 {strides = array<i32>} : memref<80x128xf32, #tpu.memory_space<vmem>>, vector<8x128xf32>,
    %c7_157 = arith.constant 7 : index
    %c0_158 = arith.constant 0 : index
    %262 = tpu.strided_load %arg30[%c7_157, %c0_158] {strides = array<i32: 2, 1>} : memref<80x128xf32, #tpu.memory_space<vmem>>, vector<4x128xf32>
    %c8_159 = arith.constant 8 : index
    %c0_160 = arith.constant 0 : index
    %263 = tpu.strided_load %arg30[%c8_159, %c0_160] {strides = array<i32: 2, 1>} : memref<80x128xf32, #tpu.memory_space<vmem>>, vector<4x128xf32>
    %c9_161 = arith.constant 9 : index
    %c0_162 = arith.constant 0 : index
    %264 = tpu.strided_load %arg30[%c9_161, %c0_162] {strides = array<i32: 2, 1>} : memref<80x128xf32, #tpu.memory_space<vmem>>, vector<4x128xf32>
    %265 = tpu.iota {dimensions = array<i32: 0>} : vector<4x1xi32>
    %c1_i32 = arith.constant 1 : i32
    %266 = vector.broadcast %c1_i32 : i32 to vector<4x1xi32>
    %267 = arith.andi %265, %266 : vector<4x1xi32>
    %c0_i32_163 = arith.constant 0 : i32
    %268 = vector.broadcast %c0_i32_163 : i32 to vector<4x1xi32>
    %269 = arith.cmpi eq, %267, %268 : vector<4x1xi32>
    %cst_164 = arith.constant 0.000000e+00 : f32
    %270 = vector.shape_cast %269 : vector<4x1xi1> to vector<4x1xi1>
    %271 = vector.broadcast %270 : vector<4x1xi1> to vector<4x128xi1>
    %272 = vector.broadcast %cst_164 : f32 to vector<4x128xf32>
    %273 = arith.select %271, %272, %262 : vector<4x128xi1>, vector<4x128xf32>
    %274 = tpu.concatenate %273, %263, %264 in 1 : vector<4x128xf32>, vector<4x128xf32>, vector<4x128xf32> -> vector<4x384xf32>
    %275 = arith.truncf %274 : vector<4x384xf32> to vector<4x384xbf16>
    %c0_165 = arith.constant 0 : index
    %c0_166 = arith.constant 0 : index
    %276 = vector.load %arg19[%c0_165, %c0_166] : memref<384x128xbf16, #tpu.memory_space<vmem>>, vector<384x128xbf16>
    %cst_167 = arith.constant dense<0.000000e+00> : vector<4x128xf32>
    %277 = tpu.matmul %275, %276, %cst_167 {dimension_numbers = #tpu.dot_dimension_numbers<[1], [0], [0], [1], [0, 0, 1, 1], [], []>} : vector<4x384xbf16>, vector<384x128xbf16>, vector<4x128xf32> -> vector<4x128xf32>
    %c0_168 = arith.constant 0 : index
    %c0_169 = arith.constant 0 : index
    %278 = vector.load %arg20[%c0_168, %c0_169] : memref<1x128xf32, #tpu.memory_space<vmem>>, vector<1x128xf32>
    %279 = vector.broadcast %278 : vector<1x128xf32> to vector<4x128xf32>
    %280 = arith.addf %277, %279 : vector<4x128xf32>
    %cst_170 = arith.constant 2.000000e-01 : f32
    %281 = vector.broadcast %cst_170 : f32 to vector<4x128xf32>
    %282 = arith.mulf %281, %280 : vector<4x128xf32>
    %283 = arith.maximumf %280, %282 : vector<4x128xf32>
    %c8_171 = arith.constant 8 : index
    %c0_172 = arith.constant 0 : index
    %284 = vector.load %arg30[%c8_171, %c0_172] : memref<80x128xf32, #tpu.memory_space<vmem>>, vector<4x128xf32>
    tpu.vector_store %arg30[%c8_171, %c0_172], %283 {strides = array<i32>} : memref<80x128xf32, #tpu.memory_space<vmem>>, vector<4x128xf32>,
    %c7_173 = arith.constant 7 : index
    %c0_174 = arith.constant 0 : index
    %285 = vector.load %arg30[%c7_173, %c0_174] : memref<80x128xf32, #tpu.memory_space<vmem>>, vector<4x128xf32>
    %c9_175 = arith.constant 9 : index
    %c0_176 = arith.constant 0 : index
    %286 = vector.load %arg30[%c9_175, %c0_176] : memref<80x128xf32, #tpu.memory_space<vmem>>, vector<4x128xf32>
    %287 = tpu.iota {dimensions = array<i32: 0>} : vector<4x1xi32>
    %c1_i32_177 = arith.constant 1 : i32
    %288 = vector.broadcast %c1_i32_177 : i32 to vector<4x1xi32>
    %289 = arith.andi %287, %288 : vector<4x1xi32>
    %c0_i32_178 = arith.constant 0 : i32
    %290 = vector.broadcast %c0_i32_178 : i32 to vector<4x1xi32>
    %291 = arith.cmpi eq, %289, %290 : vector<4x1xi32>
    %cst_179 = arith.constant 0.000000e+00 : f32
    %292 = vector.shape_cast %291 : vector<4x1xi1> to vector<4x1xi1>
    %293 = vector.broadcast %292 : vector<4x1xi1> to vector<4x128xi1>
    %294 = vector.broadcast %cst_179 : f32 to vector<4x128xf32>
    %295 = arith.select %293, %294, %285 : vector<4x128xi1>, vector<4x128xf32>
    %296 = tpu.iota {dimensions = array<i32: 0>} : vector<4x1xi32>
    %c1_i32_180 = arith.constant 1 : i32
    %297 = vector.broadcast %c1_i32_180 : i32 to vector<4x1xi32>
    %298 = arith.andi %296, %297 : vector<4x1xi32>
    %c1_i32_181 = arith.constant 1 : i32
    %299 = vector.broadcast %c1_i32_181 : i32 to vector<4x1xi32>
    %300 = arith.cmpi eq, %298, %299 : vector<4x1xi32>
    %cst_182 = arith.constant 0.000000e+00 : f32
    %301 = vector.shape_cast %300 : vector<4x1xi1> to vector<4x1xi1>
    %302 = vector.broadcast %301 : vector<4x1xi1> to vector<4x128xi1>
    %303 = vector.broadcast %cst_182 : f32 to vector<4x128xf32>
    %304 = arith.select %302, %303, %286 : vector<4x128xi1>, vector<4x128xf32>
    %305 = tpu.concatenate %295, %283, %304 in 1 : vector<4x128xf32>, vector<4x128xf32>, vector<4x128xf32> -> vector<4x384xf32>
    %306 = arith.truncf %305 : vector<4x384xf32> to vector<4x384xbf16>
    %c0_183 = arith.constant 0 : index
    %c0_184 = arith.constant 0 : index
    %307 = vector.load %arg21[%c0_183, %c0_184] : memref<384x128xbf16, #tpu.memory_space<vmem>>, vector<384x128xbf16>
    %cst_185 = arith.constant dense<0.000000e+00> : vector<4x128xf32>
    %308 = tpu.matmul %306, %307, %cst_185 {dimension_numbers = #tpu.dot_dimension_numbers<[1], [0], [0], [1], [0, 0, 1, 1], [], []>} : vector<4x384xbf16>, vector<384x128xbf16>, vector<4x128xf32> -> vector<4x128xf32>
    %c0_186 = arith.constant 0 : index
    %c0_187 = arith.constant 0 : index
    %309 = vector.load %arg22[%c0_186, %c0_187] : memref<1x128xf32, #tpu.memory_space<vmem>>, vector<1x128xf32>
    %310 = vector.broadcast %309 : vector<1x128xf32> to vector<4x128xf32>
    %311 = arith.addf %308, %310 : vector<4x128xf32>
    %cst_188 = arith.constant 2.000000e-01 : f32
    %312 = vector.broadcast %cst_188 : f32 to vector<4x128xf32>
    %313 = arith.mulf %312, %311 : vector<4x128xf32>
    %314 = arith.maximumf %311, %313 : vector<4x128xf32>
    %c8_189 = arith.constant 8 : index
    %c0_190 = arith.constant 0 : index
    %315 = vector.load %arg30[%c8_189, %c0_190] : memref<80x128xf32, #tpu.memory_space<vmem>>, vector<4x128xf32>
    tpu.vector_store %arg30[%c8_189, %c0_190], %314 {strides = array<i32>} : memref<80x128xf32, #tpu.memory_space<vmem>>, vector<4x128xf32>,
    %c7_191 = arith.constant 7 : index
    %c0_192 = arith.constant 0 : index
    %316 = vector.load %arg30[%c7_191, %c0_192] : memref<80x128xf32, #tpu.memory_space<vmem>>, vector<4x128xf32>
    %c9_193 = arith.constant 9 : index
    %c0_194 = arith.constant 0 : index
    %317 = vector.load %arg30[%c9_193, %c0_194] : memref<80x128xf32, #tpu.memory_space<vmem>>, vector<4x128xf32>
    %318 = tpu.iota {dimensions = array<i32: 0>} : vector<4x1xi32>
    %c1_i32_195 = arith.constant 1 : i32
    %319 = vector.broadcast %c1_i32_195 : i32 to vector<4x1xi32>
    %320 = arith.andi %318, %319 : vector<4x1xi32>
    %c0_i32_196 = arith.constant 0 : i32
    %321 = vector.broadcast %c0_i32_196 : i32 to vector<4x1xi32>
    %322 = arith.cmpi eq, %320, %321 : vector<4x1xi32>
    %cst_197 = arith.constant 0.000000e+00 : f32
    %323 = vector.shape_cast %322 : vector<4x1xi1> to vector<4x1xi1>
    %324 = vector.broadcast %323 : vector<4x1xi1> to vector<4x128xi1>
    %325 = vector.broadcast %cst_197 : f32 to vector<4x128xf32>
    %326 = arith.select %324, %325, %316 : vector<4x128xi1>, vector<4x128xf32>
    %327 = tpu.iota {dimensions = array<i32: 0>} : vector<4x1xi32>
    %c1_i32_198 = arith.constant 1 : i32
    %328 = vector.broadcast %c1_i32_198 : i32 to vector<4x1xi32>
    %329 = arith.andi %327, %328 : vector<4x1xi32>
    %c1_i32_199 = arith.constant 1 : i32
    %330 = vector.broadcast %c1_i32_199 : i32 to vector<4x1xi32>
    %331 = arith.cmpi eq, %329, %330 : vector<4x1xi32>
    %cst_200 = arith.constant 0.000000e+00 : f32
    %332 = vector.shape_cast %331 : vector<4x1xi1> to vector<4x1xi1>
    %333 = vector.broadcast %332 : vector<4x1xi1> to vector<4x128xi1>
    %334 = vector.broadcast %cst_200 : f32 to vector<4x128xf32>
    %335 = arith.select %333, %334, %317 : vector<4x128xi1>, vector<4x128xf32>
    %336 = tpu.concatenate %326, %314, %335 in 1 : vector<4x128xf32>, vector<4x128xf32>, vector<4x128xf32> -> vector<4x384xf32>
    %337 = arith.truncf %336 : vector<4x384xf32> to vector<4x384xbf16>
    %c0_201 = arith.constant 0 : index
    %c0_202 = arith.constant 0 : index
    %338 = vector.load %arg23[%c0_201, %c0_202] : memref<384x128xbf16, #tpu.memory_space<vmem>>, vector<384x128xbf16>
    %cst_203 = arith.constant dense<0.000000e+00> : vector<4x128xf32>
    %339 = tpu.matmul %337, %338, %cst_203 {dimension_numbers = #tpu.dot_dimension_numbers<[1], [0], [0], [1], [0, 0, 1, 1], [], []>} : vector<4x384xbf16>, vector<384x128xbf16>, vector<4x128xf32> -> vector<4x128xf32>
    %c0_204 = arith.constant 0 : index
    %c0_205 = arith.constant 0 : index
    %340 = vector.load %arg24[%c0_204, %c0_205] : memref<1x128xf32, #tpu.memory_space<vmem>>, vector<1x128xf32>
    %341 = vector.broadcast %340 : vector<1x128xf32> to vector<4x128xf32>
    %342 = arith.addf %339, %341 : vector<4x128xf32>
    %cst_206 = arith.constant 2.000000e-01 : f32
    %343 = vector.broadcast %cst_206 : f32 to vector<4x128xf32>
    %344 = arith.mulf %343, %342 : vector<4x128xf32>
    %345 = arith.maximumf %342, %344 : vector<4x128xf32>
    %346 = arith.addf %283, %345 : vector<4x128xf32>
    %c0_207 = arith.constant 0 : index
    %c0_208 = arith.constant 0 : index
    %347 = vector.load %arg25[%c0_207, %c0_208] : memref<1x128xf32, #tpu.memory_space<vmem>>, vector<1x128xf32>
    %348 = vector.broadcast %347 : vector<1x128xf32> to vector<4x128xf32>
    %349 = arith.mulf %346, %348 : vector<4x128xf32>
    %c0_209 = arith.constant 0 : index
    %c0_210 = arith.constant 0 : index
    %350 = vector.load %arg26[%c0_209, %c0_210] : memref<1x128xf32, #tpu.memory_space<vmem>>, vector<1x128xf32>
    %351 = vector.broadcast %350 : vector<1x128xf32> to vector<4x128xf32>
    %352 = arith.addf %349, %351 : vector<4x128xf32>
    %c8_211 = arith.constant 8 : index
    %c0_212 = arith.constant 0 : index
    %353 = vector.load %arg30[%c8_211, %c0_212] : memref<80x128xf32, #tpu.memory_space<vmem>>, vector<4x128xf32>
    tpu.vector_store %arg30[%c8_211, %c0_212], %352 {strides = array<i32>} : memref<80x128xf32, #tpu.memory_space<vmem>>, vector<4x128xf32>,
    %c8_213 = arith.constant 8 : index
    %c0_214 = arith.constant 0 : index
    %354 = tpu.strided_load %arg30[%c8_213, %c0_214] {strides = array<i32: 2, 1>} : memref<80x128xf32, #tpu.memory_space<vmem>>, vector<2x128xf32>
    %c9_215 = arith.constant 9 : index
    %c0_216 = arith.constant 0 : index
    %355 = tpu.strided_load %arg30[%c9_215, %c0_216] {strides = array<i32: 2, 1>} : memref<80x128xf32, #tpu.memory_space<vmem>>, vector<2x128xf32>
    %c0_217 = arith.constant 0 : index
    %c0_218 = arith.constant 0 : index
    %356 = vector.load %arg27[%c0_217, %c0_218] : memref<2x128xf32, #tpu.memory_space<vmem>>, vector<1x128xf32>
    %357 = vector.broadcast %356 : vector<1x128xf32> to vector<2x128xf32>
    %358 = arith.mulf %354, %357 : vector<2x128xf32>
    %c1 = arith.constant 1 : index
    %c0_219 = arith.constant 0 : index
    %359 = vector.load %arg27[%c1, %c0_219] : memref<2x128xf32, #tpu.memory_space<vmem>>, vector<1x128xf32>
    %360 = vector.broadcast %359 : vector<1x128xf32> to vector<2x128xf32>
    %361 = arith.mulf %355, %360 : vector<2x128xf32>
    %362 = arith.addf %358, %361 : vector<2x128xf32>
    %cst_220 = arith.constant dense<0.000000e+00> : vector<2xf32>
    %363 = vector.multi_reduction <add>, %362, %cst_220 [1] : vector<2x128xf32> to vector<2xf32>
    %364 = vector.shape_cast %363 : vector<2xf32> to vector<2x1xf32>
    %c0_221 = arith.constant 0 : index
    %c0_222 = arith.constant 0 : index
    %365 = vector.load %arg28[%c0_221, %c0_222] : memref<1x1xf32, #tpu.memory_space<vmem>>, vector<1x1xf32>
    %366 = vector.broadcast %365 : vector<1x1xf32> to vector<2x1xf32>
    %367 = arith.addf %364, %366 : vector<2x1xf32>
    %cst_223 = arith.constant 0.000000e+00 : f32
    %368 = vector.broadcast %cst_223 : f32 to vector<2x1xf32>
    %369 = arith.subf %368, %367 : vector<2x1xf32>
    %370 = math.exp %369 : vector<2x1xf32>
    %cst_224 = arith.constant 1.000000e+00 : f32
    %371 = vector.broadcast %cst_224 : f32 to vector<2x1xf32>
    %372 = arith.addf %371, %370 : vector<2x1xf32>
    %cst_225 = arith.constant 1.000000e+00 : f32
    %373 = vector.broadcast %cst_225 : f32 to vector<2x1xf32>
    %374 = arith.divf %373, %372 : vector<2x1xf32>
    %c0_226 = arith.constant 0 : index
    %c0_227 = arith.constant 0 : index
    %375 = vector.load %arg29[%c0_226, %c0_227] : memref<2x1xf32, #tpu.memory_space<vmem>>, vector<2x1xf32>
    tpu.vector_store %arg29[%c0_226, %c0_227], %374 {strides = array<i32>} : memref<2x1xf32, #tpu.memory_space<vmem>>, vector<2x1xf32>,
    return
  }
}

</mosaic_0001>

<llo_original>
// kernel: netD_forward.1
$region0: #{netD_forward.1}
  #allocation0 [shape = 'u32[]', space=smem, size = 0x4, offset = 0x4, fixed_abs, tag = 'smem constant byte address 0x4 - core index']
  #allocation1 [shape = 'u32[72,128]{1,0:T(1,128)}', space=vmem, size = 0x9000, scoped, tag = 'internal scratch']
  #allocation2 [shape = 'f32[80,128]{1,0:T(8,128)}', space=vmem, size = 0xa000, scoped, tag = 'scratch operand']
  #allocation3 [shape = 'f32[1,1]{1,0:T(1,128)S(1)}', space=vmem, size = 0x200, scoped, tag = 'scoped memory for netD_forward.1']
  %s0 = inlined_call_operand.smem [shape: u32[30], index: -1, kind: input, shape index: {}]
  %s1 = sld [smem:[%s0]]
  %s2 = scalar_lea.smem %s0, 1
  %s3 = sld [smem:[%s2]]
  %s4 = scalar_lea.smem %s0, 2
  %s5 = sld [smem:[%s4]]
  %s6 = scalar_lea.smem %s0, 3
  %s7 = sld [smem:[%s6]]
  %s8 = scalar_lea.smem %s0, 4
  %s9 = sld [smem:[%s8]]
  %s10 = scalar_lea.smem %s0, 5
  %s11 = sld [smem:[%s10]]
  %s12 = scalar_lea.smem %s0, 6
  %s13 = sld [smem:[%s12]]
  %s14 = scalar_lea.smem %s0, 7
  %s15 = sld [smem:[%s14]]
  %s16 = scalar_lea.smem %s0, 8
  %s17 = sld [smem:[%s16]]
  %s18 = scalar_lea.smem %s0, 9
  %s19 = sld [smem:[%s18]]
  %s20 = scalar_lea.smem %s0, 10
  %s21 = sld [smem:[%s20]]
  %s22 = scalar_lea.smem %s0, 11
  %s23 = sld [smem:[%s22]]
  %s24 = scalar_lea.smem %s0, 12
  %s25 = sld [smem:[%s24]]
  %s26 = scalar_lea.smem %s0, 13
  %s27 = sld [smem:[%s26]]
  %s28 = scalar_lea.smem %s0, 14
  %s29 = sld [smem:[%s28]]
  %s30 = scalar_lea.smem %s0, 15
  %s31 = sld [smem:[%s30]]
  %s32 = scalar_lea.smem %s0, 16
  %s33 = sld [smem:[%s32]]
  %s34 = scalar_lea.smem %s0, 17
  %s35 = sld [smem:[%s34]]
  %s36 = scalar_lea.smem %s0, 18
  %s37 = sld [smem:[%s36]]
  %s38 = scalar_lea.smem %s0, 19
  %s39 = sld [smem:[%s38]]
  %s40 = scalar_lea.smem %s0, 20
  %s41 = sld [smem:[%s40]]
  %s42 = scalar_lea.smem %s0, 21
  %s43 = sld [smem:[%s42]]
  %s44 = scalar_lea.smem %s0, 22
  %s45 = sld [smem:[%s44]]
  %s46 = scalar_lea.smem %s0, 23
  %s47 = sld [smem:[%s46]]
  %s48 = scalar_lea.smem %s0, 24
  %s49 = sld [smem:[%s48]]
  %s50 = scalar_lea.smem %s0, 25
  %s51 = sld [smem:[%s50]]
  %s52 = scalar_lea.smem %s0, 26
  %s53 = sld [smem:[%s52]]
  %s54 = scalar_lea.smem %s0, 27
  %s55 = sld [smem:[%s54]]
  %s56 = scalar_lea.smem %s0, 28
  %s57 = sld [smem:[%s56]]
  %s58 = scalar_lea.smem %s0, 29
  %s59 = sld [smem:[%s58]]
  %s60 = sld [smem:[#allocation0]]
  $region178: #{netD_forward.1} parent=0
    _
  %s62 = ssub.s32 1, %s60
  %s63 = scalar_select 0, %s62, %s60
  %v64 = vstv %s57
  %65 = vst [vmem:[#allocation3] sm:$0x1] %v64
  $region1: #{netD_forward.1} parent=0
    #allocation4 [shape = 'u8[512]{0}', space=vmem, size = 0x400, scoped, tag = 'input window, operand 4, single buffered']
    #allocation5 [shape = 's32[1]{0}', space=sflag, size = 0x4, scoped, tag = 'scoped memory for netD_forward.1']
    #allocation6 [shape = 'u8[512]{0}', space=vmem, size = 0x400, scoped, tag = 'input window, operand 6, single buffered']
    #allocation7 [shape = 's32[1]{0}', space=sflag, size = 0x4, scoped, tag = 'scoped memory for netD_forward.1']
    #allocation8 [shape = 'u8[512]{0}', space=vmem, size = 0x400, scoped, tag = 'input window, operand 8, single buffered']
    #allocation9 [shape = 'u8[512]{0}', space=vmem, size = 0x400, scoped, tag = 'input window, operand 10, single buffered']
    #allocation10 [shape = 's32[1]{0}', space=sflag, size = 0x4, scoped, tag = 'scoped memory for netD_forward.1']
    #allocation11 [shape = 'u8[98304]{0}', space=vmem, size = 0x18000, scoped, tag = 'input window, operand 11, single buffered']
    #allocation12 [shape = 'u8[98304]{0}', space=vmem, size = 0x18000, scoped, tag = 'input window, operand 13, single buffered']
    #allocation13 [shape = 's32[1]{0}', space=sflag, size = 0x4, scoped, tag = 'scoped memory for netD_forward.1']
    #allocation14 [shape = 'u8[98304]{0}', space=vmem, size = 0x18000, scoped, tag = 'input window, operand 15, single buffered']
    #allocation15 [shape = 'u8[98304]{0}', space=vmem, size = 0x18000, scoped, tag = 'input window, operand 17, single buffered']
    #allocation16 [shape = 's32[1]{0}', space=sflag, size = 0x4, scoped, tag = 'scoped memory for netD_forward.1']
    #allocation17 [shape = 'u8[98304]{0}', space=vmem, size = 0x18000, scoped, tag = 'input window, operand 19, single buffered']
    #allocation18 [shape = 'u8[98304]{0}', space=vmem, size = 0x18000, scoped, tag = 'input window, operand 21, single buffered']
    #allocation19 [shape = 's32[1]{0}', space=sflag, size = 0x4, scoped, tag = 'scoped memory for netD_forward.1']
    #allocation20 [shape = 'u8[98304]{0}', space=vmem, size = 0x18000, scoped, tag = 'input window, operand 23, single buffered']
    #allocation21 [shape = 'u8[512]{0}', space=vmem, size = 0x400, scoped, tag = 'input window, operand 25, single buffered']
    #allocation22 [shape = 's32[1]{0}', space=sflag, size = 0x4, scoped, tag = 'scoped memory for netD_forward.1']
    #allocation23 [shape = 'u8[512]{0}', space=vmem, size = 0x400, scoped, tag = 'input window, operand 26, single buffered']
    %66 = vsyncpa [#allocation5], 0
    %67 = vsyncpa [#allocation7], 0
    %68 = vsyncpa [#allocation10], 0
    %69 = vsyncpa [#allocation13], 0
    %70 = vsyncpa [#allocation16], 0
    %71 = vsyncpa [#allocation19], 0
    %72 = vsyncpa [#allocation22], 0
    // Predicated region
    $region2: #{netD_forward.1} parent=1 // pred_check
      _
    $region3: #{netD_forward.1} parent=1 // pred_check_branch
      %74 = sbr.rel (0) target = $region5
    $region4: #{netD_forward.1} parent=1 // pred_region
      _
    $region5: #{netD_forward.1} parent=1 // pred_fallthru
      _
    // Predicated region
    $region6: #{netD_forward.1} parent=1 // pred_check
      _
    $region7: #{netD_forward.1} parent=1 // pred_check_branch
      %76 = sbr.rel (0) target = $region9
    $region8: #{netD_forward.1} parent=1 // pred_region
      _
    $region9: #{netD_forward.1} parent=1 // pred_fallthru
      _
    // Predicated region
    $region10: #{netD_forward.1} parent=1 // pred_check
      _
    $region11: #{netD_forward.1} parent=1 // pred_check_branch
      %78 = sbr.rel (0) target = $region13
    $region12: #{netD_forward.1} parent=1 // pred_region
      _
    $region13: #{netD_forward.1} parent=1 // pred_fallthru
      _
    // Predicated region
    $region14: #{netD_forward.1} parent=1 // pred_check
      _
    $region15: #{netD_forward.1} parent=1 // pred_check_branch
      %80 = sbr.rel (0) target = $region17
    $region16: #{netD_forward.1} parent=1 // pred_region
      _
    $region17: #{netD_forward.1} parent=1 // pred_fallthru
      _
    // Predicated region
    $region18: #{netD_forward.1} parent=1 // pred_check
      _
    $region19: #{netD_forward.1} parent=1 // pred_check_branch
      %82 = sbr.rel (0) target = $region21
    $region20: #{netD_forward.1} parent=1 // pred_region
      %84 = vsyncadd [#allocation5], 0
      %s86 = sshll.u32 %s9, 4
      %s87 = int_to_ptr.hbm [resolvable:$true] %s86
      %s88 = sshll.u32 [#allocation4], 4
      %s89 = int_to_ptr.vmem [resolvable:$true] %s88
      %91 = dma.hbm_to_vmem [thread:$0]  %s87, 16, %s89, [#allocation5]
    $region21: #{netD_forward.1} parent=1 // pred_fallthru
      _
    // Predicated region
    $region22: #{netD_forward.1} parent=1 // pred_check
      _
    $region23: #{netD_forward.1} parent=1 // pred_check_branch
      %93 = sbr.rel (0) target = $region25
    $region24: #{netD_forward.1} parent=1 // pred_region
      _
    $region25: #{netD_forward.1} parent=1 // pred_fallthru
      _
    // Predicated region
    $region26: #{netD_forward.1} parent=1 // pred_check
      _
    $region27: #{netD_forward.1} parent=1 // pred_check_branch
      %95 = sbr.rel (0) target = $region29
    $region28: #{netD_forward.1} parent=1 // pred_region
      %97 = vsyncadd [#allocation7], 0
      %s99 = sshll.u32 %s13, 4
      %s100 = int_to_ptr.hbm [resolvable:$true] %s99
      %s101 = sshll.u32 [#allocation6], 4
      %s102 = int_to_ptr.vmem [resolvable:$true] %s101
      %104 = dma.hbm_to_vmem [thread:$0]  %s100, 16, %s102, [#allocation7]
    $region29: #{netD_forward.1} parent=1 // pred_fallthru
      _
    // Predicated region
    $region30: #{netD_forward.1} parent=1 // pred_check
      _
    $region31: #{netD_forward.1} parent=1 // pred_check_branch
      %106 = sbr.rel (0) target = $region33
    $region32: #{netD_forward.1} parent=1 // pred_region
      _
    $region33: #{netD_forward.1} parent=1 // pred_fallthru
      _
    // Predicated region
    $region34: #{netD_forward.1} parent=1 // pred_check
      _
    $region35: #{netD_forward.1} parent=1 // pred_check_branch
      %108 = sbr.rel (0) target = $region37
    $region36: #{netD_forward.1} parent=1 // pred_region
      %110 = vsyncadd [#allocation7], 0
      %s112 = sshll.u32 %s17, 4
      %s113 = int_to_ptr.hbm [resolvable:$true] %s112
      %s114 = sshll.u32 [#allocation8], 4
      %s115 = int_to_ptr.vmem [resolvable:$true] %s114
      %117 = dma.hbm_to_vmem [thread:$0]  %s113, 16, %s115, [#allocation7]
    $region37: #{netD_forward.1} parent=1 // pred_fallthru
      _
    // Predicated region
    $region38: #{netD_forward.1} parent=1 // pred_check
      _
    $region39: #{netD_forward.1} parent=1 // pred_check_branch
      %119 = sbr.rel (0) target = $region41
    $region40: #{netD_forward.1} parent=1 // pred_region
      _
    $region41: #{netD_forward.1} parent=1 // pred_fallthru
      _
    // Predicated region
    $region42: #{netD_forward.1} parent=1 // pred_check
      _
    $region43: #{netD_forward.1} parent=1 // pred_check_branch
      %121 = sbr.rel (0) target = $region45
    $region44: #{netD_forward.1} parent=1 // pred_region
      %123 = vsyncadd [#allocation10], 0
      %s125 = sshll.u32 %s21, 4
      %s126 = int_to_ptr.hbm [resolvable:$true] %s125
      %s127 = sshll.u32 [#allocation9], 4
      %s128 = int_to_ptr.vmem [resolvable:$true] %s127
      %130 = dma.hbm_to_vmem [thread:$0]  %s126, 16, %s128, [#allocation10]
    $region45: #{netD_forward.1} parent=1 // pred_fallthru
      _
    // Predicated region
    $region46: #{netD_forward.1} parent=1 // pred_check
      _
    $region47: #{netD_forward.1} parent=1 // pred_check_branch
      %132 = sbr.rel (0) target = $region49
    $region48: #{netD_forward.1} parent=1 // pred_region
      %134 = vsyncadd [#allocation10], 0
      %s135 = sshll.u32 %s23, 4
      %s136 = int_to_ptr.hbm [resolvable:$true] %s135
      %s137 = sshll.u32 [#allocation11], 4
      %s138 = int_to_ptr.vmem [resolvable:$true] %s137
      %143 = dma.hbm_to_vmem [thread:$0]  %s136, 3072, %s138, [#allocation10], 64, 64, 4
    $region49: #{netD_forward.1} parent=1 // pred_fallthru
      _
    // Predicated region
    $region50: #{netD_forward.1} parent=1 // pred_check
      _
    $region51: #{netD_forward.1} parent=1 // pred_check_branch
      %145 = sbr.rel (0) target = $region53
    $region52: #{netD_forward.1} parent=1 // pred_region
      _
    $region53: #{netD_forward.1} parent=1 // pred_fallthru
      _
    // Predicated region
    $region54: #{netD_forward.1} parent=1 // pred_check
      _
    $region55: #{netD_forward.1} parent=1 // pred_check_branch
      %147 = sbr.rel (0) target = $region57
    $region56: #{netD_forward.1} parent=1 // pred_region
      %149 = vsyncadd [#allocation13], 0
      %s150 = sshll.u32 %s27, 4
      %s151 = int_to_ptr.hbm [resolvable:$true] %s150
      %s152 = sshll.u32 [#allocation12], 4
      %s153 = int_to_ptr.vmem [resolvable:$true] %s152
      %158 = dma.hbm_to_vmem [thread:$0]  %s151, 3072, %s153, [#allocation13], 64, 64, 4
    $region57: #{netD_forward.1} parent=1 // pred_fallthru
      _
    // Predicated region
    $region58: #{netD_forward.1} parent=1 // pred_check
      _
    $region59: #{netD_forward.1} parent=1 // pred_check_branch
      %160 = sbr.rel (0) target = $region61
    $region60: #{netD_forward.1} parent=1 // pred_region
      _
    $region61: #{netD_forward.1} parent=1 // pred_fallthru
      _
    // Predicated region
    $region62: #{netD_forward.1} parent=1 // pred_check
      _
    $region63: #{netD_forward.1} parent=1 // pred_check_branch
      %162 = sbr.rel (0) target = $region65
    $region64: #{netD_forward.1} parent=1 // pred_region
      %164 = vsyncadd [#allocation13], 0
      %s165 = sshll.u32 %s31, 4
      %s166 = int_to_ptr.hbm [resolvable:$true] %s165
      %s167 = sshll.u32 [#allocation14], 4
      %s168 = int_to_ptr.vmem [resolvable:$true] %s167
      %173 = dma.hbm_to_vmem [thread:$0]  %s166, 3072, %s168, [#allocation13], 64, 64, 4
    $region65: #{netD_forward.1} parent=1 // pred_fallthru
      _
    // Predicated region
    $region66: #{netD_forward.1} parent=1 // pred_check
      _
    $region67: #{netD_forward.1} parent=1 // pred_check_branch
      %175 = sbr.rel (0) target = $region69
    $region68: #{netD_forward.1} parent=1 // pred_region
      _
    $region69: #{netD_forward.1} parent=1 // pred_fallthru
      _
    // Predicated region
    $region70: #{netD_forward.1} parent=1 // pred_check
      _
    $region71: #{netD_forward.1} parent=1 // pred_check_branch
      %177 = sbr.rel (0) target = $region73
    $region72: #{netD_forward.1} parent=1 // pred_region
      %179 = vsyncadd [#allocation16], 0
      %s180 = sshll.u32 %s35, 4
      %s181 = int_to_ptr.hbm [resolvable:$true] %s180
      %s182 = sshll.u32 [#allocation15], 4
      %s183 = int_to_ptr.vmem [resolvable:$true] %s182
      %188 = dma.hbm_to_vmem [thread:$0]  %s181, 3072, %s183, [#allocation16], 64, 64, 4
    $region73: #{netD_forward.1} parent=1 // pred_fallthru
      _
    // Predicated region
    $region74: #{netD_forward.1} parent=1 // pred_check
      _
    $region75: #{netD_forward.1} parent=1 // pred_check_branch
      %190 = sbr.rel (0) target = $region77
    $region76: #{netD_forward.1} parent=1 // pred_region
      _
    $region77: #{netD_forward.1} parent=1 // pred_fallthru
      _
    // Predicated region
    $region78: #{netD_forward.1} parent=1 // pred_check
      _
    $region79: #{netD_forward.1} parent=1 // pred_check_branch
      %192 = sbr.rel (0) target = $region81
    $region80: #{netD_forward.1} parent=1 // pred_region
      %194 = vsyncadd [#allocation16], 0
      %s195 = sshll.u32 %s39, 4
      %s196 = int_to_ptr.hbm [resolvable:$true] %s195
      %s197 = sshll.u32 [#allocation17], 4
      %s198 = int_to_ptr.vmem [resolvable:$true] %s197
      %203 = dma.hbm_to_vmem [thread:$0]  %s196, 3072, %s198, [#allocation16], 64, 64, 4
    $region81: #{netD_forward.1} parent=1 // pred_fallthru
      _
    // Predicated region
    $region82: #{netD_forward.1} parent=1 // pred_check
      _
    $region83: #{netD_forward.1} parent=1 // pred_check_branch
      %205 = sbr.rel (0) target = $region85
    $region84: #{netD_forward.1} parent=1 // pred_region
      _
    $region85: #{netD_forward.1} parent=1 // pred_fallthru
      _
    // Predicated region
    $region86: #{netD_forward.1} parent=1 // pred_check
      _
    $region87: #{netD_forward.1} parent=1 // pred_check_branch
      %207 = sbr.rel (0) target = $region89
    $region88: #{netD_forward.1} parent=1 // pred_region
      %209 = vsyncadd [#allocation19], 0
      %s210 = sshll.u32 %s43, 4
      %s211 = int_to_ptr.hbm [resolvable:$true] %s210
      %s212 = sshll.u32 [#allocation18], 4
      %s213 = int_to_ptr.vmem [resolvable:$true] %s212
      %218 = dma.hbm_to_vmem [thread:$0]  %s211, 3072, %s213, [#allocation19], 64, 64, 4
    $region89: #{netD_forward.1} parent=1 // pred_fallthru
      _
    // Predicated region
    $region90: #{netD_forward.1} parent=1 // pred_check
      _
    $region91: #{netD_forward.1} parent=1 // pred_check_branch
      %220 = sbr.rel (0) target = $region93
    $region92: #{netD_forward.1} parent=1 // pred_region
      _
    $region93: #{netD_forward.1} parent=1 // pred_fallthru
      _
    // Predicated region
    $region94: #{netD_forward.1} parent=1 // pred_check
      _
    $region95: #{netD_forward.1} parent=1 // pred_check_branch
      %222 = sbr.rel (0) target = $region97
    $region96: #{netD_forward.1} parent=1 // pred_region
      %224 = vsyncadd [#allocation19], 0
      %s225 = sshll.u32 %s47, 4
      %s226 = int_to_ptr.hbm [resolvable:$true] %s225
      %s227 = sshll.u32 [#allocation20], 4
      %s228 = int_to_ptr.vmem [resolvable:$true] %s227
      %233 = dma.hbm_to_vmem [thread:$0]  %s226, 3072, %s228, [#allocation19], 64, 64, 4
    $region97: #{netD_forward.1} parent=1 // pred_fallthru
      _
    // Predicated region
    $region98: #{netD_forward.1} parent=1 // pred_check
      _
    $region99: #{netD_forward.1} parent=1 // pred_check_branch
      %235 = sbr.rel (0) target = $region101
    $region100: #{netD_forward.1} parent=1 // pred_region
      _
    $region101: #{netD_forward.1} parent=1 // pred_fallthru
      _
    // Predicated region
    $region102: #{netD_forward.1} parent=1 // pred_check
      _
    $region103: #{netD_forward.1} parent=1 // pred_check_branch
      %237 = sbr.rel (0) target = $region105
    $region104: #{netD_forward.1} parent=1 // pred_region
      %239 = vsyncadd [#allocation22], 0
      %s241 = sshll.u32 %s51, 4
      %s242 = int_to_ptr.hbm [resolvable:$true] %s241
      %s243 = sshll.u32 [#allocation21], 4
      %s244 = int_to_ptr.vmem [resolvable:$true] %s243
      %246 = dma.hbm_to_vmem [thread:$0]  %s242, 16, %s244, [#allocation22]
    $region105: #{netD_forward.1} parent=1 // pred_fallthru
      _
    // Predicated region
    $region106: #{netD_forward.1} parent=1 // pred_check
      _
    $region107: #{netD_forward.1} parent=1 // pred_check_branch
      %248 = sbr.rel (0) target = $region109
    $region108: #{netD_forward.1} parent=1 // pred_region
      %250 = vsyncadd [#allocation22], 0
      %s252 = sshll.u32 %s53, 4
      %s253 = int_to_ptr.hbm [resolvable:$true] %s252
      %s254 = sshll.u32 [#allocation23], 4
      %s255 = int_to_ptr.vmem [resolvable:$true] %s254
      %257 = dma.hbm_to_vmem [thread:$0]  %s253, 16, %s255, [#allocation22]
    $region109: #{netD_forward.1} parent=1 // pred_fallthru
      _
    // Predicated region
    $region110: #{netD_forward.1} parent=1 // pred_check
      _
    $region111: #{netD_forward.1} parent=1 // pred_check_branch
      %259 = sbr.rel (0) target = $region113
    $region112: #{netD_forward.1} parent=1 // pred_region
      _
    $region113: #{netD_forward.1} parent=1 // pred_fallthru
      _
    // Predicated region
    $region114: #{netD_forward.1} parent=1 // pred_check
      _
    $region115: #{netD_forward.1} parent=1 // pred_check_branch
      %261 = sbr.rel (0) target = $region117
    $region116: #{netD_forward.1} parent=1 // pred_region
      _
    $region117: #{netD_forward.1} parent=1 // pred_fallthru
      _
    // Predicated region
    $region118: #{netD_forward.1} parent=1 // pred_check
      _
    $region119: #{netD_forward.1} parent=1 // pred_check_branch
      %263 = sbr.rel (0) target = $region121
    $region120: #{netD_forward.1} parent=1 // pred_region
      %265 = dma.done [#allocation5], 16
    $region121: #{netD_forward.1} parent=1 // pred_fallthru
      _
    // Predicated region
    $region122: #{netD_forward.1} parent=1 // pred_check
      _
    $region123: #{netD_forward.1} parent=1 // pred_check_branch
      %267 = sbr.rel (0) target = $region125
    $region124: #{netD_forward.1} parent=1 // pred_region
      %269 = dma.done [#allocation7], 16
    $region125: #{netD_forward.1} parent=1 // pred_fallthru
      _
    // Predicated region
    $region126: #{netD_forward.1} parent=1 // pred_check
      _
    $region127: #{netD_forward.1} parent=1 // pred_check_branch
      %271 = sbr.rel (0) target = $region129
    $region128: #{netD_forward.1} parent=1 // pred_region
      %273 = dma.done [#allocation7], 16
    $region129: #{netD_forward.1} parent=1 // pred_fallthru
      _
    // Predicated region
    $region130: #{netD_forward.1} parent=1 // pred_check
      _
    $region131: #{netD_forward.1} parent=1 // pred_check_branch
      %275 = sbr.rel (0) target = $region133
    $region132: #{netD_forward.1} parent=1 // pred_region
      %277 = dma.done [#allocation10], 16
    $region133: #{netD_forward.1} parent=1 // pred_fallthru
      _
    // Predicated region
    $region134: #{netD_forward.1} parent=1 // pred_check
      _
    $region135: #{netD_forward.1} parent=1 // pred_check_branch
      %279 = sbr.rel (0) target = $region137
    $region136: #{netD_forward.1} parent=1 // pred_region
      %281 = dma.done [#allocation10], 3072
    $region137: #{netD_forward.1} parent=1 // pred_fallthru
      _
    // Predicated region
    $region138: #{netD_forward.1} parent=1 // pred_check
      _
    $region139: #{netD_forward.1} parent=1 // pred_check_branch
      %283 = sbr.rel (0) target = $region141
    $region140: #{netD_forward.1} parent=1 // pred_region
      %285 = dma.done [#allocation13], 3072
    $region141: #{netD_forward.1} parent=1 // pred_fallthru
      _
    // Predicated region
    $region142: #{netD_forward.1} parent=1 // pred_check
      _
    $region143: #{netD_forward.1} parent=1 // pred_check_branch
      %287 = sbr.rel (0) target = $region145
    $region144: #{netD_forward.1} parent=1 // pred_region
      %289 = dma.done [#allocation13], 3072
    $region145: #{netD_forward.1} parent=1 // pred_fallthru
      _
    // Predicated region
    $region146: #{netD_forward.1} parent=1 // pred_check
      _
    $region147: #{netD_forward.1} parent=1 // pred_check_branch
      %291 = sbr.rel (0) target = $region149
    $region148: #{netD_forward.1} parent=1 // pred_region
      %293 = dma.done [#allocation16], 3072
    $region149: #{netD_forward.1} parent=1 // pred_fallthru
      _
    // Predicated region
    $region150: #{netD_forward.1} parent=1 // pred_check
      _
    $region151: #{netD_forward.1} parent=1 // pred_check_branch
      %295 = sbr.rel (0) target = $region153
    $region152: #{netD_forward.1} parent=1 // pred_region
      %297 = dma.done [#allocation16], 3072
    $region153: #{netD_forward.1} parent=1 // pred_fallthru
      _
    // Predicated region
    $region154: #{netD_forward.1} parent=1 // pred_check
      _
    $region155: #{netD_forward.1} parent=1 // pred_check_branch
      %299 = sbr.rel (0) target = $region157
    $region156: #{netD_forward.1} parent=1 // pred_region
      %301 = dma.done [#allocation19], 3072
    $region157: #{netD_forward.1} parent=1 // pred_fallthru
      _
    // Predicated region
    $region158: #{netD_forward.1} parent=1 // pred_check
      _
    $region159: #{netD_forward.1} parent=1 // pred_check_branch
      %303 = sbr.rel (0) target = $region161
    $region160: #{netD_forward.1} parent=1 // pred_region
      %305 = dma.done [#allocation19], 3072
    $region161: #{netD_forward.1} parent=1 // pred_fallthru
      _
    // Predicated region
    $region162: #{netD_forward.1} parent=1 // pred_check
      _
    $region163: #{netD_forward.1} parent=1 // pred_check_branch
      %307 = sbr.rel (0) target = $region165
    $region164: #{netD_forward.1} parent=1 // pred_region
      %309 = dma.done [#allocation22], 16
    $region165: #{netD_forward.1} parent=1 // pred_fallthru
      _
    // Predicated region
    $region166: #{netD_forward.1} parent=1 // pred_check
      _
    $region167: #{netD_forward.1} parent=1 // pred_check_branch
      %311 = sbr.rel (0) target = $region169
    $region168: #{netD_forward.1} parent=1 // pred_region
      %313 = dma.done [#allocation22], 16
    $region169: #{netD_forward.1} parent=1 // pred_fallthru
      _
    %314 = vst [vmem:[#allocation2] sm:$0xff] 0.0
    %315 = vst [vmem:[#allocation2 + $0x8] sm:$0xff] 0.0
    %316 = vst [vmem:[#allocation2 + $0x10] sm:$0xff] 0.0
    %317 = vst [vmem:[#allocation2 + $0x18] sm:$0xff] 0.0
    %318 = vst [vmem:[#allocation2 + $0x20] sm:$0xff] 0.0
    %319 = vst [vmem:[#allocation2 + $0x28] sm:$0xff] 0.0
    %320 = vst [vmem:[#allocation2 + $0x30] sm:$0xff] 0.0
    %321 = vst [vmem:[#allocation2 + $0x38] sm:$0xff] 0.0
    %322 = vst [vmem:[#allocation2 + $0x40] sm:$0xff] 0.0
    %323 = vst [vmem:[#allocation2 + $0x48] sm:$0xff] 0.0
    %v324 = vld [vmem:[%s1] sm:$0xff]
    %v325 = vld [vmem:[%s1 + $0x8] sm:$0xff]
    %v326 = vld [vmem:[%s1 + $0x10] sm:$0xff]
    %v327 = vld [vmem:[%s1 + $0x18] sm:$0xff]
    %v328 = vld [vmem:[%s1 + $0x20] sm:$0xff]
    %v329 = vld [vmem:[%s1 + $0x28] sm:$0xff]
    %v330 = vld [vmem:[%s1 + $0x30] sm:$0xff]
    %v331 = vld [vmem:[%s1 + $0x38] sm:$0xff]
    %332 = vst [vmem:[#allocation2 + $0x8] sm:$0xff] %v324
    %333 = vst [vmem:[#allocation2 + $0x10] sm:$0xff] %v325
    %334 = vst [vmem:[#allocation2 + $0x18] sm:$0xff] %v326
    %335 = vst [vmem:[#allocation2 + $0x20] sm:$0xff] %v327
    %336 = vst [vmem:[#allocation2 + $0x28] sm:$0xff] %v328
    %337 = vst [vmem:[#allocation2 + $0x30] sm:$0xff] %v329
    %338 = vst [vmem:[#allocation2 + $0x38] sm:$0xff] %v330
    %339 = vst [vmem:[#allocation2 + $0x40] sm:$0xff] %v331
    %s340 = scalar_lea.vmem [#allocation2], 7
    %v341 = vld [vmem:[%s340] ss:$2 sm:$0xff]
    %s342 = scalar_lea.vmem [#allocation2], 23
    %v343 = vld [vmem:[%s342] ss:$2 sm:$0xff]
    %s344 = scalar_lea.vmem [#allocation2], 39
    %v345 = vld [vmem:[%s344] ss:$2 sm:$0xff]
    %s346 = scalar_lea.vmem [#allocation2], 55
    %v347 = vld [vmem:[%s346] ss:$2 sm:$0xff]
    %s348 = scalar_lea.vmem [#allocation2], 8
    %v349 = vld [vmem:[%s348] ss:$2 sm:$0xff]
    %s350 = scalar_lea.vmem [#allocation2], 24
    %v351 = vld [vmem:[%s350] ss:$2 sm:$0xff]
    %s352 = scalar_lea.vmem [#allocation2], 40
    %v353 = vld [vmem:[%s352] ss:$2 sm:$0xff]
    %s354 = scalar_lea.vmem [#allocation2], 56
    %v355 = vld [vmem:[%s354] ss:$2 sm:$0xff]
    %s356 = scalar_lea.vmem [#allocation2], 9
    %v357 = vld [vmem:[%s356] ss:$2 sm:$0xff]
    %s358 = scalar_lea.vmem [#allocation2], 25
    %v359 = vld [vmem:[%s358] ss:$2 sm:$0xff]
    %s360 = scalar_lea.vmem [#allocation2], 41
    %v361 = vld [vmem:[%s360] ss:$2 sm:$0xff]
    %s362 = scalar_lea.vmem [#allocation2], 57
    %v363 = vld [vmem:[%s362] ss:$2 sm:$0xff]
    %v364 = vlaneseq
    %v365 = vshrl.u32 %v364, 7
    %v366 = vadd.s32 %v365, 8
    %v367 = vadd.s32 %v365, 16
    %v368 = vadd.s32 %v365, 24
    %v369 = vand.u32 %v365, 15
    %v370 = vand.u32 %v366, 15
    %v371 = vand.u32 %v367, 15
    %v372 = vand.u32 %v368, 15
    %vm373 = vcmp.eq.s32.totalorder %v369, 0
    %vm374 = vcmp.eq.s32.totalorder %v370, 0
    %vm375 = vcmp.eq.s32.totalorder %v371, 0
    %vm376 = vcmp.eq.s32.totalorder %v372, 0
    %v377 = vsel %vm373, 1, 0
    %v378 = vsel %vm374, 1, 0
    %v379 = vsel %vm375, 1, 0
    %v380 = vsel %vm376, 1, 0
    %vm381 = vcmp.eq.s32.totalorder %v377, 1
    %vm382 = vcmp.eq.s32.totalorder %v378, 1
    %vm383 = vcmp.eq.s32.totalorder %v379, 1
    %vm384 = vcmp.eq.s32.totalorder %v380, 1
    %v385 = vsel %vm381, 0.0, %v341
    %v386 = vsel %vm382, 0.0, %v343
    %v387 = vsel %vm383, 0.0, %v345
    %v388 = vsel %vm384, 0.0, %v347
    %v389 = vpack.c.bf16 %v386, %v385
    %v390 = vpack.c.bf16 %v351, %v349
    %v391 = vpack.c.bf16 %v359, %v357
    %v392 = vpack.c.bf16 %v388, %v387
    %v393 = vpack.c.bf16 %v355, %v353
    %v394 = vpack.c.bf16 %v363, %v361
    %v395 = vld [vmem:[%s3] sm:$0xf]
    %v396 = vld [vmem:[%s3 + $0x4] sm:$0xf]
    %v397 = vld [vmem:[%s3 + $0x8] sm:$0xf]
    %v398 = vld [vmem:[%s3 + $0xc] sm:$0xf]
    %v399 = vld [vmem:[%s3 + $0x10] sm:$0xf]
    %v400 = vld [vmem:[%s3 + $0x14] sm:$0xf]
    %v401 = vld [vmem:[%s3 + $0x18] sm:$0xf]
    %v402 = vld [vmem:[%s3 + $0x1c] sm:$0xf]
    %v403 = vld [vmem:[%s3 + $0x20] sm:$0xf]
    %v404 = vld [vmem:[%s3 + $0x24] sm:$0xf]
    %v405 = vld [vmem:[%s3 + $0x28] sm:$0xf]
    %v406 = vld [vmem:[%s3 + $0x2c] sm:$0xf]
    %v407 = vld [vmem:[%s3 + $0x30] sm:$0xf]
    %v408 = vld [vmem:[%s3 + $0x34] sm:$0xf]
    %v409 = vld [vmem:[%s3 + $0x38] sm:$0xf]
    %v410 = vld [vmem:[%s3 + $0x3c] sm:$0xf]
    %v411 = vld [vmem:[%s3 + $0x40] sm:$0xf]
    %v412 = vld [vmem:[%s3 + $0x44] sm:$0xf]
    %v413 = vld [vmem:[%s3 + $0x48] sm:$0xf]
    %v414 = vld [vmem:[%s3 + $0x4c] sm:$0xf]
    %v415 = vld [vmem:[%s3 + $0x50] sm:$0xf]
    %v416 = vld [vmem:[%s3 + $0x54] sm:$0xf]
    %v417 = vld [vmem:[%s3 + $0x58] sm:$0xf]
    %v418 = vld [vmem:[%s3 + $0x5c] sm:$0xf]
    %v419 = vld [vmem:[%s3 + $0x60] sm:$0xf]
    %v420 = vld [vmem:[%s3 + $0x64] sm:$0xf]
    %v421 = vld [vmem:[%s3 + $0x68] sm:$0xf]
    %v422 = vld [vmem:[%s3 + $0x6c] sm:$0xf]
    %v423 = vld [vmem:[%s3 + $0x70] sm:$0xf]
    %v424 = vld [vmem:[%s3 + $0x74] sm:$0xf]
    %v425 = vld [vmem:[%s3 + $0x78] sm:$0xf]
    %v426 = vld [vmem:[%s3 + $0x7c] sm:$0xf]
    %v427 = vld [vmem:[%s3 + $0x80] sm:$0xf]
    %v428 = vld [vmem:[%s3 + $0x84] sm:$0xf]
    %v429 = vld [vmem:[%s3 + $0x88] sm:$0xf]
    %v430 = vld [vmem:[%s3 + $0x8c] sm:$0xf]
    %v431 = vld [vmem:[%s3 + $0x90] sm:$0xf]
    %v432 = vld [vmem:[%s3 + $0x94] sm:$0xf]
    %v433 = vld [vmem:[%s3 + $0x98] sm:$0xf]
    %v434 = vld [vmem:[%s3 + $0x9c] sm:$0xf]
    %v435 = vld [vmem:[%s3 + $0xa0] sm:$0xf]
    %v436 = vld [vmem:[%s3 + $0xa4] sm:$0xf]
    %v437 = vld [vmem:[%s3 + $0xa8] sm:$0xf]
    %v438 = vld [vmem:[%s3 + $0xac] sm:$0xf]
    %v439 = vld [vmem:[%s3 + $0xb0] sm:$0xf]
    %v440 = vld [vmem:[%s3 + $0xb4] sm:$0xf]
    %v441 = vld [vmem:[%s3 + $0xb8] sm:$0xf]
    %v442 = vld [vmem:[%s3 + $0xbc] sm:$0xf]
    %v443 = vld [vmem:[%s5] sm:$0x1]
    %v445 = vperm.slane %v443, 0
    %v495 = vunpack.c.l.b16 %v395
    %v496 = vunpack.c.l.b16 %v396
    %v497 = vunpack.c.l.b16 %v397
    %v498 = vunpack.c.l.b16 %v398
    %v499 = vunpack.c.l.b16 %v399
    %v500 = vunpack.c.l.b16 %v400
    %v501 = vunpack.c.l.b16 %v401
    %v502 = vunpack.c.l.b16 %v402
    %v503 = vunpack.c.l.b16 %v403
    %v504 = vunpack.c.l.b16 %v404
    %v505 = vunpack.c.l.b16 %v405
    %v506 = vunpack.c.l.b16 %v406
    %v507 = vunpack.c.l.b16 %v407
    %v508 = vunpack.c.l.b16 %v408
    %v509 = vunpack.c.l.b16 %v409
    %v510 = vunpack.c.l.b16 %v410
    %v511 = vunpack.c.l.b16 %v411
    %v512 = vunpack.c.l.b16 %v412
    %v513 = vunpack.c.l.b16 %v413
    %v514 = vunpack.c.l.b16 %v414
    %v515 = vunpack.c.l.b16 %v415
    %v516 = vunpack.c.l.b16 %v416
    %v517 = vunpack.c.l.b16 %v417
    %v518 = vunpack.c.l.b16 %v418
    %v519 = vunpack.c.l.b16 %v419
    %v520 = vunpack.c.l.b16 %v420
    %v521 = vunpack.c.l.b16 %v421
    %v522 = vunpack.c.l.b16 %v422
    %v523 = vunpack.c.l.b16 %v423
    %v524 = vunpack.c.l.b16 %v424
    %v525 = vunpack.c.l.b16 %v425
    %v526 = vunpack.c.l.b16 %v426
    %v527 = vunpack.c.l.b16 %v427
    %v528 = vunpack.c.l.b16 %v428
    %v529 = vunpack.c.l.b16 %v429
    %v530 = vunpack.c.l.b16 %v430
    %v531 = vunpack.c.l.b16 %v431
    %v532 = vunpack.c.l.b16 %v432
    %v533 = vunpack.c.l.b16 %v433
    %v534 = vunpack.c.l.b16 %v434
    %v535 = vunpack.c.l.b16 %v435
    %v536 = vunpack.c.l.b16 %v436
    %v537 = vunpack.c.l.b16 %v437
    %v538 = vunpack.c.l.b16 %v438
    %v539 = vunpack.c.l.b16 %v439
    %v540 = vunpack.c.l.b16 %v440
    %v541 = vunpack.c.l.b16 %v441
    %v542 = vunpack.c.l.b16 %v442
    %v543 = vpack.c.b16 %v496, %v495
    %v544 = vpack.c.b16 %v498, %v497
    %v545 = vpack.c.b16 %v500, %v499
    %v546 = vpack.c.b16 %v502, %v501
    %v547 = vpack.c.b16 %v504, %v503
    %v548 = vpack.c.b16 %v506, %v505
    %v549 = vpack.c.b16 %v508, %v507
    %v550 = vpack.c.b16 %v510, %v509
    %v551 = vpack.c.b16 %v512, %v511
    %v552 = vpack.c.b16 %v514, %v513
    %v553 = vpack.c.b16 %v516, %v515
    %v554 = vpack.c.b16 %v518, %v517
    %v555 = vpack.c.b16 %v520, %v519
    %v556 = vpack.c.b16 %v522, %v521
    %v557 = vpack.c.b16 %v524, %v523
    %v558 = vpack.c.b16 %v526, %v525
    %v559 = vpack.c.b16 %v528, %v527
    %v560 = vpack.c.b16 %v530, %v529
    %v561 = vpack.c.b16 %v532, %v531
    %v562 = vpack.c.b16 %v534, %v533
    %v563 = vpack.c.b16 %v536, %v535
    %v564 = vpack.c.b16 %v538, %v537
    %v565 = vpack.c.b16 %v540, %v539
    %v566 = vpack.c.b16 %v542, %v541
    %591 = vmatpush.bf16.msra.mxu0 %v550
    %592 = vmatpush.bf16.msra.mxu0 %v549
    %593 = vmatpush.bf16.msra.mxu0 %v548
    %594 = vmatpush.bf16.msra.mxu0 %v547
    %595 = vmatpush.bf16.msra.mxu0 %v546
    %596 = vmatpush.bf16.msra.mxu0 %v545
    %597 = vmatpush.bf16.msra.mxu0 %v544
    %598 = vmatpush.bf16.msra.mxu0 %v543
    %599 = vmatmul.bf16.gmra.mxu0 %v389
    %v600 = vpop.f32.mrf.mxu0
    %v601 = vadd.f32 %v445, %v600
    %v602 = vpop.f32.mrf.mxu0
    %v603 = vadd.f32 %v445, %v602
    %604 = vmatmul.bf16.gmra.mxu0 %v392
    %v605 = vpop.f32.mrf.mxu0
    %v606 = vadd.f32 %v445, %v605
    %v607 = vpop.f32.mrf.mxu0
    %v608 = vadd.f32 %v445, %v607
    %609 = vdwg.mxu0
    %610 = vmatpush.bf16.msra.mxu0 %v558
    %611 = vmatpush.bf16.msra.mxu0 %v557
    %612 = vmatpush.bf16.msra.mxu0 %v556
    %613 = vmatpush.bf16.msra.mxu0 %v555
    %614 = vmatpush.bf16.msra.mxu0 %v554
    %615 = vmatpush.bf16.msra.mxu0 %v553
    %616 = vmatpush.bf16.msra.mxu0 %v552
    %617 = vmatpush.bf16.msra.mxu0 %v551
    %618 = vmatmul.bf16.gmra.mxu0 %v390
    %v619 = vpop.f32.mrf.mxu0
    %v620 = vadd.f32 %v601, %v619
    %v621 = vpop.f32.mrf.mxu0
    %v622 = vadd.f32 %v603, %v621
    %623 = vmatmul.bf16.gmra.mxu0 %v393
    %v624 = vpop.f32.mrf.mxu0
    %v625 = vadd.f32 %v606, %v624
    %v626 = vpop.f32.mrf.mxu0
    %v627 = vadd.f32 %v608, %v626
    %628 = vdwg.mxu0
    %629 = vmatpush.bf16.msra.mxu0 %v566
    %630 = vmatpush.bf16.msra.mxu0 %v565
    %631 = vmatpush.bf16.msra.mxu0 %v564
    %632 = vmatpush.bf16.msra.mxu0 %v563
    %633 = vmatpush.bf16.msra.mxu0 %v562
    %634 = vmatpush.bf16.msra.mxu0 %v561
    %635 = vmatpush.bf16.msra.mxu0 %v560
    %636 = vmatpush.bf16.msra.mxu0 %v559
    %637 = vmatmul.bf16.gmra.mxu0 %v391
    %v638 = vpop.f32.mrf.mxu0
    %v639 = vadd.f32 %v620, %v638
    %v640 = vpop.f32.mrf.mxu0
    %v641 = vadd.f32 %v622, %v640
    %642 = vmatmul.bf16.gmra.mxu0 %v394
    %v643 = vpop.f32.mrf.mxu0
    %v644 = vadd.f32 %v625, %v643
    %v645 = vpop.f32.mrf.mxu0
    %v646 = vadd.f32 %v627, %v645
    %647 = vdwg.mxu0
    %v648 = vmul.f32 %v639, 0.2
    %v649 = vmul.f32 %v641, 0.2
    %v650 = vmul.f32 %v644, 0.2
    %v651 = vmul.f32 %v646, 0.2
    %v652 = vmax.f32 %v639, %v648
    %v653 = vmax.f32 %v641, %v649
    %v654 = vmax.f32 %v644, %v650
    %v655 = vmax.f32 %v646, %v651
    %656 = vst [vmem:[#allocation2 + $0x8] sm:$0xff] %v652
    %657 = vst [vmem:[#allocation2 + $0x10] sm:$0xff] %v653
    %658 = vst [vmem:[#allocation2 + $0x18] sm:$0xff] %v654
    %659 = vst [vmem:[#allocation2 + $0x20] sm:$0xff] %v655
    %v660 = vld [vmem:[#allocation2 + $0x7] sm:$0xff]
    %v661 = vld [vmem:[#allocation2 + $0xf] sm:$0xff]
    %v662 = vld [vmem:[#allocation2 + $0x17] sm:$0xff]
    %v663 = vld [vmem:[#allocation2 + $0x1f] sm:$0xff]
    %v664 = vld [vmem:[#allocation2 + $0x9] sm:$0xff]
    %v665 = vld [vmem:[#allocation2 + $0x11] sm:$0xff]
    %v666 = vld [vmem:[#allocation2 + $0x19] sm:$0xff]
    %v667 = vld [vmem:[#allocation2 + $0x21] sm:$0xff]
    %v668 = vsel %vm381, 0.0, %v660
    %v669 = vsel %vm382, 0.0, %v661
    %v670 = vsel %vm383, 0.0, %v662
    %v671 = vsel %vm384, 0.0, %v663
    %vm672 = vcmp.eq.s32.totalorder %v369, 15
    %vm673 = vcmp.eq.s32.totalorder %v370, 15
    %vm674 = vcmp.eq.s32.totalorder %v371, 15
    %vm675 = vcmp.eq.s32.totalorder %v372, 15
    %v676 = vsel %vm672, 1, 0
    %v677 = vsel %vm673, 1, 0
    %v678 = vsel %vm674, 1, 0
    %v679 = vsel %vm675, 1, 0
    %vm680 = vcmp.eq.s32.totalorder %v676, 1
    %vm681 = vcmp.eq.s32.totalorder %v677, 1
    %vm682 = vcmp.eq.s32.totalorder %v678, 1
    %vm683 = vcmp.eq.s32.totalorder %v679, 1
    %v684 = vsel %vm680, 0.0, %v664
    %v685 = vsel %vm681, 0.0, %v665
    %v686 = vsel %vm682, 0.0, %v666
    %v687 = vsel %vm683, 0.0, %v667
    %v688 = vpack.c.bf16 %v669, %v668
    %v689 = vpack.c.bf16 %v653, %v652
    %v690 = vpack.c.bf16 %v685, %v684
    %v691 = vpack.c.bf16 %v671, %v670
    %v692 = vpack.c.bf16 %v655, %v654
    %v693 = vpack.c.bf16 %v687, %v686
    %v694 = vld [vmem:[%s7] sm:$0xf]
    %v695 = vld [vmem:[%s7 + $0x4] sm:$0xf]
    %v696 = vld [vmem:[%s7 + $0x8] sm:$0xf]
    %v697 = vld [vmem:[%s7 + $0xc] sm:$0xf]
    %v698 = vld [vmem:[%s7 + $0x10] sm:$0xf]
    %v699 = vld [vmem:[%s7 + $0x14] sm:$0xf]
    %v700 = vld [vmem:[%s7 + $0x18] sm:$0xf]
    %v701 = vld [vmem:[%s7 + $0x1c] sm:$0xf]
    %v702 = vld [vmem:[%s7 + $0x20] sm:$0xf]
    %v703 = vld [vmem:[%s7 + $0x24] sm:$0xf]
    %v704 = vld [vmem:[%s7 + $0x28] sm:$0xf]
    %v705 = vld [vmem:[%s7 + $0x2c] sm:$0xf]
    %v706 = vld [vmem:[%s7 + $0x30] sm:$0xf]
    %v707 = vld [vmem:[%s7 + $0x34] sm:$0xf]
    %v708 = vld [vmem:[%s7 + $0x38] sm:$0xf]
    %v709 = vld [vmem:[%s7 + $0x3c] sm:$0xf]
    %v710 = vld [vmem:[%s7 + $0x40] sm:$0xf]
    %v711 = vld [vmem:[%s7 + $0x44] sm:$0xf]
    %v712 = vld [vmem:[%s7 + $0x48] sm:$0xf]
    %v713 = vld [vmem:[%s7 + $0x4c] sm:$0xf]
    %v714 = vld [vmem:[%s7 + $0x50] sm:$0xf]
    %v715 = vld [vmem:[%s7 + $0x54] sm:$0xf]
    %v716 = vld [vmem:[%s7 + $0x58] sm:$0xf]
    %v717 = vld [vmem:[%s7 + $0x5c] sm:$0xf]
    %v718 = vld [vmem:[%s7 + $0x60] sm:$0xf]
    %v719 = vld [vmem:[%s7 + $0x64] sm:$0xf]
    %v720 = vld [vmem:[%s7 + $0x68] sm:$0xf]
    %v721 = vld [vmem:[%s7 + $0x6c] sm:$0xf]
    %v722 = vld [vmem:[%s7 + $0x70] sm:$0xf]
    %v723 = vld [vmem:[%s7 + $0x74] sm:$0xf]
    %v724 = vld [vmem:[%s7 + $0x78] sm:$0xf]
    %v725 = vld [vmem:[%s7 + $0x7c] sm:$0xf]
    %v726 = vld [vmem:[%s7 + $0x80] sm:$0xf]
    %v727 = vld [vmem:[%s7 + $0x84] sm:$0xf]
    %v728 = vld [vmem:[%s7 + $0x88] sm:$0xf]
    %v729 = vld [vmem:[%s7 + $0x8c] sm:$0xf]
    %v730 = vld [vmem:[%s7 + $0x90] sm:$0xf]
    %v731 = vld [vmem:[%s7 + $0x94] sm:$0xf]
    %v732 = vld [vmem:[%s7 + $0x98] sm:$0xf]
    %v733 = vld [vmem:[%s7 + $0x9c] sm:$0xf]
    %v734 = vld [vmem:[%s7 + $0xa0] sm:$0xf]
    %v735 = vld [vmem:[%s7 + $0xa4] sm:$0xf]
    %v736 = vld [vmem:[%s7 + $0xa8] sm:$0xf]
    %v737 = vld [vmem:[%s7 + $0xac] sm:$0xf]
    %v738 = vld [vmem:[%s7 + $0xb0] sm:$0xf]
    %v739 = vld [vmem:[%s7 + $0xb4] sm:$0xf]
    %v740 = vld [vmem:[%s7 + $0xb8] sm:$0xf]
    %v741 = vld [vmem:[%s7 + $0xbc] sm:$0xf]
    %v742 = vld [vmem:[#allocation4] sm:$0x1]
    %v744 = vperm.slane %v742, 0
    %v794 = vunpack.c.l.b16 %v694
    %v795 = vunpack.c.l.b16 %v695
    %v796 = vunpack.c.l.b16 %v696
    %v797 = vunpack.c.l.b16 %v697
    %v798 = vunpack.c.l.b16 %v698
    %v799 = vunpack.c.l.b16 %v699
    %v800 = vunpack.c.l.b16 %v700
    %v801 = vunpack.c.l.b16 %v701
    %v802 = vunpack.c.l.b16 %v702
    %v803 = vunpack.c.l.b16 %v703
    %v804 = vunpack.c.l.b16 %v704
    %v805 = vunpack.c.l.b16 %v705
    %v806 = vunpack.c.l.b16 %v706
    %v807 = vunpack.c.l.b16 %v707
    %v808 = vunpack.c.l.b16 %v708
    %v809 = vunpack.c.l.b16 %v709
    %v810 = vunpack.c.l.b16 %v710
    %v811 = vunpack.c.l.b16 %v711
    %v812 = vunpack.c.l.b16 %v712
    %v813 = vunpack.c.l.b16 %v713
    %v814 = vunpack.c.l.b16 %v714
    %v815 = vunpack.c.l.b16 %v715
    %v816 = vunpack.c.l.b16 %v716
    %v817 = vunpack.c.l.b16 %v717
    %v818 = vunpack.c.l.b16 %v718
    %v819 = vunpack.c.l.b16 %v719
    %v820 = vunpack.c.l.b16 %v720
    %v821 = vunpack.c.l.b16 %v721
    %v822 = vunpack.c.l.b16 %v722
    %v823 = vunpack.c.l.b16 %v723
    %v824 = vunpack.c.l.b16 %v724
    %v825 = vunpack.c.l.b16 %v725
    %v826 = vunpack.c.l.b16 %v726
    %v827 = vunpack.c.l.b16 %v727
    %v828 = vunpack.c.l.b16 %v728
    %v829 = vunpack.c.l.b16 %v729
    %v830 = vunpack.c.l.b16 %v730
    %v831 = vunpack.c.l.b16 %v731
    %v832 = vunpack.c.l.b16 %v732
    %v833 = vunpack.c.l.b16 %v733
    %v834 = vunpack.c.l.b16 %v734
    %v835 = vunpack.c.l.b16 %v735
    %v836 = vunpack.c.l.b16 %v736
    %v837 = vunpack.c.l.b16 %v737
    %v838 = vunpack.c.l.b16 %v738
    %v839 = vunpack.c.l.b16 %v739
    %v840 = vunpack.c.l.b16 %v740
    %v841 = vunpack.c.l.b16 %v741
    %v842 = vpack.c.b16 %v795, %v794
    %v843 = vpack.c.b16 %v797, %v796
    %v844 = vpack.c.b16 %v799, %v798
    %v845 = vpack.c.b16 %v801, %v800
    %v846 = vpack.c.b16 %v803, %v802
    %v847 = vpack.c.b16 %v805, %v804
    %v848 = vpack.c.b16 %v807, %v806
    %v849 = vpack.c.b16 %v809, %v808
    %v850 = vpack.c.b16 %v811, %v810
    %v851 = vpack.c.b16 %v813, %v812
    %v852 = vpack.c.b16 %v815, %v814
    %v853 = vpack.c.b16 %v817, %v816
    %v854 = vpack.c.b16 %v819, %v818
    %v855 = vpack.c.b16 %v821, %v820
    %v856 = vpack.c.b16 %v823, %v822
    %v857 = vpack.c.b16 %v825, %v824
    %v858 = vpack.c.b16 %v827, %v826
    %v859 = vpack.c.b16 %v829, %v828
    %v860 = vpack.c.b16 %v831, %v830
    %v861 = vpack.c.b16 %v833, %v832
    %v862 = vpack.c.b16 %v835, %v834
    %v863 = vpack.c.b16 %v837, %v836
    %v864 = vpack.c.b16 %v839, %v838
    %v865 = vpack.c.b16 %v841, %v840
    %890 = vmatpush.bf16.msra.mxu0 %v849
    %891 = vmatpush.bf16.msra.mxu0 %v848
    %892 = vmatpush.bf16.msra.mxu0 %v847
    %893 = vmatpush.bf16.msra.mxu0 %v846
    %894 = vmatpush.bf16.msra.mxu0 %v845
    %895 = vmatpush.bf16.msra.mxu0 %v844
    %896 = vmatpush.bf16.msra.mxu0 %v843
    %897 = vmatpush.bf16.msra.mxu0 %v842
    %898 = vmatmul.bf16.gmra.mxu0 %v688
    %v899 = vpop.f32.mrf.mxu0
    %v900 = vadd.f32 %v744, %v899
    %v901 = vpop.f32.mrf.mxu0
    %v902 = vadd.f32 %v744, %v901
    %903 = vmatmul.bf16.gmra.mxu0 %v691
    %v904 = vpop.f32.mrf.mxu0
    %v905 = vadd.f32 %v744, %v904
    %v906 = vpop.f32.mrf.mxu0
    %v907 = vadd.f32 %v744, %v906
    %908 = vdwg.mxu0
    %909 = vmatpush.bf16.msra.mxu0 %v857
    %910 = vmatpush.bf16.msra.mxu0 %v856
    %911 = vmatpush.bf16.msra.mxu0 %v855
    %912 = vmatpush.bf16.msra.mxu0 %v854
    %913 = vmatpush.bf16.msra.mxu0 %v853
    %914 = vmatpush.bf16.msra.mxu0 %v852
    %915 = vmatpush.bf16.msra.mxu0 %v851
    %916 = vmatpush.bf16.msra.mxu0 %v850
    %917 = vmatmul.bf16.gmra.mxu0 %v689
    %v918 = vpop.f32.mrf.mxu0
    %v919 = vadd.f32 %v900, %v918
    %v920 = vpop.f32.mrf.mxu0
    %v921 = vadd.f32 %v902, %v920
    %922 = vmatmul.bf16.gmra.mxu0 %v692
    %v923 = vpop.f32.mrf.mxu0
    %v924 = vadd.f32 %v905, %v923
    %v925 = vpop.f32.mrf.mxu0
    %v926 = vadd.f32 %v907, %v925
    %927 = vdwg.mxu0
    %928 = vmatpush.bf16.msra.mxu0 %v865
    %929 = vmatpush.bf16.msra.mxu0 %v864
    %930 = vmatpush.bf16.msra.mxu0 %v863
    %931 = vmatpush.bf16.msra.mxu0 %v862
    %932 = vmatpush.bf16.msra.mxu0 %v861
    %933 = vmatpush.bf16.msra.mxu0 %v860
    %934 = vmatpush.bf16.msra.mxu0 %v859
    %935 = vmatpush.bf16.msra.mxu0 %v858
    %936 = vmatmul.bf16.gmra.mxu0 %v690
    %v937 = vpop.f32.mrf.mxu0
    %v938 = vadd.f32 %v919, %v937
    %v939 = vpop.f32.mrf.mxu0
    %v940 = vadd.f32 %v921, %v939
    %941 = vmatmul.bf16.gmra.mxu0 %v693
    %v942 = vpop.f32.mrf.mxu0
    %v943 = vadd.f32 %v924, %v942
    %v944 = vpop.f32.mrf.mxu0
    %v945 = vadd.f32 %v926, %v944
    %946 = vdwg.mxu0
    %v947 = vmul.f32 %v938, 0.2
    %v948 = vmul.f32 %v940, 0.2
    %v949 = vmul.f32 %v943, 0.2
    %v950 = vmul.f32 %v945, 0.2
    %v951 = vmax.f32 %v938, %v947
    %v952 = vmax.f32 %v940, %v948
    %v953 = vmax.f32 %v943, %v949
    %v954 = vmax.f32 %v945, %v950
    %955 = vst [vmem:[#allocation2 + $0x8] sm:$0xff] %v951
    %956 = vst [vmem:[#allocation2 + $0x10] sm:$0xff] %v952
    %957 = vst [vmem:[#allocation2 + $0x18] sm:$0xff] %v953
    %958 = vst [vmem:[#allocation2 + $0x20] sm:$0xff] %v954
    %v959 = vld [vmem:[#allocation2 + $0x7] sm:$0xff]
    %v960 = vld [vmem:[#allocation2 + $0xf] sm:$0xff]
    %v961 = vld [vmem:[#allocation2 + $0x17] sm:$0xff]
    %v962 = vld [vmem:[#allocation2 + $0x1f] sm:$0xff]
    %v963 = vld [vmem:[#allocation2 + $0x9] sm:$0xff]
    %v964 = vld [vmem:[#allocation2 + $0x11] sm:$0xff]
    %v965 = vld [vmem:[#allocation2 + $0x19] sm:$0xff]
    %v966 = vld [vmem:[#allocation2 + $0x21] sm:$0xff]
    %v967 = vsel %vm381, 0.0, %v959
    %v968 = vsel %vm382, 0.0, %v960
    %v969 = vsel %vm383, 0.0, %v961
    %v970 = vsel %vm384, 0.0, %v962
    %v971 = vsel %vm680, 0.0, %v963
    %v972 = vsel %vm681, 0.0, %v964
    %v973 = vsel %vm682, 0.0, %v965
    %v974 = vsel %vm683, 0.0, %v966
    %v975 = vpack.c.bf16 %v968, %v967
    %v976 = vpack.c.bf16 %v952, %v951
    %v977 = vpack.c.bf16 %v972, %v971
    %v978 = vpack.c.bf16 %v970, %v969
    %v979 = vpack.c.bf16 %v954, %v953
    %v980 = vpack.c.bf16 %v974, %v973
    %v981 = vld [vmem:[%s11] sm:$0xf]
    %v982 = vld [vmem:[%s11 + $0x4] sm:$0xf]
    %v983 = vld [vmem:[%s11 + $0x8] sm:$0xf]
    %v984 = vld [vmem:[%s11 + $0xc] sm:$0xf]
    %v985 = vld [vmem:[%s11 + $0x10] sm:$0xf]
    %v986 = vld [vmem:[%s11 + $0x14] sm:$0xf]
    %v987 = vld [vmem:[%s11 + $0x18] sm:$0xf]
    %v988 = vld [vmem:[%s11 + $0x1c] sm:$0xf]
    %v989 = vld [vmem:[%s11 + $0x20] sm:$0xf]
    %v990 = vld [vmem:[%s11 + $0x24] sm:$0xf]
    %v991 = vld [vmem:[%s11 + $0x28] sm:$0xf]
    %v992 = vld [vmem:[%s11 + $0x2c] sm:$0xf]
    %v993 = vld [vmem:[%s11 + $0x30] sm:$0xf]
    %v994 = vld [vmem:[%s11 + $0x34] sm:$0xf]
    %v995 = vld [vmem:[%s11 + $0x38] sm:$0xf]
    %v996 = vld [vmem:[%s11 + $0x3c] sm:$0xf]
    %v997 = vld [vmem:[%s11 + $0x40] sm:$0xf]
    %v998 = vld [vmem:[%s11 + $0x44] sm:$0xf]
    %v999 = vld [vmem:[%s11 + $0x48] sm:$0xf]
    %v1000 = vld [vmem:[%s11 + $0x4c] sm:$0xf]
    %v1001 = vld [vmem:[%s11 + $0x50] sm:$0xf]
    %v1002 = vld [vmem:[%s11 + $0x54] sm:$0xf]
    %v1003 = vld [vmem:[%s11 + $0x58] sm:$0xf]
    %v1004 = vld [vmem:[%s11 + $0x5c] sm:$0xf]
    %v1005 = vld [vmem:[%s11 + $0x60] sm:$0xf]
    %v1006 = vld [vmem:[%s11 + $0x64] sm:$0xf]
    %v1007 = vld [vmem:[%s11 + $0x68] sm:$0xf]
    %v1008 = vld [vmem:[%s11 + $0x6c] sm:$0xf]
    %v1009 = vld [vmem:[%s11 + $0x70] sm:$0xf]
    %v1010 = vld [vmem:[%s11 + $0x74] sm:$0xf]
    %v1011 = vld [vmem:[%s11 + $0x78] sm:$0xf]
    %v1012 = vld [vmem:[%s11 + $0x7c] sm:$0xf]
    %v1013 = vld [vmem:[%s11 + $0x80] sm:$0xf]
    %v1014 = vld [vmem:[%s11 + $0x84] sm:$0xf]
    %v1015 = vld [vmem:[%s11 + $0x88] sm:$0xf]
    %v1016 = vld [vmem:[%s11 + $0x8c] sm:$0xf]
    %v1017 = vld [vmem:[%s11 + $0x90] sm:$0xf]
    %v1018 = vld [vmem:[%s11 + $0x94] sm:$0xf]
    %v1019 = vld [vmem:[%s11 + $0x98] sm:$0xf]
    %v1020 = vld [vmem:[%s11 + $0x9c] sm:$0xf]
    %v1021 = vld [vmem:[%s11 + $0xa0] sm:$0xf]
    %v1022 = vld [vmem:[%s11 + $0xa4] sm:$0xf]
    %v1023 = vld [vmem:[%s11 + $0xa8] sm:$0xf]
    %v1024 = vld [vmem:[%s11 + $0xac] sm:$0xf]
    %v1025 = vld [vmem:[%s11 + $0xb0] sm:$0xf]
    %v1026 = vld [vmem:[%s11 + $0xb4] sm:$0xf]
    %v1027 = vld [vmem:[%s11 + $0xb8] sm:$0xf]
    %v1028 = vld [vmem:[%s11 + $0xbc] sm:$0xf]
    %v1029 = vld [vmem:[#allocation6] sm:$0x1]
    %v1031 = vperm.slane %v1029, 0
    %v1081 = vunpack.c.l.b16 %v981
    %v1082 = vunpack.c.l.b16 %v982
    %v1083 = vunpack.c.l.b16 %v983
    %v1084 = vunpack.c.l.b16 %v984
    %v1085 = vunpack.c.l.b16 %v985
    %v1086 = vunpack.c.l.b16 %v986
    %v1087 = vunpack.c.l.b16 %v987
    %v1088 = vunpack.c.l.b16 %v988
    %v1089 = vunpack.c.l.b16 %v989
    %v1090 = vunpack.c.l.b16 %v990
    %v1091 = vunpack.c.l.b16 %v991
    %v1092 = vunpack.c.l.b16 %v992
    %v1093 = vunpack.c.l.b16 %v993
    %v1094 = vunpack.c.l.b16 %v994
    %v1095 = vunpack.c.l.b16 %v995
    %v1096 = vunpack.c.l.b16 %v996
    %v1097 = vunpack.c.l.b16 %v997
    %v1098 = vunpack.c.l.b16 %v998
    %v1099 = vunpack.c.l.b16 %v999
    %v1100 = vunpack.c.l.b16 %v1000
    %v1101 = vunpack.c.l.b16 %v1001
    %v1102 = vunpack.c.l.b16 %v1002
    %v1103 = vunpack.c.l.b16 %v1003
    %v1104 = vunpack.c.l.b16 %v1004
    %v1105 = vunpack.c.l.b16 %v1005
    %v1106 = vunpack.c.l.b16 %v1006
    %v1107 = vunpack.c.l.b16 %v1007
    %v1108 = vunpack.c.l.b16 %v1008
    %v1109 = vunpack.c.l.b16 %v1009
    %v1110 = vunpack.c.l.b16 %v1010
    %v1111 = vunpack.c.l.b16 %v1011
    %v1112 = vunpack.c.l.b16 %v1012
    %v1113 = vunpack.c.l.b16 %v1013
    %v1114 = vunpack.c.l.b16 %v1014
    %v1115 = vunpack.c.l.b16 %v1015
    %v1116 = vunpack.c.l.b16 %v1016
    %v1117 = vunpack.c.l.b16 %v1017
    %v1118 = vunpack.c.l.b16 %v1018
    %v1119 = vunpack.c.l.b16 %v1019
    %v1120 = vunpack.c.l.b16 %v1020
    %v1121 = vunpack.c.l.b16 %v1021
    %v1122 = vunpack.c.l.b16 %v1022
    %v1123 = vunpack.c.l.b16 %v1023
    %v1124 = vunpack.c.l.b16 %v1024
    %v1125 = vunpack.c.l.b16 %v1025
    %v1126 = vunpack.c.l.b16 %v1026
    %v1127 = vunpack.c.l.b16 %v1027
    %v1128 = vunpack.c.l.b16 %v1028
    %v1129 = vpack.c.b16 %v1082, %v1081
    %v1130 = vpack.c.b16 %v1084, %v1083
    %v1131 = vpack.c.b16 %v1086, %v1085
    %v1132 = vpack.c.b16 %v1088, %v1087
    %v1133 = vpack.c.b16 %v1090, %v1089
    %v1134 = vpack.c.b16 %v1092, %v1091
    %v1135 = vpack.c.b16 %v1094, %v1093
    %v1136 = vpack.c.b16 %v1096, %v1095
    %v1137 = vpack.c.b16 %v1098, %v1097
    %v1138 = vpack.c.b16 %v1100, %v1099
    %v1139 = vpack.c.b16 %v1102, %v1101
    %v1140 = vpack.c.b16 %v1104, %v1103
    %v1141 = vpack.c.b16 %v1106, %v1105
    %v1142 = vpack.c.b16 %v1108, %v1107
    %v1143 = vpack.c.b16 %v1110, %v1109
    %v1144 = vpack.c.b16 %v1112, %v1111
    %v1145 = vpack.c.b16 %v1114, %v1113
    %v1146 = vpack.c.b16 %v1116, %v1115
    %v1147 = vpack.c.b16 %v1118, %v1117
    %v1148 = vpack.c.b16 %v1120, %v1119
    %v1149 = vpack.c.b16 %v1122, %v1121
    %v1150 = vpack.c.b16 %v1124, %v1123
    %v1151 = vpack.c.b16 %v1126, %v1125
    %v1152 = vpack.c.b16 %v1128, %v1127
    %1177 = vmatpush.bf16.msra.mxu0 %v1136
    %1178 = vmatpush.bf16.msra.mxu0 %v1135
    %1179 = vmatpush.bf16.msra.mxu0 %v1134
    %1180 = vmatpush.bf16.msra.mxu0 %v1133
    %1181 = vmatpush.bf16.msra.mxu0 %v1132
    %1182 = vmatpush.bf16.msra.mxu0 %v1131
    %1183 = vmatpush.bf16.msra.mxu0 %v1130
    %1184 = vmatpush.bf16.msra.mxu0 %v1129
    %1185 = vmatmul.bf16.gmra.mxu0 %v975
    %v1186 = vpop.f32.mrf.mxu0
    %v1187 = vadd.f32 %v1031, %v1186
    %v1188 = vpop.f32.mrf.mxu0
    %v1189 = vadd.f32 %v1031, %v1188
    %1190 = vmatmul.bf16.gmra.mxu0 %v978
    %v1191 = vpop.f32.mrf.mxu0
    %v1192 = vadd.f32 %v1031, %v1191
    %v1193 = vpop.f32.mrf.mxu0
    %v1194 = vadd.f32 %v1031, %v1193
    %1195 = vdwg.mxu0
    %1196 = vmatpush.bf16.msra.mxu0 %v1144
    %1197 = vmatpush.bf16.msra.mxu0 %v1143
    %1198 = vmatpush.bf16.msra.mxu0 %v1142
    %1199 = vmatpush.bf16.msra.mxu0 %v1141
    %1200 = vmatpush.bf16.msra.mxu0 %v1140
    %1201 = vmatpush.bf16.msra.mxu0 %v1139
    %1202 = vmatpush.bf16.msra.mxu0 %v1138
    %1203 = vmatpush.bf16.msra.mxu0 %v1137
    %1204 = vmatmul.bf16.gmra.mxu0 %v976
    %v1205 = vpop.f32.mrf.mxu0
    %v1206 = vadd.f32 %v1187, %v1205
    %v1207 = vpop.f32.mrf.mxu0
    %v1208 = vadd.f32 %v1189, %v1207
    %1209 = vmatmul.bf16.gmra.mxu0 %v979
    %v1210 = vpop.f32.mrf.mxu0
    %v1211 = vadd.f32 %v1192, %v1210
    %v1212 = vpop.f32.mrf.mxu0
    %v1213 = vadd.f32 %v1194, %v1212
    %1214 = vdwg.mxu0
    %1215 = vmatpush.bf16.msra.mxu0 %v1152
    %1216 = vmatpush.bf16.msra.mxu0 %v1151
    %1217 = vmatpush.bf16.msra.mxu0 %v1150
    %1218 = vmatpush.bf16.msra.mxu0 %v1149
    %1219 = vmatpush.bf16.msra.mxu0 %v1148
    %1220 = vmatpush.bf16.msra.mxu0 %v1147
    %1221 = vmatpush.bf16.msra.mxu0 %v1146
    %1222 = vmatpush.bf16.msra.mxu0 %v1145
    %1223 = vmatmul.bf16.gmra.mxu0 %v977
    %v1224 = vpop.f32.mrf.mxu0
    %v1225 = vadd.f32 %v1206, %v1224
    %v1226 = vpop.f32.mrf.mxu0
    %v1227 = vadd.f32 %v1208, %v1226
    %1228 = vmatmul.bf16.gmra.mxu0 %v980
    %v1229 = vpop.f32.mrf.mxu0
    %v1230 = vadd.f32 %v1211, %v1229
    %v1231 = vpop.f32.mrf.mxu0
    %v1232 = vadd.f32 %v1213, %v1231
    %1233 = vdwg.mxu0
    %v1234 = vmul.f32 %v1225, 0.2
    %v1235 = vmul.f32 %v1227, 0.2
    %v1236 = vmul.f32 %v1230, 0.2
    %v1237 = vmul.f32 %v1232, 0.2
    %v1238 = vmax.f32 %v1225, %v1234
    %v1239 = vmax.f32 %v1227, %v1235
    %v1240 = vmax.f32 %v1230, %v1236
    %v1241 = vmax.f32 %v1232, %v1237
    %v1242 = vadd.f32 %v652, %v1238
    %v1243 = vadd.f32 %v653, %v1239
    %v1244 = vadd.f32 %v654, %v1240
    %v1245 = vadd.f32 %v655, %v1241
    %1246 = vst [vmem:[#allocation2 + $0x8] sm:$0xff] %v1242
    %1247 = vst [vmem:[#allocation2 + $0x10] sm:$0xff] %v1243
    %1248 = vst [vmem:[#allocation2 + $0x18] sm:$0xff] %v1244
    %1249 = vst [vmem:[#allocation2 + $0x20] sm:$0xff] %v1245
    %v1250 = vld [vmem:[%s340] ss:$2 sm:$0xff]
    %v1251 = vld [vmem:[%s342] ss:$2 sm:$0xff]
    %v1252 = vld [vmem:[%s348] ss:$2 sm:$0xff]
    %v1253 = vld [vmem:[%s350] ss:$2 sm:$0xff]
    %v1254 = vld [vmem:[%s356] ss:$2 sm:$0xff]
    %v1255 = vld [vmem:[%s358] ss:$2 sm:$0xff]
    %v1256 = vand.u32 %v365, 7
    %v1257 = vand.u32 %v366, 7
    %vm1258 = vcmp.eq.s32.totalorder %v1256, 0
    %vm1259 = vcmp.eq.s32.totalorder %v1257, 0
    %v1260 = vsel %vm1258, 1, 0
    %v1261 = vsel %vm1259, 1, 0
    %vm1262 = vcmp.eq.s32.totalorder %v1260, 1
    %vm1263 = vcmp.eq.s32.totalorder %v1261, 1
    %v1264 = vsel %vm1262, 0.0, %v1250
    %v1265 = vsel %vm1263, 0.0, %v1251
    %v1266 = vpack.c.bf16 %v1265, %v1264
    %v1267 = vpack.c.bf16 %v1253, %v1252
    %v1268 = vpack.c.bf16 %v1255, %v1254
    %v1269 = vld [vmem:[%s15] sm:$0xf]
    %v1270 = vld [vmem:[%s15 + $0x4] sm:$0xf]
    %v1271 = vld [vmem:[%s15 + $0x8] sm:$0xf]
    %v1272 = vld [vmem:[%s15 + $0xc] sm:$0xf]
    %v1273 = vld [vmem:[%s15 + $0x10] sm:$0xf]
    %v1274 = vld [vmem:[%s15 + $0x14] sm:$0xf]
    %v1275 = vld [vmem:[%s15 + $0x18] sm:$0xf]
    %v1276 = vld [vmem:[%s15 + $0x1c] sm:$0xf]
    %v1277 = vld [vmem:[%s15 + $0x20] sm:$0xf]
    %v1278 = vld [vmem:[%s15 + $0x24] sm:$0xf]
    %v1279 = vld [vmem:[%s15 + $0x28] sm:$0xf]
    %v1280 = vld [vmem:[%s15 + $0x2c] sm:$0xf]
    %v1281 = vld [vmem:[%s15 + $0x30] sm:$0xf]
    %v1282 = vld [vmem:[%s15 + $0x34] sm:$0xf]
    %v1283 = vld [vmem:[%s15 + $0x38] sm:$0xf]
    %v1284 = vld [vmem:[%s15 + $0x3c] sm:$0xf]
    %v1285 = vld [vmem:[%s15 + $0x40] sm:$0xf]
    %v1286 = vld [vmem:[%s15 + $0x44] sm:$0xf]
    %v1287 = vld [vmem:[%s15 + $0x48] sm:$0xf]
    %v1288 = vld [vmem:[%s15 + $0x4c] sm:$0xf]
    %v1289 = vld [vmem:[%s15 + $0x50] sm:$0xf]
    %v1290 = vld [vmem:[%s15 + $0x54] sm:$0xf]
    %v1291 = vld [vmem:[%s15 + $0x58] sm:$0xf]
    %v1292 = vld [vmem:[%s15 + $0x5c] sm:$0xf]
    %v1293 = vld [vmem:[%s15 + $0x60] sm:$0xf]
    %v1294 = vld [vmem:[%s15 + $0x64] sm:$0xf]
    %v1295 = vld [vmem:[%s15 + $0x68] sm:$0xf]
    %v1296 = vld [vmem:[%s15 + $0x6c] sm:$0xf]
    %v1297 = vld [vmem:[%s15 + $0x70] sm:$0xf]
    %v1298 = vld [vmem:[%s15 + $0x74] sm:$0xf]
    %v1299 = vld [vmem:[%s15 + $0x78] sm:$0xf]
    %v1300 = vld [vmem:[%s15 + $0x7c] sm:$0xf]
    %v1301 = vld [vmem:[%s15 + $0x80] sm:$0xf]
    %v1302 = vld [vmem:[%s15 + $0x84] sm:$0xf]
    %v1303 = vld [vmem:[%s15 + $0x88] sm:$0xf]
    %v1304 = vld [vmem:[%s15 + $0x8c] sm:$0xf]
    %v1305 = vld [vmem:[%s15 + $0x90] sm:$0xf]
    %v1306 = vld [vmem:[%s15 + $0x94] sm:$0xf]
    %v1307 = vld [vmem:[%s15 + $0x98] sm:$0xf]
    %v1308 = vld [vmem:[%s15 + $0x9c] sm:$0xf]
    %v1309 = vld [vmem:[%s15 + $0xa0] sm:$0xf]
    %v1310 = vld [vmem:[%s15 + $0xa4] sm:$0xf]
    %v1311 = vld [vmem:[%s15 + $0xa8] sm:$0xf]
    %v1312 = vld [vmem:[%s15 + $0xac] sm:$0xf]
    %v1313 = vld [vmem:[%s15 + $0xb0] sm:$0xf]
    %v1314 = vld [vmem:[%s15 + $0xb4] sm:$0xf]
    %v1315 = vld [vmem:[%s15 + $0xb8] sm:$0xf]
    %v1316 = vld [vmem:[%s15 + $0xbc] sm:$0xf]
    %v1317 = vld [vmem:[#allocation8] sm:$0x1]
    %v1319 = vperm.slane %v1317, 0
    %v1369 = vunpack.c.l.b16 %v1269
    %v1370 = vunpack.c.l.b16 %v1270
    %v1371 = vunpack.c.l.b16 %v1271
    %v1372 = vunpack.c.l.b16 %v1272
    %v1373 = vunpack.c.l.b16 %v1273
    %v1374 = vunpack.c.l.b16 %v1274
    %v1375 = vunpack.c.l.b16 %v1275
    %v1376 = vunpack.c.l.b16 %v1276
    %v1377 = vunpack.c.l.b16 %v1277
    %v1378 = vunpack.c.l.b16 %v1278
    %v1379 = vunpack.c.l.b16 %v1279
    %v1380 = vunpack.c.l.b16 %v1280
    %v1381 = vunpack.c.l.b16 %v1281
    %v1382 = vunpack.c.l.b16 %v1282
    %v1383 = vunpack.c.l.b16 %v1283
    %v1384 = vunpack.c.l.b16 %v1284
    %v1385 = vunpack.c.l.b16 %v1285
    %v1386 = vunpack.c.l.b16 %v1286
    %v1387 = vunpack.c.l.b16 %v1287
    %v1388 = vunpack.c.l.b16 %v1288
    %v1389 = vunpack.c.l.b16 %v1289
    %v1390 = vunpack.c.l.b16 %v1290
    %v1391 = vunpack.c.l.b16 %v1291
    %v1392 = vunpack.c.l.b16 %v1292
    %v1393 = vunpack.c.l.b16 %v1293
    %v1394 = vunpack.c.l.b16 %v1294
    %v1395 = vunpack.c.l.b16 %v1295
    %v1396 = vunpack.c.l.b16 %v1296
    %v1397 = vunpack.c.l.b16 %v1297
    %v1398 = vunpack.c.l.b16 %v1298
    %v1399 = vunpack.c.l.b16 %v1299
    %v1400 = vunpack.c.l.b16 %v1300
    %v1401 = vunpack.c.l.b16 %v1301
    %v1402 = vunpack.c.l.b16 %v1302
    %v1403 = vunpack.c.l.b16 %v1303
    %v1404 = vunpack.c.l.b16 %v1304
    %v1405 = vunpack.c.l.b16 %v1305
    %v1406 = vunpack.c.l.b16 %v1306
    %v1407 = vunpack.c.l.b16 %v1307
    %v1408 = vunpack.c.l.b16 %v1308
    %v1409 = vunpack.c.l.b16 %v1309
    %v1410 = vunpack.c.l.b16 %v1310
    %v1411 = vunpack.c.l.b16 %v1311
    %v1412 = vunpack.c.l.b16 %v1312
    %v1413 = vunpack.c.l.b16 %v1313
    %v1414 = vunpack.c.l.b16 %v1314
    %v1415 = vunpack.c.l.b16 %v1315
    %v1416 = vunpack.c.l.b16 %v1316
    %v1417 = vpack.c.b16 %v1370, %v1369
    %v1418 = vpack.c.b16 %v1372, %v1371
    %v1419 = vpack.c.b16 %v1374, %v1373
    %v1420 = vpack.c.b16 %v1376, %v1375
    %v1421 = vpack.c.b16 %v1378, %v1377
    %v1422 = vpack.c.b16 %v1380, %v1379
    %v1423 = vpack.c.b16 %v1382, %v1381
    %v1424 = vpack.c.b16 %v1384, %v1383
    %v1425 = vpack.c.b16 %v1386, %v1385
    %v1426 = vpack.c.b16 %v1388, %v1387
    %v1427 = vpack.c.b16 %v1390, %v1389
    %v1428 = vpack.c.b16 %v1392, %v1391
    %v1429 = vpack.c.b16 %v1394, %v1393
    %v1430 = vpack.c.b16 %v1396, %v1395
    %v1431 = vpack.c.b16 %v1398, %v1397
    %v1432 = vpack.c.b16 %v1400, %v1399
    %v1433 = vpack.c.b16 %v1402, %v1401
    %v1434 = vpack.c.b16 %v1404, %v1403
    %v1435 = vpack.c.b16 %v1406, %v1405
    %v1436 = vpack.c.b16 %v1408, %v1407
    %v1437 = vpack.c.b16 %v1410, %v1409
    %v1438 = vpack.c.b16 %v1412, %v1411
    %v1439 = vpack.c.b16 %v1414, %v1413
    %v1440 = vpack.c.b16 %v1416, %v1415
    %1465 = vmatpush.bf16.msra.mxu0 %v1424
    %1466 = vmatpush.bf16.msra.mxu0 %v1423
    %1467 = vmatpush.bf16.msra.mxu0 %v1422
    %1468 = vmatpush.bf16.msra.mxu0 %v1421
    %1469 = vmatpush.bf16.msra.mxu0 %v1420
    %1470 = vmatpush.bf16.msra.mxu0 %v1419
    %1471 = vmatpush.bf16.msra.mxu0 %v1418
    %1472 = vmatpush.bf16.msra.mxu0 %v1417
    %1473 = vmatmul.bf16.gmra.mxu0 %v1266
    %v1474 = vpop.f32.mrf.mxu0
    %v1475 = vadd.f32 %v1319, %v1474
    %v1476 = vpop.f32.mrf.mxu0
    %v1477 = vadd.f32 %v1319, %v1476
    %1478 = vdwg.mxu0
    %1479 = vmatpush.bf16.msra.mxu0 %v1432
    %1480 = vmatpush.bf16.msra.mxu0 %v1431
    %1481 = vmatpush.bf16.msra.mxu0 %v1430
    %1482 = vmatpush.bf16.msra.mxu0 %v1429
    %1483 = vmatpush.bf16.msra.mxu0 %v1428
    %1484 = vmatpush.bf16.msra.mxu0 %v1427
    %1485 = vmatpush.bf16.msra.mxu0 %v1426
    %1486 = vmatpush.bf16.msra.mxu0 %v1425
    %1487 = vmatmul.bf16.gmra.mxu0 %v1267
    %v1488 = vpop.f32.mrf.mxu0
    %v1489 = vadd.f32 %v1475, %v1488
    %v1490 = vpop.f32.mrf.mxu0
    %v1491 = vadd.f32 %v1477, %v1490
    %1492 = vdwg.mxu0
    %1493 = vmatpush.bf16.msra.mxu0 %v1440
    %1494 = vmatpush.bf16.msra.mxu0 %v1439
    %1495 = vmatpush.bf16.msra.mxu0 %v1438
    %1496 = vmatpush.bf16.msra.mxu0 %v1437
    %1497 = vmatpush.bf16.msra.mxu0 %v1436
    %1498 = vmatpush.bf16.msra.mxu0 %v1435
    %1499 = vmatpush.bf16.msra.mxu0 %v1434
    %1500 = vmatpush.bf16.msra.mxu0 %v1433
    %1501 = vmatmul.bf16.gmra.mxu0 %v1268
    %v1502 = vpop.f32.mrf.mxu0
    %v1503 = vadd.f32 %v1489, %v1502
    %v1504 = vpop.f32.mrf.mxu0
    %v1505 = vadd.f32 %v1491, %v1504
    %1506 = vdwg.mxu0
    %v1507 = vmul.f32 %v1503, 0.2
    %v1508 = vmul.f32 %v1505, 0.2
    %v1509 = vmax.f32 %v1503, %v1507
    %v1510 = vmax.f32 %v1505, %v1508
    %1511 = vst [vmem:[#allocation2 + $0x8] sm:$0xff] %v1509
    %1512 = vst [vmem:[#allocation2 + $0x10] sm:$0xff] %v1510
    %v1513 = vld [vmem:[#allocation2 + $0x7] sm:$0xff]
    %v1514 = vld [vmem:[#allocation2 + $0xf] sm:$0xff]
    %v1515 = vld [vmem:[#allocation2 + $0x9] sm:$0xff]
    %v1516 = vld [vmem:[#allocation2 + $0x11] sm:$0xff]
    %v1517 = vsel %vm1262, 0.0, %v1513
    %v1518 = vsel %vm1263, 0.0, %v1514
    %vm1519 = vcmp.eq.s32.totalorder %v1256, 7
    %vm1520 = vcmp.eq.s32.totalorder %v1257, 7
    %v1521 = vsel %vm1519, 1, 0
    %v1522 = vsel %vm1520, 1, 0
    %vm1523 = vcmp.eq.s32.totalorder %v1521, 1
    %vm1524 = vcmp.eq.s32.totalorder %v1522, 1
    %v1525 = vsel %vm1523, 0.0, %v1515
    %v1526 = vsel %vm1524, 0.0, %v1516
    %v1527 = vpack.c.bf16 %v1518, %v1517
    %v1528 = vpack.c.bf16 %v1510, %v1509
    %v1529 = vpack.c.bf16 %v1526, %v1525
    %v1530 = vld [vmem:[%s19] sm:$0xf]
    %v1531 = vld [vmem:[%s19 + $0x4] sm:$0xf]
    %v1532 = vld [vmem:[%s19 + $0x8] sm:$0xf]
    %v1533 = vld [vmem:[%s19 + $0xc] sm:$0xf]
    %v1534 = vld [vmem:[%s19 + $0x10] sm:$0xf]
    %v1535 = vld [vmem:[%s19 + $0x14] sm:$0xf]
    %v1536 = vld [vmem:[%s19 + $0x18] sm:$0xf]
    %v1537 = vld [vmem:[%s19 + $0x1c] sm:$0xf]
    %v1538 = vld [vmem:[%s19 + $0x20] sm:$0xf]
    %v1539 = vld [vmem:[%s19 + $0x24] sm:$0xf]
    %v1540 = vld [vmem:[%s19 + $0x28] sm:$0xf]
    %v1541 = vld [vmem:[%s19 + $0x2c] sm:$0xf]
    %v1542 = vld [vmem:[%s19 + $0x30] sm:$0xf]
    %v1543 = vld [vmem:[%s19 + $0x34] sm:$0xf]
    %v1544 = vld [vmem:[%s19 + $0x38] sm:$0xf]
    %v1545 = vld [vmem:[%s19 + $0x3c] sm:$0xf]
    %v1546 = vld [vmem:[%s19 + $0x40] sm:$0xf]
    %v1547 = vld [vmem:[%s19 + $0x44] sm:$0xf]
    %v1548 = vld [vmem:[%s19 + $0x48] sm:$0xf]
    %v1549 = vld [vmem:[%s19 + $0x4c] sm:$0xf]
    %v1550 = vld [vmem:[%s19 + $0x50] sm:$0xf]
    %v1551 = vld [vmem:[%s19 + $0x54] sm:$0xf]
    %v1552 = vld [vmem:[%s19 + $0x58] sm:$0xf]
    %v1553 = vld [vmem:[%s19 + $0x5c] sm:$0xf]
    %v1554 = vld [vmem:[%s19 + $0x60] sm:$0xf]
    %v1555 = vld [vmem:[%s19 + $0x64] sm:$0xf]
    %v1556 = vld [vmem:[%s19 + $0x68] sm:$0xf]
    %v1557 = vld [vmem:[%s19 + $0x6c] sm:$0xf]
    %v1558 = vld [vmem:[%s19 + $0x70] sm:$0xf]
    %v1559 = vld [vmem:[%s19 + $0x74] sm:$0xf]
    %v1560 = vld [vmem:[%s19 + $0x78] sm:$0xf]
    %v1561 = vld [vmem:[%s19 + $0x7c] sm:$0xf]
    %v1562 = vld [vmem:[%s19 + $0x80] sm:$0xf]
    %v1563 = vld [vmem:[%s19 + $0x84] sm:$0xf]
    %v1564 = vld [vmem:[%s19 + $0x88] sm:$0xf]
    %v1565 = vld [vmem:[%s19 + $0x8c] sm:$0xf]
    %v1566 = vld [vmem:[%s19 + $0x90] sm:$0xf]
    %v1567 = vld [vmem:[%s19 + $0x94] sm:$0xf]
    %v1568 = vld [vmem:[%s19 + $0x98] sm:$0xf]
    %v1569 = vld [vmem:[%s19 + $0x9c] sm:$0xf]
    %v1570 = vld [vmem:[%s19 + $0xa0] sm:$0xf]
    %v1571 = vld [vmem:[%s19 + $0xa4] sm:$0xf]
    %v1572 = vld [vmem:[%s19 + $0xa8] sm:$0xf]
    %v1573 = vld [vmem:[%s19 + $0xac] sm:$0xf]
    %v1574 = vld [vmem:[%s19 + $0xb0] sm:$0xf]
    %v1575 = vld [vmem:[%s19 + $0xb4] sm:$0xf]
    %v1576 = vld [vmem:[%s19 + $0xb8] sm:$0xf]
    %v1577 = vld [vmem:[%s19 + $0xbc] sm:$0xf]
    %v1578 = vld [vmem:[#allocation9] sm:$0x1]
    %v1580 = vperm.slane %v1578, 0
    %v1630 = vunpack.c.l.b16 %v1530
    %v1631 = vunpack.c.l.b16 %v1531
    %v1632 = vunpack.c.l.b16 %v1532
    %v1633 = vunpack.c.l.b16 %v1533
    %v1634 = vunpack.c.l.b16 %v1534
    %v1635 = vunpack.c.l.b16 %v1535
    %v1636 = vunpack.c.l.b16 %v1536
    %v1637 = vunpack.c.l.b16 %v1537
    %v1638 = vunpack.c.l.b16 %v1538
    %v1639 = vunpack.c.l.b16 %v1539
    %v1640 = vunpack.c.l.b16 %v1540
    %v1641 = vunpack.c.l.b16 %v1541
    %v1642 = vunpack.c.l.b16 %v1542
    %v1643 = vunpack.c.l.b16 %v1543
    %v1644 = vunpack.c.l.b16 %v1544
    %v1645 = vunpack.c.l.b16 %v1545
    %v1646 = vunpack.c.l.b16 %v1546
    %v1647 = vunpack.c.l.b16 %v1547
    %v1648 = vunpack.c.l.b16 %v1548
    %v1649 = vunpack.c.l.b16 %v1549
    %v1650 = vunpack.c.l.b16 %v1550
    %v1651 = vunpack.c.l.b16 %v1551
    %v1652 = vunpack.c.l.b16 %v1552
    %v1653 = vunpack.c.l.b16 %v1553
    %v1654 = vunpack.c.l.b16 %v1554
    %v1655 = vunpack.c.l.b16 %v1555
    %v1656 = vunpack.c.l.b16 %v1556
    %v1657 = vunpack.c.l.b16 %v1557
    %v1658 = vunpack.c.l.b16 %v1558
    %v1659 = vunpack.c.l.b16 %v1559
    %v1660 = vunpack.c.l.b16 %v1560
    %v1661 = vunpack.c.l.b16 %v1561
    %v1662 = vunpack.c.l.b16 %v1562
    %v1663 = vunpack.c.l.b16 %v1563
    %v1664 = vunpack.c.l.b16 %v1564
    %v1665 = vunpack.c.l.b16 %v1565
    %v1666 = vunpack.c.l.b16 %v1566
    %v1667 = vunpack.c.l.b16 %v1567
    %v1668 = vunpack.c.l.b16 %v1568
    %v1669 = vunpack.c.l.b16 %v1569
    %v1670 = vunpack.c.l.b16 %v1570
    %v1671 = vunpack.c.l.b16 %v1571
    %v1672 = vunpack.c.l.b16 %v1572
    %v1673 = vunpack.c.l.b16 %v1573
    %v1674 = vunpack.c.l.b16 %v1574
    %v1675 = vunpack.c.l.b16 %v1575
    %v1676 = vunpack.c.l.b16 %v1576
    %v1677 = vunpack.c.l.b16 %v1577
    %v1678 = vpack.c.b16 %v1631, %v1630
    %v1679 = vpack.c.b16 %v1633, %v1632
    %v1680 = vpack.c.b16 %v1635, %v1634
    %v1681 = vpack.c.b16 %v1637, %v1636
    %v1682 = vpack.c.b16 %v1639, %v1638
    %v1683 = vpack.c.b16 %v1641, %v1640
    %v1684 = vpack.c.b16 %v1643, %v1642
    %v1685 = vpack.c.b16 %v1645, %v1644
    %v1686 = vpack.c.b16 %v1647, %v1646
    %v1687 = vpack.c.b16 %v1649, %v1648
    %v1688 = vpack.c.b16 %v1651, %v1650
    %v1689 = vpack.c.b16 %v1653, %v1652
    %v1690 = vpack.c.b16 %v1655, %v1654
    %v1691 = vpack.c.b16 %v1657, %v1656
    %v1692 = vpack.c.b16 %v1659, %v1658
    %v1693 = vpack.c.b16 %v1661, %v1660
    %v1694 = vpack.c.b16 %v1663, %v1662
    %v1695 = vpack.c.b16 %v1665, %v1664
    %v1696 = vpack.c.b16 %v1667, %v1666
    %v1697 = vpack.c.b16 %v1669, %v1668
    %v1698 = vpack.c.b16 %v1671, %v1670
    %v1699 = vpack.c.b16 %v1673, %v1672
    %v1700 = vpack.c.b16 %v1675, %v1674
    %v1701 = vpack.c.b16 %v1677, %v1676
    %1726 = vmatpush.bf16.msra.mxu0 %v1685
    %1727 = vmatpush.bf16.msra.mxu0 %v1684
    %1728 = vmatpush.bf16.msra.mxu0 %v1683
    %1729 = vmatpush.bf16.msra.mxu0 %v1682
    %1730 = vmatpush.bf16.msra.mxu0 %v1681
    %1731 = vmatpush.bf16.msra.mxu0 %v1680
    %1732 = vmatpush.bf16.msra.mxu0 %v1679
    %1733 = vmatpush.bf16.msra.mxu0 %v1678
    %1734 = vmatmul.bf16.gmra.mxu0 %v1527
    %v1735 = vpop.f32.mrf.mxu0
    %v1736 = vadd.f32 %v1580, %v1735
    %v1737 = vpop.f32.mrf.mxu0
    %v1738 = vadd.f32 %v1580, %v1737
    %1739 = vdwg.mxu0
    %1740 = vmatpush.bf16.msra.mxu0 %v1693
    %1741 = vmatpush.bf16.msra.mxu0 %v1692
    %1742 = vmatpush.bf16.msra.mxu0 %v1691
    %1743 = vmatpush.bf16.msra.mxu0 %v1690
    %1744 = vmatpush.bf16.msra.mxu0 %v1689
    %1745 = vmatpush.bf16.msra.mxu0 %v1688
    %1746 = vmatpush.bf16.msra.mxu0 %v1687
    %1747 = vmatpush.bf16.msra.mxu0 %v1686
    %1748 = vmatmul.bf16.gmra.mxu0 %v1528
    %v1749 = vpop.f32.mrf.mxu0
    %v1750 = vadd.f32 %v1736, %v1749
    %v1751 = vpop.f32.mrf.mxu0
    %v1752 = vadd.f32 %v1738, %v1751
    %1753 = vdwg.mxu0
    %1754 = vmatpush.bf16.msra.mxu0 %v1701
    %1755 = vmatpush.bf16.msra.mxu0 %v1700
    %1756 = vmatpush.bf16.msra.mxu0 %v1699
    %1757 = vmatpush.bf16.msra.mxu0 %v1698
    %1758 = vmatpush.bf16.msra.mxu0 %v1697
    %1759 = vmatpush.bf16.msra.mxu0 %v1696
    %1760 = vmatpush.bf16.msra.mxu0 %v1695
    %1761 = vmatpush.bf16.msra.mxu0 %v1694
    %1762 = vmatmul.bf16.gmra.mxu0 %v1529
    %v1763 = vpop.f32.mrf.mxu0
    %v1764 = vadd.f32 %v1750, %v1763
    %v1765 = vpop.f32.mrf.mxu0
    %v1766 = vadd.f32 %v1752, %v1765
    %1767 = vdwg.mxu0
    %v1768 = vmul.f32 %v1764, 0.2
    %v1769 = vmul.f32 %v1766, 0.2
    %v1770 = vmax.f32 %v1764, %v1768
    %v1771 = vmax.f32 %v1766, %v1769
    %1772 = vst [vmem:[#allocation2 + $0x8] sm:$0xff] %v1770
    %1773 = vst [vmem:[#allocation2 + $0x10] sm:$0xff] %v1771
    %v1774 = vld [vmem:[#allocation2 + $0x7] sm:$0xff]
    %v1775 = vld [vmem:[#allocation2 + $0xf] sm:$0xff]
    %v1776 = vld [vmem:[#allocation2 + $0x9] sm:$0xff]
    %v1777 = vld [vmem:[#allocation2 + $0x11] sm:$0xff]
    %v1778 = vsel %vm1262, 0.0, %v1774
    %v1779 = vsel %vm1263, 0.0, %v1775
    %v1780 = vsel %vm1523, 0.0, %v1776
    %v1781 = vsel %vm1524, 0.0, %v1777
    %v1782 = vpack.c.bf16 %v1779, %v1778
    %v1783 = vpack.c.bf16 %v1771, %v1770
    %v1784 = vpack.c.bf16 %v1781, %v1780
    %v1785 = vld [vmem:[#allocation11] sm:$0xf]
    %v1786 = vld [vmem:[#allocation11 + $0x4] sm:$0xf]
    %v1787 = vld [vmem:[#allocation11 + $0x8] sm:$0xf]
    %v1788 = vld [vmem:[#allocation11 + $0xc] sm:$0xf]
    %v1789 = vld [vmem:[#allocation11 + $0x10] sm:$0xf]
    %v1790 = vld [vmem:[#allocation11 + $0x14] sm:$0xf]
    %v1791 = vld [vmem:[#allocation11 + $0x18] sm:$0xf]
    %v1792 = vld [vmem:[#allocation11 + $0x1c] sm:$0xf]
    %v1793 = vld [vmem:[#allocation11 + $0x20] sm:$0xf]
    %v1794 = vld [vmem:[#allocation11 + $0x24] sm:$0xf]
    %v1795 = vld [vmem:[#allocation11 + $0x28] sm:$0xf]
    %v1796 = vld [vmem:[#allocation11 + $0x2c] sm:$0xf]
    %v1797 = vld [vmem:[#allocation11 + $0x30] sm:$0xf]
    %v1798 = vld [vmem:[#allocation11 + $0x34] sm:$0xf]
    %v1799 = vld [vmem:[#allocation11 + $0x38] sm:$0xf]
    %v1800 = vld [vmem:[#allocation11 + $0x3c] sm:$0xf]
    %v1801 = vld [vmem:[#allocation11 + $0x40] sm:$0xf]
    %v1802 = vld [vmem:[#allocation11 + $0x44] sm:$0xf]
    %v1803 = vld [vmem:[#allocation11 + $0x48] sm:$0xf]
    %v1804 = vld [vmem:[#allocation11 + $0x4c] sm:$0xf]
    %v1805 = vld [vmem:[#allocation11 + $0x50] sm:$0xf]
    %v1806 = vld [vmem:[#allocation11 + $0x54] sm:$0xf]
    %v1807 = vld [vmem:[#allocation11 + $0x58] sm:$0xf]
    %v1808 = vld [vmem:[#allocation11 + $0x5c] sm:$0xf]
    %v1809 = vld [vmem:[#allocation11 + $0x60] sm:$0xf]
    %v1810 = vld [vmem:[#allocation11 + $0x64] sm:$0xf]
    %v1811 = vld [vmem:[#allocation11 + $0x68] sm:$0xf]
    %v1812 = vld [vmem:[#allocation11 + $0x6c] sm:$0xf]
    %v1813 = vld [vmem:[#allocation11 + $0x70] sm:$0xf]
    %v1814 = vld [vmem:[#allocation11 + $0x74] sm:$0xf]
    %v1815 = vld [vmem:[#allocation11 + $0x78] sm:$0xf]
    %v1816 = vld [vmem:[#allocation11 + $0x7c] sm:$0xf]
    %v1817 = vld [vmem:[#allocation11 + $0x80] sm:$0xf]
    %v1818 = vld [vmem:[#allocation11 + $0x84] sm:$0xf]
    %v1819 = vld [vmem:[#allocation11 + $0x88] sm:$0xf]
    %v1820 = vld [vmem:[#allocation11 + $0x8c] sm:$0xf]
    %v1821 = vld [vmem:[#allocation11 + $0x90] sm:$0xf]
    %v1822 = vld [vmem:[#allocation11 + $0x94] sm:$0xf]
    %v1823 = vld [vmem:[#allocation11 + $0x98] sm:$0xf]
    %v1824 = vld [vmem:[#allocation11 + $0x9c] sm:$0xf]
    %v1825 = vld [vmem:[#allocation11 + $0xa0] sm:$0xf]
    %v1826 = vld [vmem:[#allocation11 + $0xa4] sm:$0xf]
    %v1827 = vld [vmem:[#allocation11 + $0xa8] sm:$0xf]
    %v1828 = vld [vmem:[#allocation11 + $0xac] sm:$0xf]
    %v1829 = vld [vmem:[#allocation11 + $0xb0] sm:$0xf]
    %v1830 = vld [vmem:[#allocation11 + $0xb4] sm:$0xf]
    %v1831 = vld [vmem:[#allocation11 + $0xb8] sm:$0xf]
    %v1832 = vld [vmem:[#allocation11 + $0xbc] sm:$0xf]
    %v1833 = vld [vmem:[%s25] sm:$0x1]
    %v1835 = vperm.slane %v1833, 0
    %v1885 = vunpack.c.l.b16 %v1785
    %v1886 = vunpack.c.l.b16 %v1786
    %v1887 = vunpack.c.l.b16 %v1787
    %v1888 = vunpack.c.l.b16 %v1788
    %v1889 = vunpack.c.l.b16 %v1789
    %v1890 = vunpack.c.l.b16 %v1790
    %v1891 = vunpack.c.l.b16 %v1791
    %v1892 = vunpack.c.l.b16 %v1792
    %v1893 = vunpack.c.l.b16 %v1793
    %v1894 = vunpack.c.l.b16 %v1794
    %v1895 = vunpack.c.l.b16 %v1795
    %v1896 = vunpack.c.l.b16 %v1796
    %v1897 = vunpack.c.l.b16 %v1797
    %v1898 = vunpack.c.l.b16 %v1798
    %v1899 = vunpack.c.l.b16 %v1799
    %v1900 = vunpack.c.l.b16 %v1800
    %v1901 = vunpack.c.l.b16 %v1801
    %v1902 = vunpack.c.l.b16 %v1802
    %v1903 = vunpack.c.l.b16 %v1803
    %v1904 = vunpack.c.l.b16 %v1804
    %v1905 = vunpack.c.l.b16 %v1805
    %v1906 = vunpack.c.l.b16 %v1806
    %v1907 = vunpack.c.l.b16 %v1807
    %v1908 = vunpack.c.l.b16 %v1808
    %v1909 = vunpack.c.l.b16 %v1809
    %v1910 = vunpack.c.l.b16 %v1810
    %v1911 = vunpack.c.l.b16 %v1811
    %v1912 = vunpack.c.l.b16 %v1812
    %v1913 = vunpack.c.l.b16 %v1813
    %v1914 = vunpack.c.l.b16 %v1814
    %v1915 = vunpack.c.l.b16 %v1815
    %v1916 = vunpack.c.l.b16 %v1816
    %v1917 = vunpack.c.l.b16 %v1817
    %v1918 = vunpack.c.l.b16 %v1818
    %v1919 = vunpack.c.l.b16 %v1819
    %v1920 = vunpack.c.l.b16 %v1820
    %v1921 = vunpack.c.l.b16 %v1821
    %v1922 = vunpack.c.l.b16 %v1822
    %v1923 = vunpack.c.l.b16 %v1823
    %v1924 = vunpack.c.l.b16 %v1824
    %v1925 = vunpack.c.l.b16 %v1825
    %v1926 = vunpack.c.l.b16 %v1826
    %v1927 = vunpack.c.l.b16 %v1827
    %v1928 = vunpack.c.l.b16 %v1828
    %v1929 = vunpack.c.l.b16 %v1829
    %v1930 = vunpack.c.l.b16 %v1830
    %v1931 = vunpack.c.l.b16 %v1831
    %v1932 = vunpack.c.l.b16 %v1832
    %v1933 = vpack.c.b16 %v1886, %v1885
    %v1934 = vpack.c.b16 %v1888, %v1887
    %v1935 = vpack.c.b16 %v1890, %v1889
    %v1936 = vpack.c.b16 %v1892, %v1891
    %v1937 = vpack.c.b16 %v1894, %v1893
    %v1938 = vpack.c.b16 %v1896, %v1895
    %v1939 = vpack.c.b16 %v1898, %v1897
    %v1940 = vpack.c.b16 %v1900, %v1899
    %v1941 = vpack.c.b16 %v1902, %v1901
    %v1942 = vpack.c.b16 %v1904, %v1903
    %v1943 = vpack.c.b16 %v1906, %v1905
    %v1944 = vpack.c.b16 %v1908, %v1907
    %v1945 = vpack.c.b16 %v1910, %v1909
    %v1946 = vpack.c.b16 %v1912, %v1911
    %v1947 = vpack.c.b16 %v1914, %v1913
    %v1948 = vpack.c.b16 %v1916, %v1915
    %v1949 = vpack.c.b16 %v1918, %v1917
    %v1950 = vpack.c.b16 %v1920, %v1919
    %v1951 = vpack.c.b16 %v1922, %v1921
    %v1952 = vpack.c.b16 %v1924, %v1923
    %v1953 = vpack.c.b16 %v1926, %v1925
    %v1954 = vpack.c.b16 %v1928, %v1927
    %v1955 = vpack.c.b16 %v1930, %v1929
    %v1956 = vpack.c.b16 %v1932, %v1931
    %1981 = vmatpush.bf16.msra.mxu0 %v1940
    %1982 = vmatpush.bf16.msra.mxu0 %v1939
    %1983 = vmatpush.bf16.msra.mxu0 %v1938
    %1984 = vmatpush.bf16.msra.mxu0 %v1937
    %1985 = vmatpush.bf16.msra.mxu0 %v1936
    %1986 = vmatpush.bf16.msra.mxu0 %v1935
    %1987 = vmatpush.bf16.msra.mxu0 %v1934
    %1988 = vmatpush.bf16.msra.mxu0 %v1933
    %1989 = vmatmul.bf16.gmra.mxu0 %v1782
    %v1990 = vpop.f32.mrf.mxu0
    %v1991 = vadd.f32 %v1835, %v1990
    %v1992 = vpop.f32.mrf.mxu0
    %v1993 = vadd.f32 %v1835, %v1992
    %1994 = vdwg.mxu0
    %1995 = vmatpush.bf16.msra.mxu0 %v1948
    %1996 = vmatpush.bf16.msra.mxu0 %v1947
    %1997 = vmatpush.bf16.msra.mxu0 %v1946
    %1998 = vmatpush.bf16.msra.mxu0 %v1945
    %1999 = vmatpush.bf16.msra.mxu0 %v1944
    %2000 = vmatpush.bf16.msra.mxu0 %v1943
    %2001 = vmatpush.bf16.msra.mxu0 %v1942
    %2002 = vmatpush.bf16.msra.mxu0 %v1941
    %2003 = vmatmul.bf16.gmra.mxu0 %v1783
    %v2004 = vpop.f32.mrf.mxu0
    %v2005 = vadd.f32 %v1991, %v2004
    %v2006 = vpop.f32.mrf.mxu0
    %v2007 = vadd.f32 %v1993, %v2006
    %2008 = vdwg.mxu0
    %2009 = vmatpush.bf16.msra.mxu0 %v1956
    %2010 = vmatpush.bf16.msra.mxu0 %v1955
    %2011 = vmatpush.bf16.msra.mxu0 %v1954
    %2012 = vmatpush.bf16.msra.mxu0 %v1953
    %2013 = vmatpush.bf16.msra.mxu0 %v1952
    %2014 = vmatpush.bf16.msra.mxu0 %v1951
    %2015 = vmatpush.bf16.msra.mxu0 %v1950
    %2016 = vmatpush.bf16.msra.mxu0 %v1949
    %2017 = vmatmul.bf16.gmra.mxu0 %v1784
    %v2018 = vpop.f32.mrf.mxu0
    %v2019 = vadd.f32 %v2005, %v2018
    %v2020 = vpop.f32.mrf.mxu0
    %v2021 = vadd.f32 %v2007, %v2020
    %2022 = vdwg.mxu0
    %v2023 = vmul.f32 %v2019, 0.2
    %v2024 = vmul.f32 %v2021, 0.2
    %v2025 = vmax.f32 %v2019, %v2023
    %v2026 = vmax.f32 %v2021, %v2024
    %v2027 = vadd.f32 %v1509, %v2025
    %v2028 = vadd.f32 %v1510, %v2026
    %2029 = vst [vmem:[#allocation2 + $0x8] sm:$0xff] %v2027
    %2030 = vst [vmem:[#allocation2 + $0x10] sm:$0xff] %v2028
    %v2031 = vld [vmem:[%s340] ss:$2 sm:$0xff]
    %v2032 = vld [vmem:[%s348] ss:$2 sm:$0xff]
    %v2033 = vld [vmem:[%s356] ss:$2 sm:$0xff]
    %v2034 = vand.u32 %v365, 3
    %vm2035 = vcmp.eq.s32.totalorder %v2034, 0
    %v2036 = vsel %vm2035, 1, 0
    %vm2037 = vcmp.eq.s32.totalorder %v2036, 1
    %v2038 = vsel %vm2037, 0.0, %v2031
    %v2039 = vpack.c.bf16 %v2038, %v2038
    %v2040 = vpack.c.bf16 %v2032, %v2032
    %v2041 = vpack.c.bf16 %v2033, %v2033
    %v2042 = vld [vmem:[#allocation12] sm:$0xf]
    %v2043 = vld [vmem:[#allocation12 + $0x4] sm:$0xf]
    %v2044 = vld [vmem:[#allocation12 + $0x8] sm:$0xf]
    %v2045 = vld [vmem:[#allocation12 + $0xc] sm:$0xf]
    %v2046 = vld [vmem:[#allocation12 + $0x10] sm:$0xf]
    %v2047 = vld [vmem:[#allocation12 + $0x14] sm:$0xf]
    %v2048 = vld [vmem:[#allocation12 + $0x18] sm:$0xf]
    %v2049 = vld [vmem:[#allocation12 + $0x1c] sm:$0xf]
    %v2050 = vld [vmem:[#allocation12 + $0x20] sm:$0xf]
    %v2051 = vld [vmem:[#allocation12 + $0x24] sm:$0xf]
    %v2052 = vld [vmem:[#allocation12 + $0x28] sm:$0xf]
    %v2053 = vld [vmem:[#allocation12 + $0x2c] sm:$0xf]
    %v2054 = vld [vmem:[#allocation12 + $0x30] sm:$0xf]
    %v2055 = vld [vmem:[#allocation12 + $0x34] sm:$0xf]
    %v2056 = vld [vmem:[#allocation12 + $0x38] sm:$0xf]
    %v2057 = vld [vmem:[#allocation12 + $0x3c] sm:$0xf]
    %v2058 = vld [vmem:[#allocation12 + $0x40] sm:$0xf]
    %v2059 = vld [vmem:[#allocation12 + $0x44] sm:$0xf]
    %v2060 = vld [vmem:[#allocation12 + $0x48] sm:$0xf]
    %v2061 = vld [vmem:[#allocation12 + $0x4c] sm:$0xf]
    %v2062 = vld [vmem:[#allocation12 + $0x50] sm:$0xf]
    %v2063 = vld [vmem:[#allocation12 + $0x54] sm:$0xf]
    %v2064 = vld [vmem:[#allocation12 + $0x58] sm:$0xf]
    %v2065 = vld [vmem:[#allocation12 + $0x5c] sm:$0xf]
    %v2066 = vld [vmem:[#allocation12 + $0x60] sm:$0xf]
    %v2067 = vld [vmem:[#allocation12 + $0x64] sm:$0xf]
    %v2068 = vld [vmem:[#allocation12 + $0x68] sm:$0xf]
    %v2069 = vld [vmem:[#allocation12 + $0x6c] sm:$0xf]
    %v2070 = vld [vmem:[#allocation12 + $0x70] sm:$0xf]
    %v2071 = vld [vmem:[#allocation12 + $0x74] sm:$0xf]
    %v2072 = vld [vmem:[#allocation12 + $0x78] sm:$0xf]
    %v2073 = vld [vmem:[#allocation12 + $0x7c] sm:$0xf]
    %v2074 = vld [vmem:[#allocation12 + $0x80] sm:$0xf]
    %v2075 = vld [vmem:[#allocation12 + $0x84] sm:$0xf]
    %v2076 = vld [vmem:[#allocation12 + $0x88] sm:$0xf]
    %v2077 = vld [vmem:[#allocation12 + $0x8c] sm:$0xf]
    %v2078 = vld [vmem:[#allocation12 + $0x90] sm:$0xf]
    %v2079 = vld [vmem:[#allocation12 + $0x94] sm:$0xf]
    %v2080 = vld [vmem:[#allocation12 + $0x98] sm:$0xf]
    %v2081 = vld [vmem:[#allocation12 + $0x9c] sm:$0xf]
    %v2082 = vld [vmem:[#allocation12 + $0xa0] sm:$0xf]
    %v2083 = vld [vmem:[#allocation12 + $0xa4] sm:$0xf]
    %v2084 = vld [vmem:[#allocation12 + $0xa8] sm:$0xf]
    %v2085 = vld [vmem:[#allocation12 + $0xac] sm:$0xf]
    %v2086 = vld [vmem:[#allocation12 + $0xb0] sm:$0xf]
    %v2087 = vld [vmem:[#allocation12 + $0xb4] sm:$0xf]
    %v2088 = vld [vmem:[#allocation12 + $0xb8] sm:$0xf]
    %v2089 = vld [vmem:[#allocation12 + $0xbc] sm:$0xf]
    %v2090 = vld [vmem:[%s29] sm:$0x1]
    %v2092 = vperm.slane %v2090, 0
    %v2142 = vunpack.c.l.b16 %v2042
    %v2143 = vunpack.c.l.b16 %v2043
    %v2144 = vunpack.c.l.b16 %v2044
    %v2145 = vunpack.c.l.b16 %v2045
    %v2146 = vunpack.c.l.b16 %v2046
    %v2147 = vunpack.c.l.b16 %v2047
    %v2148 = vunpack.c.l.b16 %v2048
    %v2149 = vunpack.c.l.b16 %v2049
    %v2150 = vunpack.c.l.b16 %v2050
    %v2151 = vunpack.c.l.b16 %v2051
    %v2152 = vunpack.c.l.b16 %v2052
    %v2153 = vunpack.c.l.b16 %v2053
    %v2154 = vunpack.c.l.b16 %v2054
    %v2155 = vunpack.c.l.b16 %v2055
    %v2156 = vunpack.c.l.b16 %v2056
    %v2157 = vunpack.c.l.b16 %v2057
    %v2158 = vunpack.c.l.b16 %v2058
    %v2159 = vunpack.c.l.b16 %v2059
    %v2160 = vunpack.c.l.b16 %v2060
    %v2161 = vunpack.c.l.b16 %v2061
    %v2162 = vunpack.c.l.b16 %v2062
    %v2163 = vunpack.c.l.b16 %v2063
    %v2164 = vunpack.c.l.b16 %v2064
    %v2165 = vunpack.c.l.b16 %v2065
    %v2166 = vunpack.c.l.b16 %v2066
    %v2167 = vunpack.c.l.b16 %v2067
    %v2168 = vunpack.c.l.b16 %v2068
    %v2169 = vunpack.c.l.b16 %v2069
    %v2170 = vunpack.c.l.b16 %v2070
    %v2171 = vunpack.c.l.b16 %v2071
    %v2172 = vunpack.c.l.b16 %v2072
    %v2173 = vunpack.c.l.b16 %v2073
    %v2174 = vunpack.c.l.b16 %v2074
    %v2175 = vunpack.c.l.b16 %v2075
    %v2176 = vunpack.c.l.b16 %v2076
    %v2177 = vunpack.c.l.b16 %v2077
    %v2178 = vunpack.c.l.b16 %v2078
    %v2179 = vunpack.c.l.b16 %v2079
    %v2180 = vunpack.c.l.b16 %v2080
    %v2181 = vunpack.c.l.b16 %v2081
    %v2182 = vunpack.c.l.b16 %v2082
    %v2183 = vunpack.c.l.b16 %v2083
    %v2184 = vunpack.c.l.b16 %v2084
    %v2185 = vunpack.c.l.b16 %v2085
    %v2186 = vunpack.c.l.b16 %v2086
    %v2187 = vunpack.c.l.b16 %v2087
    %v2188 = vunpack.c.l.b16 %v2088
    %v2189 = vunpack.c.l.b16 %v2089
    %v2190 = vpack.c.b16 %v2143, %v2142
    %v2191 = vpack.c.b16 %v2145, %v2144
    %v2192 = vpack.c.b16 %v2147, %v2146
    %v2193 = vpack.c.b16 %v2149, %v2148
    %v2194 = vpack.c.b16 %v2151, %v2150
    %v2195 = vpack.c.b16 %v2153, %v2152
    %v2196 = vpack.c.b16 %v2155, %v2154
    %v2197 = vpack.c.b16 %v2157, %v2156
    %v2198 = vpack.c.b16 %v2159, %v2158
    %v2199 = vpack.c.b16 %v2161, %v2160
    %v2200 = vpack.c.b16 %v2163, %v2162
    %v2201 = vpack.c.b16 %v2165, %v2164
    %v2202 = vpack.c.b16 %v2167, %v2166
    %v2203 = vpack.c.b16 %v2169, %v2168
    %v2204 = vpack.c.b16 %v2171, %v2170
    %v2205 = vpack.c.b16 %v2173, %v2172
    %v2206 = vpack.c.b16 %v2175, %v2174
    %v2207 = vpack.c.b16 %v2177, %v2176
    %v2208 = vpack.c.b16 %v2179, %v2178
    %v2209 = vpack.c.b16 %v2181, %v2180
    %v2210 = vpack.c.b16 %v2183, %v2182
    %v2211 = vpack.c.b16 %v2185, %v2184
    %v2212 = vpack.c.b16 %v2187, %v2186
    %v2213 = vpack.c.b16 %v2189, %v2188
    %2238 = vmatpush.bf16.msra.mxu0 %v2197
    %2239 = vmatpush.bf16.msra.mxu0 %v2196
    %2240 = vmatpush.bf16.msra.mxu0 %v2195
    %2241 = vmatpush.bf16.msra.mxu0 %v2194
    %2242 = vmatpush.bf16.msra.mxu0 %v2193
    %2243 = vmatpush.bf16.msra.mxu0 %v2192
    %2244 = vmatpush.bf16.msra.mxu0 %v2191
    %2245 = vmatpush.bf16.msra.mxu0 %v2190
    %2246 = vmatmul.bf16.gmra.mxu0 %v2039
    %v2247 = vpop.f32.mrf.mxu0
    %v2248 = vadd.f32 %v2092, %v2247
    %v2249 = vpop.f32.mrf.mxu0
    %2250 = vdwg.mxu0
    %2251 = vmatpush.bf16.msra.mxu0 %v2205
    %2252 = vmatpush.bf16.msra.mxu0 %v2204
    %2253 = vmatpush.bf16.msra.mxu0 %v2203
    %2254 = vmatpush.bf16.msra.mxu0 %v2202
    %2255 = vmatpush.bf16.msra.mxu0 %v2201
    %2256 = vmatpush.bf16.msra.mxu0 %v2200
    %2257 = vmatpush.bf16.msra.mxu0 %v2199
    %2258 = vmatpush.bf16.msra.mxu0 %v2198
    %2259 = vmatmul.bf16.gmra.mxu0 %v2040
    %v2260 = vpop.f32.mrf.mxu0
    %v2261 = vadd.f32 %v2248, %v2260
    %v2262 = vpop.f32.mrf.mxu0
    %2263 = vdwg.mxu0
    %2264 = vmatpush.bf16.msra.mxu0 %v2213
    %2265 = vmatpush.bf16.msra.mxu0 %v2212
    %2266 = vmatpush.bf16.msra.mxu0 %v2211
    %2267 = vmatpush.bf16.msra.mxu0 %v2210
    %2268 = vmatpush.bf16.msra.mxu0 %v2209
    %2269 = vmatpush.bf16.msra.mxu0 %v2208
    %2270 = vmatpush.bf16.msra.mxu0 %v2207
    %2271 = vmatpush.bf16.msra.mxu0 %v2206
    %2272 = vmatmul.bf16.gmra.mxu0 %v2041
    %v2273 = vpop.f32.mrf.mxu0
    %v2274 = vadd.f32 %v2261, %v2273
    %v2275 = vpop.f32.mrf.mxu0
    %2276 = vdwg.mxu0
    %v2277 = vmul.f32 %v2274, 0.2
    %v2278 = vmax.f32 %v2274, %v2277
    %2279 = vst [vmem:[#allocation2 + $0x8] sm:$0xff] %v2278
    %v2280 = vld [vmem:[#allocation2 + $0x7] sm:$0xff]
    %v2281 = vld [vmem:[#allocation2 + $0x9] sm:$0xff]
    %v2282 = vsel %vm2037, 0.0, %v2280
    %vm2283 = vcmp.eq.s32.totalorder %v2034, 3
    %v2284 = vsel %vm2283, 1, 0
    %vm2285 = vcmp.eq.s32.totalorder %v2284, 1
    %v2286 = vsel %vm2285, 0.0, %v2281
    %v2287 = vpack.c.bf16 %v2282, %v2282
    %v2288 = vpack.c.bf16 %v2278, %v2278
    %v2289 = vpack.c.bf16 %v2286, %v2286
    %v2290 = vld [vmem:[#allocation14] sm:$0xf]
    %v2291 = vld [vmem:[#allocation14 + $0x4] sm:$0xf]
    %v2292 = vld [vmem:[#allocation14 + $0x8] sm:$0xf]
    %v2293 = vld [vmem:[#allocation14 + $0xc] sm:$0xf]
    %v2294 = vld [vmem:[#allocation14 + $0x10] sm:$0xf]
    %v2295 = vld [vmem:[#allocation14 + $0x14] sm:$0xf]
    %v2296 = vld [vmem:[#allocation14 + $0x18] sm:$0xf]
    %v2297 = vld [vmem:[#allocation14 + $0x1c] sm:$0xf]
    %v2298 = vld [vmem:[#allocation14 + $0x20] sm:$0xf]
    %v2299 = vld [vmem:[#allocation14 + $0x24] sm:$0xf]
    %v2300 = vld [vmem:[#allocation14 + $0x28] sm:$0xf]
    %v2301 = vld [vmem:[#allocation14 + $0x2c] sm:$0xf]
    %v2302 = vld [vmem:[#allocation14 + $0x30] sm:$0xf]
    %v2303 = vld [vmem:[#allocation14 + $0x34] sm:$0xf]
    %v2304 = vld [vmem:[#allocation14 + $0x38] sm:$0xf]
    %v2305 = vld [vmem:[#allocation14 + $0x3c] sm:$0xf]
    %v2306 = vld [vmem:[#allocation14 + $0x40] sm:$0xf]
    %v2307 = vld [vmem:[#allocation14 + $0x44] sm:$0xf]
    %v2308 = vld [vmem:[#allocation14 + $0x48] sm:$0xf]
    %v2309 = vld [vmem:[#allocation14 + $0x4c] sm:$0xf]
    %v2310 = vld [vmem:[#allocation14 + $0x50] sm:$0xf]
    %v2311 = vld [vmem:[#allocation14 + $0x54] sm:$0xf]
    %v2312 = vld [vmem:[#allocation14 + $0x58] sm:$0xf]
    %v2313 = vld [vmem:[#allocation14 + $0x5c] sm:$0xf]
    %v2314 = vld [vmem:[#allocation14 + $0x60] sm:$0xf]
    %v2315 = vld [vmem:[#allocation14 + $0x64] sm:$0xf]
    %v2316 = vld [vmem:[#allocation14 + $0x68] sm:$0xf]
    %v2317 = vld [vmem:[#allocation14 + $0x6c] sm:$0xf]
    %v2318 = vld [vmem:[#allocation14 + $0x70] sm:$0xf]
    %v2319 = vld [vmem:[#allocation14 + $0x74] sm:$0xf]
    %v2320 = vld [vmem:[#allocation14 + $0x78] sm:$0xf]
    %v2321 = vld [vmem:[#allocation14 + $0x7c] sm:$0xf]
    %v2322 = vld [vmem:[#allocation14 + $0x80] sm:$0xf]
    %v2323 = vld [vmem:[#allocation14 + $0x84] sm:$0xf]
    %v2324 = vld [vmem:[#allocation14 + $0x88] sm:$0xf]
    %v2325 = vld [vmem:[#allocation14 + $0x8c] sm:$0xf]
    %v2326 = vld [vmem:[#allocation14 + $0x90] sm:$0xf]
    %v2327 = vld [vmem:[#allocation14 + $0x94] sm:$0xf]
    %v2328 = vld [vmem:[#allocation14 + $0x98] sm:$0xf]
    %v2329 = vld [vmem:[#allocation14 + $0x9c] sm:$0xf]
    %v2330 = vld [vmem:[#allocation14 + $0xa0] sm:$0xf]
    %v2331 = vld [vmem:[#allocation14 + $0xa4] sm:$0xf]
    %v2332 = vld [vmem:[#allocation14 + $0xa8] sm:$0xf]
    %v2333 = vld [vmem:[#allocation14 + $0xac] sm:$0xf]
    %v2334 = vld [vmem:[#allocation14 + $0xb0] sm:$0xf]
    %v2335 = vld [vmem:[#allocation14 + $0xb4] sm:$0xf]
    %v2336 = vld [vmem:[#allocation14 + $0xb8] sm:$0xf]
    %v2337 = vld [vmem:[#allocation14 + $0xbc] sm:$0xf]
    %v2338 = vld [vmem:[%s33] sm:$0x1]
    %v2340 = vperm.slane %v2338, 0
    %v2390 = vunpack.c.l.b16 %v2290
    %v2391 = vunpack.c.l.b16 %v2291
    %v2392 = vunpack.c.l.b16 %v2292
    %v2393 = vunpack.c.l.b16 %v2293
    %v2394 = vunpack.c.l.b16 %v2294
    %v2395 = vunpack.c.l.b16 %v2295
    %v2396 = vunpack.c.l.b16 %v2296
    %v2397 = vunpack.c.l.b16 %v2297
    %v2398 = vunpack.c.l.b16 %v2298
    %v2399 = vunpack.c.l.b16 %v2299
    %v2400 = vunpack.c.l.b16 %v2300
    %v2401 = vunpack.c.l.b16 %v2301
    %v2402 = vunpack.c.l.b16 %v2302
    %v2403 = vunpack.c.l.b16 %v2303
    %v2404 = vunpack.c.l.b16 %v2304
    %v2405 = vunpack.c.l.b16 %v2305
    %v2406 = vunpack.c.l.b16 %v2306
    %v2407 = vunpack.c.l.b16 %v2307
    %v2408 = vunpack.c.l.b16 %v2308
    %v2409 = vunpack.c.l.b16 %v2309
    %v2410 = vunpack.c.l.b16 %v2310
    %v2411 = vunpack.c.l.b16 %v2311
    %v2412 = vunpack.c.l.b16 %v2312
    %v2413 = vunpack.c.l.b16 %v2313
    %v2414 = vunpack.c.l.b16 %v2314
    %v2415 = vunpack.c.l.b16 %v2315
    %v2416 = vunpack.c.l.b16 %v2316
    %v2417 = vunpack.c.l.b16 %v2317
    %v2418 = vunpack.c.l.b16 %v2318
    %v2419 = vunpack.c.l.b16 %v2319
    %v2420 = vunpack.c.l.b16 %v2320
    %v2421 = vunpack.c.l.b16 %v2321
    %v2422 = vunpack.c.l.b16 %v2322
    %v2423 = vunpack.c.l.b16 %v2323
    %v2424 = vunpack.c.l.b16 %v2324
    %v2425 = vunpack.c.l.b16 %v2325
    %v2426 = vunpack.c.l.b16 %v2326
    %v2427 = vunpack.c.l.b16 %v2327
    %v2428 = vunpack.c.l.b16 %v2328
    %v2429 = vunpack.c.l.b16 %v2329
    %v2430 = vunpack.c.l.b16 %v2330
    %v2431 = vunpack.c.l.b16 %v2331
    %v2432 = vunpack.c.l.b16 %v2332
    %v2433 = vunpack.c.l.b16 %v2333
    %v2434 = vunpack.c.l.b16 %v2334
    %v2435 = vunpack.c.l.b16 %v2335
    %v2436 = vunpack.c.l.b16 %v2336
    %v2437 = vunpack.c.l.b16 %v2337
    %v2438 = vpack.c.b16 %v2391, %v2390
    %v2439 = vpack.c.b16 %v2393, %v2392
    %v2440 = vpack.c.b16 %v2395, %v2394
    %v2441 = vpack.c.b16 %v2397, %v2396
    %v2442 = vpack.c.b16 %v2399, %v2398
    %v2443 = vpack.c.b16 %v2401, %v2400
    %v2444 = vpack.c.b16 %v2403, %v2402
    %v2445 = vpack.c.b16 %v2405, %v2404
    %v2446 = vpack.c.b16 %v2407, %v2406
    %v2447 = vpack.c.b16 %v2409, %v2408
    %v2448 = vpack.c.b16 %v2411, %v2410
    %v2449 = vpack.c.b16 %v2413, %v2412
    %v2450 = vpack.c.b16 %v2415, %v2414
    %v2451 = vpack.c.b16 %v2417, %v2416
    %v2452 = vpack.c.b16 %v2419, %v2418
    %v2453 = vpack.c.b16 %v2421, %v2420
    %v2454 = vpack.c.b16 %v2423, %v2422
    %v2455 = vpack.c.b16 %v2425, %v2424
    %v2456 = vpack.c.b16 %v2427, %v2426
    %v2457 = vpack.c.b16 %v2429, %v2428
    %v2458 = vpack.c.b16 %v2431, %v2430
    %v2459 = vpack.c.b16 %v2433, %v2432
    %v2460 = vpack.c.b16 %v2435, %v2434
    %v2461 = vpack.c.b16 %v2437, %v2436
    %2486 = vmatpush.bf16.msra.mxu0 %v2445
    %2487 = vmatpush.bf16.msra.mxu0 %v2444
    %2488 = vmatpush.bf16.msra.mxu0 %v2443
    %2489 = vmatpush.bf16.msra.mxu0 %v2442
    %2490 = vmatpush.bf16.msra.mxu0 %v2441
    %2491 = vmatpush.bf16.msra.mxu0 %v2440
    %2492 = vmatpush.bf16.msra.mxu0 %v2439
    %2493 = vmatpush.bf16.msra.mxu0 %v2438
    %2494 = vmatmul.bf16.gmra.mxu0 %v2287
    %v2495 = vpop.f32.mrf.mxu0
    %v2496 = vadd.f32 %v2340, %v2495
    %v2497 = vpop.f32.mrf.mxu0
    %2498 = vdwg.mxu0
    %2499 = vmatpush.bf16.msra.mxu0 %v2453
    %2500 = vmatpush.bf16.msra.mxu0 %v2452
    %2501 = vmatpush.bf16.msra.mxu0 %v2451
    %2502 = vmatpush.bf16.msra.mxu0 %v2450
    %2503 = vmatpush.bf16.msra.mxu0 %v2449
    %2504 = vmatpush.bf16.msra.mxu0 %v2448
    %2505 = vmatpush.bf16.msra.mxu0 %v2447
    %2506 = vmatpush.bf16.msra.mxu0 %v2446
    %2507 = vmatmul.bf16.gmra.mxu0 %v2288
    %v2508 = vpop.f32.mrf.mxu0
    %v2509 = vadd.f32 %v2496, %v2508
    %v2510 = vpop.f32.mrf.mxu0
    %2511 = vdwg.mxu0
    %2512 = vmatpush.bf16.msra.mxu0 %v2461
    %2513 = vmatpush.bf16.msra.mxu0 %v2460
    %2514 = vmatpush.bf16.msra.mxu0 %v2459
    %2515 = vmatpush.bf16.msra.mxu0 %v2458
    %2516 = vmatpush.bf16.msra.mxu0 %v2457
    %2517 = vmatpush.bf16.msra.mxu0 %v2456
    %2518 = vmatpush.bf16.msra.mxu0 %v2455
    %2519 = vmatpush.bf16.msra.mxu0 %v2454
    %2520 = vmatmul.bf16.gmra.mxu0 %v2289
    %v2521 = vpop.f32.mrf.mxu0
    %v2522 = vadd.f32 %v2509, %v2521
    %v2523 = vpop.f32.mrf.mxu0
    %2524 = vdwg.mxu0
    %v2525 = vmul.f32 %v2522, 0.2
    %v2526 = vmax.f32 %v2522, %v2525
    %2527 = vst [vmem:[#allocation2 + $0x8] sm:$0xff] %v2526
    %v2528 = vld [vmem:[#allocation2 + $0x7] sm:$0xff]
    %v2529 = vld [vmem:[#allocation2 + $0x9] sm:$0xff]
    %v2530 = vsel %vm2037, 0.0, %v2528
    %v2531 = vsel %vm2285, 0.0, %v2529
    %v2532 = vpack.c.bf16 %v2530, %v2530
    %v2533 = vpack.c.bf16 %v2526, %v2526
    %v2534 = vpack.c.bf16 %v2531, %v2531
    %v2535 = vld [vmem:[#allocation15] sm:$0xf]
    %v2536 = vld [vmem:[#allocation15 + $0x4] sm:$0xf]
    %v2537 = vld [vmem:[#allocation15 + $0x8] sm:$0xf]
    %v2538 = vld [vmem:[#allocation15 + $0xc] sm:$0xf]
    %v2539 = vld [vmem:[#allocation15 + $0x10] sm:$0xf]
    %v2540 = vld [vmem:[#allocation15 + $0x14] sm:$0xf]
    %v2541 = vld [vmem:[#allocation15 + $0x18] sm:$0xf]
    %v2542 = vld [vmem:[#allocation15 + $0x1c] sm:$0xf]
    %v2543 = vld [vmem:[#allocation15 + $0x20] sm:$0xf]
    %v2544 = vld [vmem:[#allocation15 + $0x24] sm:$0xf]
    %v2545 = vld [vmem:[#allocation15 + $0x28] sm:$0xf]
    %v2546 = vld [vmem:[#allocation15 + $0x2c] sm:$0xf]
    %v2547 = vld [vmem:[#allocation15 + $0x30] sm:$0xf]
    %v2548 = vld [vmem:[#allocation15 + $0x34] sm:$0xf]
    %v2549 = vld [vmem:[#allocation15 + $0x38] sm:$0xf]
    %v2550 = vld [vmem:[#allocation15 + $0x3c] sm:$0xf]
    %v2551 = vld [vmem:[#allocation15 + $0x40] sm:$0xf]
    %v2552 = vld [vmem:[#allocation15 + $0x44] sm:$0xf]
    %v2553 = vld [vmem:[#allocation15 + $0x48] sm:$0xf]
    %v2554 = vld [vmem:[#allocation15 + $0x4c] sm:$0xf]
    %v2555 = vld [vmem:[#allocation15 + $0x50] sm:$0xf]
    %v2556 = vld [vmem:[#allocation15 + $0x54] sm:$0xf]
    %v2557 = vld [vmem:[#allocation15 + $0x58] sm:$0xf]
    %v2558 = vld [vmem:[#allocation15 + $0x5c] sm:$0xf]
    %v2559 = vld [vmem:[#allocation15 + $0x60] sm:$0xf]
    %v2560 = vld [vmem:[#allocation15 + $0x64] sm:$0xf]
    %v2561 = vld [vmem:[#allocation15 + $0x68] sm:$0xf]
    %v2562 = vld [vmem:[#allocation15 + $0x6c] sm:$0xf]
    %v2563 = vld [vmem:[#allocation15 + $0x70] sm:$0xf]
    %v2564 = vld [vmem:[#allocation15 + $0x74] sm:$0xf]
    %v2565 = vld [vmem:[#allocation15 + $0x78] sm:$0xf]
    %v2566 = vld [vmem:[#allocation15 + $0x7c] sm:$0xf]
    %v2567 = vld [vmem:[#allocation15 + $0x80] sm:$0xf]
    %v2568 = vld [vmem:[#allocation15 + $0x84] sm:$0xf]
    %v2569 = vld [vmem:[#allocation15 + $0x88] sm:$0xf]
    %v2570 = vld [vmem:[#allocation15 + $0x8c] sm:$0xf]
    %v2571 = vld [vmem:[#allocation15 + $0x90] sm:$0xf]
    %v2572 = vld [vmem:[#allocation15 + $0x94] sm:$0xf]
    %v2573 = vld [vmem:[#allocation15 + $0x98] sm:$0xf]
    %v2574 = vld [vmem:[#allocation15 + $0x9c] sm:$0xf]
    %v2575 = vld [vmem:[#allocation15 + $0xa0] sm:$0xf]
    %v2576 = vld [vmem:[#allocation15 + $0xa4] sm:$0xf]
    %v2577 = vld [vmem:[#allocation15 + $0xa8] sm:$0xf]
    %v2578 = vld [vmem:[#allocation15 + $0xac] sm:$0xf]
    %v2579 = vld [vmem:[#allocation15 + $0xb0] sm:$0xf]
    %v2580 = vld [vmem:[#allocation15 + $0xb4] sm:$0xf]
    %v2581 = vld [vmem:[#allocation15 + $0xb8] sm:$0xf]
    %v2582 = vld [vmem:[#allocation15 + $0xbc] sm:$0xf]
    %v2583 = vld [vmem:[%s37] sm:$0x1]
    %v2585 = vperm.slane %v2583, 0
    %v2635 = vunpack.c.l.b16 %v2535
    %v2636 = vunpack.c.l.b16 %v2536
    %v2637 = vunpack.c.l.b16 %v2537
    %v2638 = vunpack.c.l.b16 %v2538
    %v2639 = vunpack.c.l.b16 %v2539
    %v2640 = vunpack.c.l.b16 %v2540
    %v2641 = vunpack.c.l.b16 %v2541
    %v2642 = vunpack.c.l.b16 %v2542
    %v2643 = vunpack.c.l.b16 %v2543
    %v2644 = vunpack.c.l.b16 %v2544
    %v2645 = vunpack.c.l.b16 %v2545
    %v2646 = vunpack.c.l.b16 %v2546
    %v2647 = vunpack.c.l.b16 %v2547
    %v2648 = vunpack.c.l.b16 %v2548
    %v2649 = vunpack.c.l.b16 %v2549
    %v2650 = vunpack.c.l.b16 %v2550
    %v2651 = vunpack.c.l.b16 %v2551
    %v2652 = vunpack.c.l.b16 %v2552
    %v2653 = vunpack.c.l.b16 %v2553
    %v2654 = vunpack.c.l.b16 %v2554
    %v2655 = vunpack.c.l.b16 %v2555
    %v2656 = vunpack.c.l.b16 %v2556
    %v2657 = vunpack.c.l.b16 %v2557
    %v2658 = vunpack.c.l.b16 %v2558
    %v2659 = vunpack.c.l.b16 %v2559
    %v2660 = vunpack.c.l.b16 %v2560
    %v2661 = vunpack.c.l.b16 %v2561
    %v2662 = vunpack.c.l.b16 %v2562
    %v2663 = vunpack.c.l.b16 %v2563
    %v2664 = vunpack.c.l.b16 %v2564
    %v2665 = vunpack.c.l.b16 %v2565
    %v2666 = vunpack.c.l.b16 %v2566
    %v2667 = vunpack.c.l.b16 %v2567
    %v2668 = vunpack.c.l.b16 %v2568
    %v2669 = vunpack.c.l.b16 %v2569
    %v2670 = vunpack.c.l.b16 %v2570
    %v2671 = vunpack.c.l.b16 %v2571
    %v2672 = vunpack.c.l.b16 %v2572
    %v2673 = vunpack.c.l.b16 %v2573
    %v2674 = vunpack.c.l.b16 %v2574
    %v2675 = vunpack.c.l.b16 %v2575
    %v2676 = vunpack.c.l.b16 %v2576
    %v2677 = vunpack.c.l.b16 %v2577
    %v2678 = vunpack.c.l.b16 %v2578
    %v2679 = vunpack.c.l.b16 %v2579
    %v2680 = vunpack.c.l.b16 %v2580
    %v2681 = vunpack.c.l.b16 %v2581
    %v2682 = vunpack.c.l.b16 %v2582
    %v2683 = vpack.c.b16 %v2636, %v2635
    %v2684 = vpack.c.b16 %v2638, %v2637
    %v2685 = vpack.c.b16 %v2640, %v2639
    %v2686 = vpack.c.b16 %v2642, %v2641
    %v2687 = vpack.c.b16 %v2644, %v2643
    %v2688 = vpack.c.b16 %v2646, %v2645
    %v2689 = vpack.c.b16 %v2648, %v2647
    %v2690 = vpack.c.b16 %v2650, %v2649
    %v2691 = vpack.c.b16 %v2652, %v2651
    %v2692 = vpack.c.b16 %v2654, %v2653
    %v2693 = vpack.c.b16 %v2656, %v2655
    %v2694 = vpack.c.b16 %v2658, %v2657
    %v2695 = vpack.c.b16 %v2660, %v2659
    %v2696 = vpack.c.b16 %v2662, %v2661
    %v2697 = vpack.c.b16 %v2664, %v2663
    %v2698 = vpack.c.b16 %v2666, %v2665
    %v2699 = vpack.c.b16 %v2668, %v2667
    %v2700 = vpack.c.b16 %v2670, %v2669
    %v2701 = vpack.c.b16 %v2672, %v2671
    %v2702 = vpack.c.b16 %v2674, %v2673
    %v2703 = vpack.c.b16 %v2676, %v2675
    %v2704 = vpack.c.b16 %v2678, %v2677
    %v2705 = vpack.c.b16 %v2680, %v2679
    %v2706 = vpack.c.b16 %v2682, %v2681
    %2731 = vmatpush.bf16.msra.mxu0 %v2690
    %2732 = vmatpush.bf16.msra.mxu0 %v2689
    %2733 = vmatpush.bf16.msra.mxu0 %v2688
    %2734 = vmatpush.bf16.msra.mxu0 %v2687
    %2735 = vmatpush.bf16.msra.mxu0 %v2686
    %2736 = vmatpush.bf16.msra.mxu0 %v2685
    %2737 = vmatpush.bf16.msra.mxu0 %v2684
    %2738 = vmatpush.bf16.msra.mxu0 %v2683
    %2739 = vmatmul.bf16.gmra.mxu0 %v2532
    %v2740 = vpop.f32.mrf.mxu0
    %v2741 = vadd.f32 %v2585, %v2740
    %v2742 = vpop.f32.mrf.mxu0
    %2743 = vdwg.mxu0
    %2744 = vmatpush.bf16.msra.mxu0 %v2698
    %2745 = vmatpush.bf16.msra.mxu0 %v2697
    %2746 = vmatpush.bf16.msra.mxu0 %v2696
    %2747 = vmatpush.bf16.msra.mxu0 %v2695
    %2748 = vmatpush.bf16.msra.mxu0 %v2694
    %2749 = vmatpush.bf16.msra.mxu0 %v2693
    %2750 = vmatpush.bf16.msra.mxu0 %v2692
    %2751 = vmatpush.bf16.msra.mxu0 %v2691
    %2752 = vmatmul.bf16.gmra.mxu0 %v2533
    %v2753 = vpop.f32.mrf.mxu0
    %v2754 = vadd.f32 %v2741, %v2753
    %v2755 = vpop.f32.mrf.mxu0
    %2756 = vdwg.mxu0
    %2757 = vmatpush.bf16.msra.mxu0 %v2706
    %2758 = vmatpush.bf16.msra.mxu0 %v2705
    %2759 = vmatpush.bf16.msra.mxu0 %v2704
    %2760 = vmatpush.bf16.msra.mxu0 %v2703
    %2761 = vmatpush.bf16.msra.mxu0 %v2702
    %2762 = vmatpush.bf16.msra.mxu0 %v2701
    %2763 = vmatpush.bf16.msra.mxu0 %v2700
    %2764 = vmatpush.bf16.msra.mxu0 %v2699
    %2765 = vmatmul.bf16.gmra.mxu0 %v2534
    %v2766 = vpop.f32.mrf.mxu0
    %v2767 = vadd.f32 %v2754, %v2766
    %v2768 = vpop.f32.mrf.mxu0
    %2769 = vdwg.mxu0
    %v2770 = vmul.f32 %v2767, 0.2
    %v2771 = vmax.f32 %v2767, %v2770
    %v2772 = vadd.f32 %v2278, %v2771
    %2773 = vst [vmem:[#allocation2 + $0x8] sm:$0xff] %v2772
    %v2774 = vld [vmem:[%s340] ss:$2 sm:$0xf]
    %v2775 = vld [vmem:[%s348] ss:$2 sm:$0xf]
    %v2776 = vld [vmem:[%s356] ss:$2 sm:$0xf]
    %v2777 = vand.u32 %v365, 1
    %vm2778 = vcmp.eq.s32.totalorder %v2777, 0
    %v2779 = vsel %vm2778, 1, 0
    %vm2780 = vcmp.eq.s32.totalorder %v2779, 1
    %v2781 = vsel %vm2780, 0.0, %v2774
    %v2782 = vpack.c.bf16 %v2781, %v2781
    %v2783 = vpack.c.bf16 %v2775, %v2775
    %v2784 = vpack.c.bf16 %v2776, %v2776
    %v2785 = vld [vmem:[#allocation17] sm:$0xf]
    %v2786 = vld [vmem:[#allocation17 + $0x4] sm:$0xf]
    %v2787 = vld [vmem:[#allocation17 + $0x8] sm:$0xf]
    %v2788 = vld [vmem:[#allocation17 + $0xc] sm:$0xf]
    %v2789 = vld [vmem:[#allocation17 + $0x10] sm:$0xf]
    %v2790 = vld [vmem:[#allocation17 + $0x14] sm:$0xf]
    %v2791 = vld [vmem:[#allocation17 + $0x18] sm:$0xf]
    %v2792 = vld [vmem:[#allocation17 + $0x1c] sm:$0xf]
    %v2793 = vld [vmem:[#allocation17 + $0x20] sm:$0xf]
    %v2794 = vld [vmem:[#allocation17 + $0x24] sm:$0xf]
    %v2795 = vld [vmem:[#allocation17 + $0x28] sm:$0xf]
    %v2796 = vld [vmem:[#allocation17 + $0x2c] sm:$0xf]
    %v2797 = vld [vmem:[#allocation17 + $0x30] sm:$0xf]
    %v2798 = vld [vmem:[#allocation17 + $0x34] sm:$0xf]
    %v2799 = vld [vmem:[#allocation17 + $0x38] sm:$0xf]
    %v2800 = vld [vmem:[#allocation17 + $0x3c] sm:$0xf]
    %v2801 = vld [vmem:[#allocation17 + $0x40] sm:$0xf]
    %v2802 = vld [vmem:[#allocation17 + $0x44] sm:$0xf]
    %v2803 = vld [vmem:[#allocation17 + $0x48] sm:$0xf]
    %v2804 = vld [vmem:[#allocation17 + $0x4c] sm:$0xf]
    %v2805 = vld [vmem:[#allocation17 + $0x50] sm:$0xf]
    %v2806 = vld [vmem:[#allocation17 + $0x54] sm:$0xf]
    %v2807 = vld [vmem:[#allocation17 + $0x58] sm:$0xf]
    %v2808 = vld [vmem:[#allocation17 + $0x5c] sm:$0xf]
    %v2809 = vld [vmem:[#allocation17 + $0x60] sm:$0xf]
    %v2810 = vld [vmem:[#allocation17 + $0x64] sm:$0xf]
    %v2811 = vld [vmem:[#allocation17 + $0x68] sm:$0xf]
    %v2812 = vld [vmem:[#allocation17 + $0x6c] sm:$0xf]
    %v2813 = vld [vmem:[#allocation17 + $0x70] sm:$0xf]
    %v2814 = vld [vmem:[#allocation17 + $0x74] sm:$0xf]
    %v2815 = vld [vmem:[#allocation17 + $0x78] sm:$0xf]
    %v2816 = vld [vmem:[#allocation17 + $0x7c] sm:$0xf]
    %v2817 = vld [vmem:[#allocation17 + $0x80] sm:$0xf]
    %v2818 = vld [vmem:[#allocation17 + $0x84] sm:$0xf]
    %v2819 = vld [vmem:[#allocation17 + $0x88] sm:$0xf]
    %v2820 = vld [vmem:[#allocation17 + $0x8c] sm:$0xf]
    %v2821 = vld [vmem:[#allocation17 + $0x90] sm:$0xf]
    %v2822 = vld [vmem:[#allocation17 + $0x94] sm:$0xf]
    %v2823 = vld [vmem:[#allocation17 + $0x98] sm:$0xf]
    %v2824 = vld [vmem:[#allocation17 + $0x9c] sm:$0xf]
    %v2825 = vld [vmem:[#allocation17 + $0xa0] sm:$0xf]
    %v2826 = vld [vmem:[#allocation17 + $0xa4] sm:$0xf]
    %v2827 = vld [vmem:[#allocation17 + $0xa8] sm:$0xf]
    %v2828 = vld [vmem:[#allocation17 + $0xac] sm:$0xf]
    %v2829 = vld [vmem:[#allocation17 + $0xb0] sm:$0xf]
    %v2830 = vld [vmem:[#allocation17 + $0xb4] sm:$0xf]
    %v2831 = vld [vmem:[#allocation17 + $0xb8] sm:$0xf]
    %v2832 = vld [vmem:[#allocation17 + $0xbc] sm:$0xf]
    %v2833 = vld [vmem:[%s41] sm:$0x1]
    %v2835 = vperm.slane %v2833, 0
    %v2885 = vunpack.c.l.b16 %v2785
    %v2886 = vunpack.c.l.b16 %v2786
    %v2887 = vunpack.c.l.b16 %v2787
    %v2888 = vunpack.c.l.b16 %v2788
    %v2889 = vunpack.c.l.b16 %v2789
    %v2890 = vunpack.c.l.b16 %v2790
    %v2891 = vunpack.c.l.b16 %v2791
    %v2892 = vunpack.c.l.b16 %v2792
    %v2893 = vunpack.c.l.b16 %v2793
    %v2894 = vunpack.c.l.b16 %v2794
    %v2895 = vunpack.c.l.b16 %v2795
    %v2896 = vunpack.c.l.b16 %v2796
    %v2897 = vunpack.c.l.b16 %v2797
    %v2898 = vunpack.c.l.b16 %v2798
    %v2899 = vunpack.c.l.b16 %v2799
    %v2900 = vunpack.c.l.b16 %v2800
    %v2901 = vunpack.c.l.b16 %v2801
    %v2902 = vunpack.c.l.b16 %v2802
    %v2903 = vunpack.c.l.b16 %v2803
    %v2904 = vunpack.c.l.b16 %v2804
    %v2905 = vunpack.c.l.b16 %v2805
    %v2906 = vunpack.c.l.b16 %v2806
    %v2907 = vunpack.c.l.b16 %v2807
    %v2908 = vunpack.c.l.b16 %v2808
    %v2909 = vunpack.c.l.b16 %v2809
    %v2910 = vunpack.c.l.b16 %v2810
    %v2911 = vunpack.c.l.b16 %v2811
    %v2912 = vunpack.c.l.b16 %v2812
    %v2913 = vunpack.c.l.b16 %v2813
    %v2914 = vunpack.c.l.b16 %v2814
    %v2915 = vunpack.c.l.b16 %v2815
    %v2916 = vunpack.c.l.b16 %v2816
    %v2917 = vunpack.c.l.b16 %v2817
    %v2918 = vunpack.c.l.b16 %v2818
    %v2919 = vunpack.c.l.b16 %v2819
    %v2920 = vunpack.c.l.b16 %v2820
    %v2921 = vunpack.c.l.b16 %v2821
    %v2922 = vunpack.c.l.b16 %v2822
    %v2923 = vunpack.c.l.b16 %v2823
    %v2924 = vunpack.c.l.b16 %v2824
    %v2925 = vunpack.c.l.b16 %v2825
    %v2926 = vunpack.c.l.b16 %v2826
    %v2927 = vunpack.c.l.b16 %v2827
    %v2928 = vunpack.c.l.b16 %v2828
    %v2929 = vunpack.c.l.b16 %v2829
    %v2930 = vunpack.c.l.b16 %v2830
    %v2931 = vunpack.c.l.b16 %v2831
    %v2932 = vunpack.c.l.b16 %v2832
    %v2933 = vpack.c.b16 %v2886, %v2885
    %v2934 = vpack.c.b16 %v2888, %v2887
    %v2935 = vpack.c.b16 %v2890, %v2889
    %v2936 = vpack.c.b16 %v2892, %v2891
    %v2937 = vpack.c.b16 %v2894, %v2893
    %v2938 = vpack.c.b16 %v2896, %v2895
    %v2939 = vpack.c.b16 %v2898, %v2897
    %v2940 = vpack.c.b16 %v2900, %v2899
    %v2941 = vpack.c.b16 %v2902, %v2901
    %v2942 = vpack.c.b16 %v2904, %v2903
    %v2943 = vpack.c.b16 %v2906, %v2905
    %v2944 = vpack.c.b16 %v2908, %v2907
    %v2945 = vpack.c.b16 %v2910, %v2909
    %v2946 = vpack.c.b16 %v2912, %v2911
    %v2947 = vpack.c.b16 %v2914, %v2913
    %v2948 = vpack.c.b16 %v2916, %v2915
    %v2949 = vpack.c.b16 %v2918, %v2917
    %v2950 = vpack.c.b16 %v2920, %v2919
    %v2951 = vpack.c.b16 %v2922, %v2921
    %v2952 = vpack.c.b16 %v2924, %v2923
    %v2953 = vpack.c.b16 %v2926, %v2925
    %v2954 = vpack.c.b16 %v2928, %v2927
    %v2955 = vpack.c.b16 %v2930, %v2929
    %v2956 = vpack.c.b16 %v2932, %v2931
    %2981 = vmatpush.bf16.msra.mxu0 %v2940
    %2982 = vmatpush.bf16.msra.mxu0 %v2939
    %2983 = vmatpush.bf16.msra.mxu0 %v2938
    %2984 = vmatpush.bf16.msra.mxu0 %v2937
    %2985 = vmatpush.bf16.msra.mxu0 %v2936
    %2986 = vmatpush.bf16.msra.mxu0 %v2935
    %2987 = vmatpush.bf16.msra.mxu0 %v2934
    %2988 = vmatpush.bf16.msra.mxu0 %v2933
    %2989 = vmatmul.bf16.gmra.mxu0 %v2782
    %v2990 = vpop.f32.mrf.mxu0
    %v2991 = vadd.f32 %v2835, %v2990
    %v2992 = vpop.f32.mrf.mxu0
    %2993 = vdwg.mxu0
    %2994 = vmatpush.bf16.msra.mxu0 %v2948
    %2995 = vmatpush.bf16.msra.mxu0 %v2947
    %2996 = vmatpush.bf16.msra.mxu0 %v2946
    %2997 = vmatpush.bf16.msra.mxu0 %v2945
    %2998 = vmatpush.bf16.msra.mxu0 %v2944
    %2999 = vmatpush.bf16.msra.mxu0 %v2943
    %3000 = vmatpush.bf16.msra.mxu0 %v2942
    %3001 = vmatpush.bf16.msra.mxu0 %v2941
    %3002 = vmatmul.bf16.gmra.mxu0 %v2783
    %v3003 = vpop.f32.mrf.mxu0
    %v3004 = vadd.f32 %v2991, %v3003
    %v3005 = vpop.f32.mrf.mxu0
    %3006 = vdwg.mxu0
    %3007 = vmatpush.bf16.msra.mxu0 %v2956
    %3008 = vmatpush.bf16.msra.mxu0 %v2955
    %3009 = vmatpush.bf16.msra.mxu0 %v2954
    %3010 = vmatpush.bf16.msra.mxu0 %v2953
    %3011 = vmatpush.bf16.msra.mxu0 %v2952
    %3012 = vmatpush.bf16.msra.mxu0 %v2951
    %3013 = vmatpush.bf16.msra.mxu0 %v2950
    %3014 = vmatpush.bf16.msra.mxu0 %v2949
    %3015 = vmatmul.bf16.gmra.mxu0 %v2784
    %v3016 = vpop.f32.mrf.mxu0
    %v3017 = vadd.f32 %v3004, %v3016
    %v3018 = vpop.f32.mrf.mxu0
    %3019 = vdwg.mxu0
    %v3020 = vmul.f32 %v3017, 0.2
    %v3021 = vmax.f32 %v3017, %v3020
    %3022 = vst [vmem:[#allocation2 + $0x8] sm:$0xf] %v3021
    %v3023 = vld [vmem:[#allocation2 + $0x7] sm:$0xf]
    %v3024 = vld [vmem:[#allocation2 + $0x9] sm:$0xf]
    %v3025 = vsel %vm2780, 0.0, %v3023
    %vm3026 = vcmp.eq.s32.totalorder %v2777, 1
    %v3027 = vsel %vm3026, 1, 0
    %vm3028 = vcmp.eq.s32.totalorder %v3027, 1
    %v3029 = vsel %vm3028, 0.0, %v3024
    %v3030 = vpack.c.bf16 %v3025, %v3025
    %v3031 = vpack.c.bf16 %v3021, %v3021
    %v3032 = vpack.c.bf16 %v3029, %v3029
    %v3033 = vld [vmem:[#allocation18] sm:$0xf]
    %v3034 = vld [vmem:[#allocation18 + $0x4] sm:$0xf]
    %v3035 = vld [vmem:[#allocation18 + $0x8] sm:$0xf]
    %v3036 = vld [vmem:[#allocation18 + $0xc] sm:$0xf]
    %v3037 = vld [vmem:[#allocation18 + $0x10] sm:$0xf]
    %v3038 = vld [vmem:[#allocation18 + $0x14] sm:$0xf]
    %v3039 = vld [vmem:[#allocation18 + $0x18] sm:$0xf]
    %v3040 = vld [vmem:[#allocation18 + $0x1c] sm:$0xf]
    %v3041 = vld [vmem:[#allocation18 + $0x20] sm:$0xf]
    %v3042 = vld [vmem:[#allocation18 + $0x24] sm:$0xf]
    %v3043 = vld [vmem:[#allocation18 + $0x28] sm:$0xf]
    %v3044 = vld [vmem:[#allocation18 + $0x2c] sm:$0xf]
    %v3045 = vld [vmem:[#allocation18 + $0x30] sm:$0xf]
    %v3046 = vld [vmem:[#allocation18 + $0x34] sm:$0xf]
    %v3047 = vld [vmem:[#allocation18 + $0x38] sm:$0xf]
    %v3048 = vld [vmem:[#allocation18 + $0x3c] sm:$0xf]
    %v3049 = vld [vmem:[#allocation18 + $0x40] sm:$0xf]
    %v3050 = vld [vmem:[#allocation18 + $0x44] sm:$0xf]
    %v3051 = vld [vmem:[#allocation18 + $0x48] sm:$0xf]
    %v3052 = vld [vmem:[#allocation18 + $0x4c] sm:$0xf]
    %v3053 = vld [vmem:[#allocation18 + $0x50] sm:$0xf]
    %v3054 = vld [vmem:[#allocation18 + $0x54] sm:$0xf]
    %v3055 = vld [vmem:[#allocation18 + $0x58] sm:$0xf]
    %v3056 = vld [vmem:[#allocation18 + $0x5c] sm:$0xf]
    %v3057 = vld [vmem:[#allocation18 + $0x60] sm:$0xf]
    %v3058 = vld [vmem:[#allocation18 + $0x64] sm:$0xf]
    %v3059 = vld [vmem:[#allocation18 + $0x68] sm:$0xf]
    %v3060 = vld [vmem:[#allocation18 + $0x6c] sm:$0xf]
    %v3061 = vld [vmem:[#allocation18 + $0x70] sm:$0xf]
    %v3062 = vld [vmem:[#allocation18 + $0x74] sm:$0xf]
    %v3063 = vld [vmem:[#allocation18 + $0x78] sm:$0xf]
    %v3064 = vld [vmem:[#allocation18 + $0x7c] sm:$0xf]
    %v3065 = vld [vmem:[#allocation18 + $0x80] sm:$0xf]
    %v3066 = vld [vmem:[#allocation18 + $0x84] sm:$0xf]
    %v3067 = vld [vmem:[#allocation18 + $0x88] sm:$0xf]
    %v3068 = vld [vmem:[#allocation18 + $0x8c] sm:$0xf]
    %v3069 = vld [vmem:[#allocation18 + $0x90] sm:$0xf]
    %v3070 = vld [vmem:[#allocation18 + $0x94] sm:$0xf]
    %v3071 = vld [vmem:[#allocation18 + $0x98] sm:$0xf]
    %v3072 = vld [vmem:[#allocation18 + $0x9c] sm:$0xf]
    %v3073 = vld [vmem:[#allocation18 + $0xa0] sm:$0xf]
    %v3074 = vld [vmem:[#allocation18 + $0xa4] sm:$0xf]
    %v3075 = vld [vmem:[#allocation18 + $0xa8] sm:$0xf]
    %v3076 = vld [vmem:[#allocation18 + $0xac] sm:$0xf]
    %v3077 = vld [vmem:[#allocation18 + $0xb0] sm:$0xf]
    %v3078 = vld [vmem:[#allocation18 + $0xb4] sm:$0xf]
    %v3079 = vld [vmem:[#allocation18 + $0xb8] sm:$0xf]
    %v3080 = vld [vmem:[#allocation18 + $0xbc] sm:$0xf]
    %v3081 = vld [vmem:[%s45] sm:$0x1]
    %v3083 = vperm.slane %v3081, 0
    %v3133 = vunpack.c.l.b16 %v3033
    %v3134 = vunpack.c.l.b16 %v3034
    %v3135 = vunpack.c.l.b16 %v3035
    %v3136 = vunpack.c.l.b16 %v3036
    %v3137 = vunpack.c.l.b16 %v3037
    %v3138 = vunpack.c.l.b16 %v3038
    %v3139 = vunpack.c.l.b16 %v3039
    %v3140 = vunpack.c.l.b16 %v3040
    %v3141 = vunpack.c.l.b16 %v3041
    %v3142 = vunpack.c.l.b16 %v3042
    %v3143 = vunpack.c.l.b16 %v3043
    %v3144 = vunpack.c.l.b16 %v3044
    %v3145 = vunpack.c.l.b16 %v3045
    %v3146 = vunpack.c.l.b16 %v3046
    %v3147 = vunpack.c.l.b16 %v3047
    %v3148 = vunpack.c.l.b16 %v3048
    %v3149 = vunpack.c.l.b16 %v3049
    %v3150 = vunpack.c.l.b16 %v3050
    %v3151 = vunpack.c.l.b16 %v3051
    %v3152 = vunpack.c.l.b16 %v3052
    %v3153 = vunpack.c.l.b16 %v3053
    %v3154 = vunpack.c.l.b16 %v3054
    %v3155 = vunpack.c.l.b16 %v3055
    %v3156 = vunpack.c.l.b16 %v3056
    %v3157 = vunpack.c.l.b16 %v3057
    %v3158 = vunpack.c.l.b16 %v3058
    %v3159 = vunpack.c.l.b16 %v3059
    %v3160 = vunpack.c.l.b16 %v3060
    %v3161 = vunpack.c.l.b16 %v3061
    %v3162 = vunpack.c.l.b16 %v3062
    %v3163 = vunpack.c.l.b16 %v3063
    %v3164 = vunpack.c.l.b16 %v3064
    %v3165 = vunpack.c.l.b16 %v3065
    %v3166 = vunpack.c.l.b16 %v3066
    %v3167 = vunpack.c.l.b16 %v3067
    %v3168 = vunpack.c.l.b16 %v3068
    %v3169 = vunpack.c.l.b16 %v3069
    %v3170 = vunpack.c.l.b16 %v3070
    %v3171 = vunpack.c.l.b16 %v3071
    %v3172 = vunpack.c.l.b16 %v3072
    %v3173 = vunpack.c.l.b16 %v3073
    %v3174 = vunpack.c.l.b16 %v3074
    %v3175 = vunpack.c.l.b16 %v3075
    %v3176 = vunpack.c.l.b16 %v3076
    %v3177 = vunpack.c.l.b16 %v3077
    %v3178 = vunpack.c.l.b16 %v3078
    %v3179 = vunpack.c.l.b16 %v3079
    %v3180 = vunpack.c.l.b16 %v3080
    %v3181 = vpack.c.b16 %v3134, %v3133
    %v3182 = vpack.c.b16 %v3136, %v3135
    %v3183 = vpack.c.b16 %v3138, %v3137
    %v3184 = vpack.c.b16 %v3140, %v3139
    %v3185 = vpack.c.b16 %v3142, %v3141
    %v3186 = vpack.c.b16 %v3144, %v3143
    %v3187 = vpack.c.b16 %v3146, %v3145
    %v3188 = vpack.c.b16 %v3148, %v3147
    %v3189 = vpack.c.b16 %v3150, %v3149
    %v3190 = vpack.c.b16 %v3152, %v3151
    %v3191 = vpack.c.b16 %v3154, %v3153
    %v3192 = vpack.c.b16 %v3156, %v3155
    %v3193 = vpack.c.b16 %v3158, %v3157
    %v3194 = vpack.c.b16 %v3160, %v3159
    %v3195 = vpack.c.b16 %v3162, %v3161
    %v3196 = vpack.c.b16 %v3164, %v3163
    %v3197 = vpack.c.b16 %v3166, %v3165
    %v3198 = vpack.c.b16 %v3168, %v3167
    %v3199 = vpack.c.b16 %v3170, %v3169
    %v3200 = vpack.c.b16 %v3172, %v3171
    %v3201 = vpack.c.b16 %v3174, %v3173
    %v3202 = vpack.c.b16 %v3176, %v3175
    %v3203 = vpack.c.b16 %v3178, %v3177
    %v3204 = vpack.c.b16 %v3180, %v3179
    %3229 = vmatpush.bf16.msra.mxu0 %v3188
    %3230 = vmatpush.bf16.msra.mxu0 %v3187
    %3231 = vmatpush.bf16.msra.mxu0 %v3186
    %3232 = vmatpush.bf16.msra.mxu0 %v3185
    %3233 = vmatpush.bf16.msra.mxu0 %v3184
    %3234 = vmatpush.bf16.msra.mxu0 %v3183
    %3235 = vmatpush.bf16.msra.mxu0 %v3182
    %3236 = vmatpush.bf16.msra.mxu0 %v3181
    %3237 = vmatmul.bf16.gmra.mxu0 %v3030
    %v3238 = vpop.f32.mrf.mxu0
    %v3239 = vadd.f32 %v3083, %v3238
    %v3240 = vpop.f32.mrf.mxu0
    %3241 = vdwg.mxu0
    %3242 = vmatpush.bf16.msra.mxu0 %v3196
    %3243 = vmatpush.bf16.msra.mxu0 %v3195
    %3244 = vmatpush.bf16.msra.mxu0 %v3194
    %3245 = vmatpush.bf16.msra.mxu0 %v3193
    %3246 = vmatpush.bf16.msra.mxu0 %v3192
    %3247 = vmatpush.bf16.msra.mxu0 %v3191
    %3248 = vmatpush.bf16.msra.mxu0 %v3190
    %3249 = vmatpush.bf16.msra.mxu0 %v3189
    %3250 = vmatmul.bf16.gmra.mxu0 %v3031
    %v3251 = vpop.f32.mrf.mxu0
    %v3252 = vadd.f32 %v3239, %v3251
    %v3253 = vpop.f32.mrf.mxu0
    %3254 = vdwg.mxu0
    %3255 = vmatpush.bf16.msra.mxu0 %v3204
    %3256 = vmatpush.bf16.msra.mxu0 %v3203
    %3257 = vmatpush.bf16.msra.mxu0 %v3202
    %3258 = vmatpush.bf16.msra.mxu0 %v3201
    %3259 = vmatpush.bf16.msra.mxu0 %v3200
    %3260 = vmatpush.bf16.msra.mxu0 %v3199
    %3261 = vmatpush.bf16.msra.mxu0 %v3198
    %3262 = vmatpush.bf16.msra.mxu0 %v3197
    %3263 = vmatmul.bf16.gmra.mxu0 %v3032
    %v3264 = vpop.f32.mrf.mxu0
    %v3265 = vadd.f32 %v3252, %v3264
    %v3266 = vpop.f32.mrf.mxu0
    %3267 = vdwg.mxu0
    %v3268 = vmul.f32 %v3265, 0.2
    %v3269 = vmax.f32 %v3265, %v3268
    %3270 = vst [vmem:[#allocation2 + $0x8] sm:$0xf] %v3269
    %v3271 = vld [vmem:[#allocation2 + $0x7] sm:$0xf]
    %v3272 = vld [vmem:[#allocation2 + $0x9] sm:$0xf]
    %v3273 = vsel %vm2780, 0.0, %v3271
    %v3274 = vsel %vm3028, 0.0, %v3272
    %v3275 = vpack.c.bf16 %v3273, %v3273
    %v3276 = vpack.c.bf16 %v3269, %v3269
    %v3277 = vpack.c.bf16 %v3274, %v3274
    %v3278 = vld [vmem:[#allocation20] sm:$0xf]
    %v3279 = vld [vmem:[#allocation20 + $0x4] sm:$0xf]
    %v3280 = vld [vmem:[#allocation20 + $0x8] sm:$0xf]
    %v3281 = vld [vmem:[#allocation20 + $0xc] sm:$0xf]
    %v3282 = vld [vmem:[#allocation20 + $0x10] sm:$0xf]
    %v3283 = vld [vmem:[#allocation20 + $0x14] sm:$0xf]
    %v3284 = vld [vmem:[#allocation20 + $0x18] sm:$0xf]
    %v3285 = vld [vmem:[#allocation20 + $0x1c] sm:$0xf]
    %v3286 = vld [vmem:[#allocation20 + $0x20] sm:$0xf]
    %v3287 = vld [vmem:[#allocation20 + $0x24] sm:$0xf]
    %v3288 = vld [vmem:[#allocation20 + $0x28] sm:$0xf]
    %v3289 = vld [vmem:[#allocation20 + $0x2c] sm:$0xf]
    %v3290 = vld [vmem:[#allocation20 + $0x30] sm:$0xf]
    %v3291 = vld [vmem:[#allocation20 + $0x34] sm:$0xf]
    %v3292 = vld [vmem:[#allocation20 + $0x38] sm:$0xf]
    %v3293 = vld [vmem:[#allocation20 + $0x3c] sm:$0xf]
    %v3294 = vld [vmem:[#allocation20 + $0x40] sm:$0xf]
    %v3295 = vld [vmem:[#allocation20 + $0x44] sm:$0xf]
    %v3296 = vld [vmem:[#allocation20 + $0x48] sm:$0xf]
    %v3297 = vld [vmem:[#allocation20 + $0x4c] sm:$0xf]
    %v3298 = vld [vmem:[#allocation20 + $0x50] sm:$0xf]
    %v3299 = vld [vmem:[#allocation20 + $0x54] sm:$0xf]
    %v3300 = vld [vmem:[#allocation20 + $0x58] sm:$0xf]
    %v3301 = vld [vmem:[#allocation20 + $0x5c] sm:$0xf]
    %v3302 = vld [vmem:[#allocation20 + $0x60] sm:$0xf]
    %v3303 = vld [vmem:[#allocation20 + $0x64] sm:$0xf]
    %v3304 = vld [vmem:[#allocation20 + $0x68] sm:$0xf]
    %v3305 = vld [vmem:[#allocation20 + $0x6c] sm:$0xf]
    %v3306 = vld [vmem:[#allocation20 + $0x70] sm:$0xf]
    %v3307 = vld [vmem:[#allocation20 + $0x74] sm:$0xf]
    %v3308 = vld [vmem:[#allocation20 + $0x78] sm:$0xf]
    %v3309 = vld [vmem:[#allocation20 + $0x7c] sm:$0xf]
    %v3310 = vld [vmem:[#allocation20 + $0x80] sm:$0xf]
    %v3311 = vld [vmem:[#allocation20 + $0x84] sm:$0xf]
    %v3312 = vld [vmem:[#allocation20 + $0x88] sm:$0xf]
    %v3313 = vld [vmem:[#allocation20 + $0x8c] sm:$0xf]
    %v3314 = vld [vmem:[#allocation20 + $0x90] sm:$0xf]
    %v3315 = vld [vmem:[#allocation20 + $0x94] sm:$0xf]
    %v3316 = vld [vmem:[#allocation20 + $0x98] sm:$0xf]
    %v3317 = vld [vmem:[#allocation20 + $0x9c] sm:$0xf]
    %v3318 = vld [vmem:[#allocation20 + $0xa0] sm:$0xf]
    %v3319 = vld [vmem:[#allocation20 + $0xa4] sm:$0xf]
    %v3320 = vld [vmem:[#allocation20 + $0xa8] sm:$0xf]
    %v3321 = vld [vmem:[#allocation20 + $0xac] sm:$0xf]
    %v3322 = vld [vmem:[#allocation20 + $0xb0] sm:$0xf]
    %v3323 = vld [vmem:[#allocation20 + $0xb4] sm:$0xf]
    %v3324 = vld [vmem:[#allocation20 + $0xb8] sm:$0xf]
    %v3325 = vld [vmem:[#allocation20 + $0xbc] sm:$0xf]
    %v3326 = vld [vmem:[%s49] sm:$0x1]
    %v3328 = vperm.slane %v3326, 0
    %v3378 = vunpack.c.l.b16 %v3278
    %v3379 = vunpack.c.l.b16 %v3279
    %v3380 = vunpack.c.l.b16 %v3280
    %v3381 = vunpack.c.l.b16 %v3281
    %v3382 = vunpack.c.l.b16 %v3282
    %v3383 = vunpack.c.l.b16 %v3283
    %v3384 = vunpack.c.l.b16 %v3284
    %v3385 = vunpack.c.l.b16 %v3285
    %v3386 = vunpack.c.l.b16 %v3286
    %v3387 = vunpack.c.l.b16 %v3287
    %v3388 = vunpack.c.l.b16 %v3288
    %v3389 = vunpack.c.l.b16 %v3289
    %v3390 = vunpack.c.l.b16 %v3290
    %v3391 = vunpack.c.l.b16 %v3291
    %v3392 = vunpack.c.l.b16 %v3292
    %v3393 = vunpack.c.l.b16 %v3293
    %v3394 = vunpack.c.l.b16 %v3294
    %v3395 = vunpack.c.l.b16 %v3295
    %v3396 = vunpack.c.l.b16 %v3296
    %v3397 = vunpack.c.l.b16 %v3297
    %v3398 = vunpack.c.l.b16 %v3298
    %v3399 = vunpack.c.l.b16 %v3299
    %v3400 = vunpack.c.l.b16 %v3300
    %v3401 = vunpack.c.l.b16 %v3301
    %v3402 = vunpack.c.l.b16 %v3302
    %v3403 = vunpack.c.l.b16 %v3303
    %v3404 = vunpack.c.l.b16 %v3304
    %v3405 = vunpack.c.l.b16 %v3305
    %v3406 = vunpack.c.l.b16 %v3306
    %v3407 = vunpack.c.l.b16 %v3307
    %v3408 = vunpack.c.l.b16 %v3308
    %v3409 = vunpack.c.l.b16 %v3309
    %v3410 = vunpack.c.l.b16 %v3310
    %v3411 = vunpack.c.l.b16 %v3311
    %v3412 = vunpack.c.l.b16 %v3312
    %v3413 = vunpack.c.l.b16 %v3313
    %v3414 = vunpack.c.l.b16 %v3314
    %v3415 = vunpack.c.l.b16 %v3315
    %v3416 = vunpack.c.l.b16 %v3316
    %v3417 = vunpack.c.l.b16 %v3317
    %v3418 = vunpack.c.l.b16 %v3318
    %v3419 = vunpack.c.l.b16 %v3319
    %v3420 = vunpack.c.l.b16 %v3320
    %v3421 = vunpack.c.l.b16 %v3321
    %v3422 = vunpack.c.l.b16 %v3322
    %v3423 = vunpack.c.l.b16 %v3323
    %v3424 = vunpack.c.l.b16 %v3324
    %v3425 = vunpack.c.l.b16 %v3325
    %v3426 = vpack.c.b16 %v3379, %v3378
    %v3427 = vpack.c.b16 %v3381, %v3380
    %v3428 = vpack.c.b16 %v3383, %v3382
    %v3429 = vpack.c.b16 %v3385, %v3384
    %v3430 = vpack.c.b16 %v3387, %v3386
    %v3431 = vpack.c.b16 %v3389, %v3388
    %v3432 = vpack.c.b16 %v3391, %v3390
    %v3433 = vpack.c.b16 %v3393, %v3392
    %v3434 = vpack.c.b16 %v3395, %v3394
    %v3435 = vpack.c.b16 %v3397, %v3396
    %v3436 = vpack.c.b16 %v3399, %v3398
    %v3437 = vpack.c.b16 %v3401, %v3400
    %v3438 = vpack.c.b16 %v3403, %v3402
    %v3439 = vpack.c.b16 %v3405, %v3404
    %v3440 = vpack.c.b16 %v3407, %v3406
    %v3441 = vpack.c.b16 %v3409, %v3408
    %v3442 = vpack.c.b16 %v3411, %v3410
    %v3443 = vpack.c.b16 %v3413, %v3412
    %v3444 = vpack.c.b16 %v3415, %v3414
    %v3445 = vpack.c.b16 %v3417, %v3416
    %v3446 = vpack.c.b16 %v3419, %v3418
    %v3447 = vpack.c.b16 %v3421, %v3420
    %v3448 = vpack.c.b16 %v3423, %v3422
    %v3449 = vpack.c.b16 %v3425, %v3424
    %3474 = vmatpush.bf16.msra.mxu0 %v3433
    %3475 = vmatpush.bf16.msra.mxu0 %v3432
    %3476 = vmatpush.bf16.msra.mxu0 %v3431
    %3477 = vmatpush.bf16.msra.mxu0 %v3430
    %3478 = vmatpush.bf16.msra.mxu0 %v3429
    %3479 = vmatpush.bf16.msra.mxu0 %v3428
    %3480 = vmatpush.bf16.msra.mxu0 %v3427
    %3481 = vmatpush.bf16.msra.mxu0 %v3426
    %3482 = vmatmul.bf16.gmra.mxu0 %v3275
    %v3483 = vpop.f32.mrf.mxu0
    %v3484 = vadd.f32 %v3328, %v3483
    %v3485 = vpop.f32.mrf.mxu0
    %3486 = vdwg.mxu0
    %3487 = vmatpush.bf16.msra.mxu0 %v3441
    %3488 = vmatpush.bf16.msra.mxu0 %v3440
    %3489 = vmatpush.bf16.msra.mxu0 %v3439
    %3490 = vmatpush.bf16.msra.mxu0 %v3438
    %3491 = vmatpush.bf16.msra.mxu0 %v3437
    %3492 = vmatpush.bf16.msra.mxu0 %v3436
    %3493 = vmatpush.bf16.msra.mxu0 %v3435
    %3494 = vmatpush.bf16.msra.mxu0 %v3434
    %3495 = vmatmul.bf16.gmra.mxu0 %v3276
    %v3496 = vpop.f32.mrf.mxu0
    %v3497 = vadd.f32 %v3484, %v3496
    %v3498 = vpop.f32.mrf.mxu0
    %3499 = vdwg.mxu0
    %3500 = vmatpush.bf16.msra.mxu0 %v3449
    %3501 = vmatpush.bf16.msra.mxu0 %v3448
    %3502 = vmatpush.bf16.msra.mxu0 %v3447
    %3503 = vmatpush.bf16.msra.mxu0 %v3446
    %3504 = vmatpush.bf16.msra.mxu0 %v3445
    %3505 = vmatpush.bf16.msra.mxu0 %v3444
    %3506 = vmatpush.bf16.msra.mxu0 %v3443
    %3507 = vmatpush.bf16.msra.mxu0 %v3442
    %3508 = vmatmul.bf16.gmra.mxu0 %v3277
    %v3509 = vpop.f32.mrf.mxu0
    %v3510 = vadd.f32 %v3497, %v3509
    %v3511 = vpop.f32.mrf.mxu0
    %3512 = vdwg.mxu0
    %v3513 = vmul.f32 %v3510, 0.2
    %v3514 = vmax.f32 %v3510, %v3513
    %v3515 = vadd.f32 %v3021, %v3514
    %v3516 = vld [vmem:[#allocation21] sm:$0x1]
    %v3518 = vperm.slane %v3516, 0
    %v3520 = vmul.f32 %v3515, %v3518
    %v3521 = vld [vmem:[#allocation23] sm:$0x1]
    %v3523 = vperm.slane %v3521, 0
    %v3525 = vadd.f32 %v3520, %v3523
    %3526 = vst [vmem:[#allocation2 + $0x8] sm:$0xf] %v3525
    %v3527 = vld [vmem:[%s348] ss:$2 sm:$0x3]
    %v3528 = vld [vmem:[%s356] ss:$2 sm:$0x3]
    %v3529 = vld [vmem:[%s55] sm:$0x1]
    %v3530 = vperm.slane %v3529, 0
    %v3531 = vmul.f32 %v3527, %v3530
    %v3532 = vld [vmem:[%s55 + $0x1] sm:$0x1]
    %v3533 = vperm.slane %v3532, 0
    %v3534 = vmul.f32 %v3528, %v3533
    %v3535 = vadd.f32 %v3531, %v3534
    %vm3536 = vcmask 1041408
    %v3537 = vsel %vm3536, %v3535, 0.0
    %3538 = vadd.xlane.f32.xlu0 %v3537
    %v3539 = vpop.xlane.xlu0 %3538
    %v3540 = vld [vmem:[#allocation3] sm:$0x1]
    %v3542 = vperm.slane %v3540, 0
    %v3544 = vadd.f32 %v3539, %v3542
    %v3545 = vsub.f32 0.0, %v3544
    %v3546 = vmul.f32 %v3545, 1.442695
    %v3547 = vpow.pop %v3546
    %v3548 = vadd.f32 %v3547, 1.0
    %v3549 = vrcp.pop %v3548
    %v3550 = vmul.f32 %v3548, %v3549
    %v3551 = vsub.f32 1.0, %v3550
    %v3552 = vmul.f32 %v3549, %v3551
    %v3553 = vadd.f32 %v3549, %v3552
    %vm3554 = vweird.f32 %v3548
    %vm3555 = vweird.f32 %v3549
    %vm3556 = vmor %vm3554, %vm3555
    %v3557 = vsel %vm3556, %v3549, %v3553
    %v3558 = vand.u32 2147483647, %v3548
    %vm3559 = vcmp.eq.f32.partialorder %v3558, 8.507059e+37
    %v3560 = vand.u32 %v3548, 2147483648
    %v3561 = vor.u32 1.1754944e-38, %v3560
    %v3562 = vsel %vm3559, %v3561, %v3557
    %v3563 = vmul.f32 1.0, %v3562
    %vm3564 = vcmask 1024
    %3565 = vst.msk [vmem:[%s59] sm:$0x3] %vm3564, %v3563
    // Predicated region
    $region170: #{netD_forward.1} parent=1 // pred_check
      _
    $region171: #{netD_forward.1} parent=1 // pred_check_branch
      %3567 = sbr.rel (0) target = $region173
    $region172: #{netD_forward.1} parent=1 // pred_region
      _
    $region173: #{netD_forward.1} parent=1 // pred_fallthru
      _
    // Predicated region
    $region174: #{netD_forward.1} parent=1 // pred_check
      _
    $region175: #{netD_forward.1} parent=1 // pred_check_branch
      %3569 = sbr.rel (0) target = $region177
    $region176: #{netD_forward.1} parent=1 // pred_region
      _
    $region177: #{netD_forward.1} parent=1 // pred_fallthru
      _
    %3570 = vsyncpa [#allocation5], 1
    %3571 = vsyncpa [#allocation7], 1
    %3572 = vsyncpa [#allocation10], 1
    %3573 = vsyncpa [#allocation13], 1
    %3574 = vsyncpa [#allocation16], 1
    %3575 = vsyncpa [#allocation19], 1
    %3576 = vsyncpa [#allocation22], 1

</llo_original>
